<compile_context>
chip_gen: v5e
topology: v5e:2x2
jax: 0.10.0
libtpu: 0.0.40
codegen_flags: <defaults>
</compile_context>

<pallas_src>
import math
from functools import partial

import jax
import jax.numpy as jnp
from jax import lax
from jax.experimental import pallas as pl
from jax.experimental.pallas import tpu as pltpu


WEIGHT_DTYPE = jnp.bfloat16   # bf16 MXU operands, f32 accumulation
HIDDEN_DTYPE = jnp.bfloat16   # inter-layer hidden state + KV cache dtype


# -----------------------------------------------------------------------------
# Pallas kernels
# -----------------------------------------------------------------------------
def _gpt2_block_kernel(
    h_ref, ln1g_ref, ln1b_ref,
    wq_ref, wk_ref, wv_ref, bq_ref, bk_ref, bv_ref,
    cpw_ref, cpb_ref,
    ln2g_ref, ln2b_ref, cfw_ref, cfb_ref, mpw_ref, mpb_ref,
    o_ref, k_ref, v_ref,
    *, num_heads, eps, attn_scale,
):
    f32 = jnp.float32
    bf16 = jnp.bfloat16

    h0 = h_ref[...].astype(f32)                               # (T, D) residual #1
    t = h0.shape[0]

    # ---- LN1 (f32) ----
    mu = jnp.mean(h0, axis=-1, keepdims=True)
    var = jnp.mean((h0 - mu) * (h0 - mu), axis=-1, keepdims=True)
    x1 = (h0 - mu) * lax.rsqrt(var + eps) * ln1g_ref[...] + ln1b_ref[...]
    x1b = x1.astype(bf16)

    # Causal mask built once (hoisted out of the head loop).
    row = lax.broadcasted_iota(jnp.int32, (t, t), 0)
    col = lax.broadcasted_iota(jnp.int32, (t, t), 1)
    causal = row >= col
    neg = jnp.float32(jnp.finfo(jnp.float32).min)

    # ---- attention: per-head 2-D matmuls on leading-axis weight panels ----
    # _merge_heads + c_proj fused: accumulate each head's ctx @ Wproj[h] into the
    # residual; no lane-axis slicing, no concatenate, no relayouts.
    h1 = h0 + cpb_ref[...]                                    # residual + c_proj bias
    for hh in range(num_heads):                               # static unroll
        q_h = jnp.dot(x1b, wq_ref[hh], preferred_element_type=f32) + bq_ref[hh]
        k_h = jnp.dot(x1b, wk_ref[hh], preferred_element_type=f32) + bk_ref[hh]
        v_h = jnp.dot(x1b, wv_ref[hh], preferred_element_type=f32) + bv_ref[hh]

        # present K/V written directly in cache layout (nh, T, dh), bf16
        k_ref[hh] = k_h.astype(bf16)
        v_ref[hh] = v_h.astype(bf16)

        # QK^T with bf16 operands (contraction on last dims, no runtime transpose)
        s = lax.dot_general(q_h.astype(bf16), k_h.astype(bf16),
                            (((1,), (1,)), ((), ())),
                            preferred_element_type=f32) * attn_scale
        s = jnp.where(causal, s, neg)
        m = jnp.max(s, axis=-1, keepdims=True)
        e = jnp.exp(s - m)
        p = e / jnp.sum(e, axis=-1, keepdims=True)            # exact softmax
        ctx = jnp.dot(p.astype(bf16), v_h.astype(bf16),
                      preferred_element_type=f32)             # (T, dh)
        h1 = h1 + jnp.dot(ctx.astype(bf16), cpw_ref[hh],
                          preferred_element_type=f32)         # merge+proj fused

    # ---- LN2 (f32) ----
    mu2 = jnp.mean(h1, axis=-1, keepdims=True)
    var2 = jnp.mean((h1 - mu2) * (h1 - mu2), axis=-1, keepdims=True)
    x2 = (h1 - mu2) * lax.rsqrt(var2 + eps) * ln2g_ref[...] + ln2b_ref[...]

    # ---- MLP: c_fc + gelu_new (f32) + mlp c_proj + residual ----
    ff = jnp.dot(x2.astype(bf16), cfw_ref[...],
                 preferred_element_type=f32) + cfb_ref[...]   # (T, 4D)
    c = 0.7978845608028654  # sqrt(2/pi)
    ff = 0.5 * ff * (1.0 + jnp.tanh(c * (ff + 0.044715 * ff * ff * ff)))
    out = (jnp.dot(ff.astype(bf16), mpw_ref[...],
                   preferred_element_type=f32) + mpb_ref[...] + h1)
    o_ref[...] = out.astype(o_ref.dtype)


def _lnf_lmhead_kernel(h_ref, g_ref, b_ref, w_ref, o_ref, *, eps):
    # ln_f fused with one vocab tile of the (bias-free, pre-transposed, tied)
    # lm_head. The hidden block is identical for every vocab tile, so the tiny
    # LN recompute per tile is free; the weight panel streams per grid step.
    f32 = jnp.float32
    x = h_ref[...].astype(f32)
    mu = jnp.mean(x, axis=-1, keepdims=True)
    var = jnp.mean((x - mu) * (x - mu), axis=-1, keepdims=True)
    xn = (x - mu) * lax.rsqrt(var + eps) * g_ref[...] + b_ref[...]
    o_ref[...] = jnp.dot(xn.astype(jnp.bfloat16), w_ref[...],
                         preferred_element_type=f32)


# -----------------------------------------------------------------------------
# Wrappers (pallas_call plumbing)
# -----------------------------------------------------------------------------
def gpt2_block_forward(hidden, blk, config, layer_idx):
    t, d = hidden.shape
    nh = config.num_attention_heads
    dh = d // nh
    inner = config.n_inner if config.n_inner is not None else 4 * d
    scale = (1.0 / math.sqrt(dh)) if config.scale_attn_weights else 1.0
    if config.scale_attn_by_inverse_layer_idx:
        scale = scale / float(layer_idx + 1)

    operands = (
        hidden,
        blk["ln1_g"], blk["ln1_b"],
        blk["wq"], blk["wk"], blk["wv"],
        blk["bq"], blk["bk"], blk["bv"],
        blk["c_proj_w"], blk["c_proj_b"],
        blk["ln2_g"], blk["ln2_b"],
        blk["c_fc_w"], blk["c_fc_b"],
        blk["mlp_proj_w"], blk["mlp_proj_b"],
    )
    in_specs = [pl.BlockSpec(x.shape, (lambda i, nd=x.ndim: (0,) * nd))
                for x in operands]
    out_specs = (
        pl.BlockSpec((t, d), lambda i: (0, 0)),           # hidden out, lane-dense
        pl.BlockSpec((nh, t, dh), lambda i: (0, 0, 0)),   # present K (cache layout)
        pl.BlockSpec((nh, t, dh), lambda i: (0, 0, 0)),   # present V (cache layout)
    )

    flops = (2 * t * d * 3 * d          # c_attn
             + 4 * t * t * d            # QK^T + PV
             + 2 * t * d * d            # c_proj
             + 4 * t * d * inner)       # c_fc + mlp_proj
    transcendentals = nh * t * t + t * inner + 4 * t
    bytes_accessed = (sum(int(x.size) * x.dtype.itemsize for x in operands)
                      + (t * d + 2 * nh * t * dh) * 2)

    out_hidden, k_cache, v_cache = pl.pallas_call(
        partial(_gpt2_block_kernel, num_heads=nh,
                eps=config.layer_norm_epsilon, attn_scale=scale),
        grid=(1,),
        in_specs=in_specs,
        out_specs=out_specs,
        out_shape=(
            jax.ShapeDtypeStruct((t, d), HIDDEN_DTYPE),
            jax.ShapeDtypeStruct((nh, t, dh), HIDDEN_DTYPE),
            jax.ShapeDtypeStruct((nh, t, dh), HIDDEN_DTYPE),
        ),
        compiler_params=pltpu.CompilerParams(
            dimension_semantics=("arbitrary",),
            vmem_limit_bytes=32 * 1024 * 1024),
        cost_estimate=pl.CostEstimate(flops=flops,
                                      transcendentals=transcendentals,
                                      bytes_accessed=bytes_accessed),
    )(*operands)
    # TODO(synk): at real GPT-2 sizes split/tile this fused block over token-row
    # and N/K grid axes ("parallel") so v7x's two TensorCores both run and weight
    # DMA is double-buffered; at T=8/D=128 everything is VMEM-resident already.
    return out_hidden, (k_cache, v_cache)


def pallas_lnf_lm_head(hidden, gamma, beta, w_t, eps, tile_n=128):
    t, d = hidden.shape
    vocab = w_t.shape[1]
    assert vocab % tile_n == 0
    grid_n = vocab // tile_n

    flops = 2 * t * d * vocab
    bytes_accessed = (int(hidden.size) * hidden.dtype.itemsize
                      + int(gamma.size) * 4 + int(beta.size) * 4
                      + int(w_t.size) * w_t.dtype.itemsize
                      + t * vocab * 4)

    return pl.pallas_call(
        partial(_lnf_lmhead_kernel, eps=eps),
        grid=(grid_n,),
        in_specs=[
            pl.BlockSpec((t, d), lambda i: (0, 0)),
            pl.BlockSpec((1, d), lambda i: (0, 0)),
            pl.BlockSpec((1, d), lambda i: (0, 0)),
            pl.BlockSpec((d, tile_n), lambda i: (0, i)),   # vocab-tiled weight panel
        ],
        out_specs=pl.BlockSpec((t, tile_n), lambda i: (0, i)),
        out_shape=jax.ShapeDtypeStruct((t, vocab), jnp.float32),
        compiler_params=pltpu.CompilerParams(
            dimension_semantics=("parallel",),
            vmem_limit_bytes=32 * 1024 * 1024),
        cost_estimate=pl.CostEstimate(flops=flops,
                                      transcendentals=t * grid_n,
                                      bytes_accessed=bytes_accessed),
    )(hidden, gamma, beta, w_t)


# -----------------------------------------------------------------------------
# Model config / params / forward
# -----------------------------------------------------------------------------
class GPT2Config:
    def __init__(self):
        self.vocab_size = 256                 # lane-dense (multiple of 128)
        self.max_position_embeddings = 32
        self.hidden_size = 128                # lane-dense hidden width
        self.n_embd = 128
        self.num_attention_heads = 4
        self.num_hidden_layers = 2
        self.n_inner = None                   # -> 4 * hidden
        self.layer_norm_epsilon = 1e-5
        self.activation_function = "gelu_new"
        self.scale_attn_weights = True
        self.scale_attn_by_inverse_layer_idx = False
        self.resid_pdrop = 0.0                # eval mode: dropout is identity


def init_params(config, key):
    d = config.hidden_size
    nh = config.num_attention_heads
    dh = d // nh
    inner = config.n_inner if config.n_inner is not None else 4 * d
    vocab = config.vocab_size
    std = 0.02
    keys = iter(jax.random.split(key, 2 + 6 * config.num_hidden_layers))

    def w(shape):
        return (jax.random.normal(next(keys), shape, jnp.float32) * std).astype(WEIGHT_DTYPE)

    wte = jax.random.normal(next(keys), (vocab, d), jnp.float32) * std
    wpe = jax.random.normal(next(keys), (config.max_position_embeddings, d),
                            jnp.float32) * std
    params = {
        "wte": wte,
        "wpe": wpe,
        "ln_f_g": jnp.ones((1, d), jnp.float32),
        "ln_f_b": jnp.zeros((1, d), jnp.float32),
        # lm_head weight tied to wte (GPT-2 weight tying), stored once
        # pre-transposed as (d, vocab), bias-free.
        "lm_head_wt": jnp.transpose(wte).astype(WEIGHT_DTYPE),
        "blocks": [],
    }
    for _ in range(config.num_hidden_layers):
        blk = {
            "ln1_g": jnp.ones((1, d), jnp.float32),
            "ln1_b": jnp.zeros((1, d), jnp.float32),
            # c_attn Conv1D (d, 3d) pre-arranged host-side with a leading head
            # axis: per-head Q/K/V panels (nh, d, dh) + biases (nh, 1, dh).
            "wq": w((nh, d, dh)),
            "wk": w((nh, d, dh)),
            "wv": w((nh, d, dh)),
            "bq": jnp.zeros((nh, 1, dh), jnp.float32),
            "bk": jnp.zeros((nh, 1, dh), jnp.float32),
            "bv": jnp.zeros((nh, 1, dh), jnp.float32),
            # c_proj Conv1D (d, d) pre-arranged as per-head row panels (nh, dh, d)
            "c_proj_w": w((nh, dh, d)),
            "c_proj_b": jnp.zeros((1, d), jnp.float32),
            "ln2_g": jnp.ones((1, d), jnp.float32),
            "ln2_b": jnp.zeros((1, d), jnp.float32),
            "c_fc_w": w((d, inner)),
            "c_fc_b": jnp.zeros((1, inner), jnp.float32),
            "mlp_proj_w": w((inner, d)),
            "mlp_proj_b": jnp.zeros((1, d), jnp.float32),
        }
        params["blocks"].append(blk)
    return params


def gpt2_lm_head_forward(params, config, input_ids, position_ids, seq_id=0):
    # Embedding gathers (JAX glue); hidden state crosses HBM between layers in bf16.
    hidden = (jnp.take(params["wte"], input_ids, axis=0)
              + jnp.take(params["wpe"], position_ids, axis=0)).astype(HIDDEN_DTYPE)

    presents = ()
    for i, blk in enumerate(params["blocks"]):
        hidden, present_kv = gpt2_block_forward(hidden, blk, config, i)
        presents = presents + (present_kv,)

    logits = pallas_lnf_lm_head(hidden, params["ln_f_g"], params["ln_f_b"],
                                params["lm_head_wt"], config.layer_norm_epsilon)

    # TODO(synk): multi-sequence continuous batching (per-seq layer_past concat
    # from InputMetadata) is Python-side bookkeeping in the reference; the
    # single-sequence prefill path (layer_past=None) is implemented here.
    return logits, {seq_id: presents}


# -----------------------------------------------------------------------------
# Main
# -----------------------------------------------------------------------------
if __name__ == "__main__":
    config = GPT2Config()
    key = jax.random.PRNGKey(0)
    pkey, ikey = jax.random.split(key)
    params = init_params(config, pkey)

    T = 8  # single prompt of length 8 (continuous-batch prefill, one seq group)
    input_ids = jax.random.randint(ikey, (T,), 0, config.vocab_size, dtype=jnp.int32)
    position_ids = jnp.arange(T, dtype=jnp.int32)

    fwd = jax.jit(lambda p, ids, pos: gpt2_lm_head_forward(p, config, ids, pos))
    logits, cache_kvs = fwd(params, input_ids, position_ids)
    logits = jax.block_until_ready(logits)
    jax.tree_util.tree_map(jax.block_until_ready, cache_kvs)

    nh = config.num_attention_heads
    dh = config.hidden_size // nh
    assert logits.shape == (T, config.vocab_size)
    assert logits.dtype == jnp.float32
    assert len(cache_kvs[0]) == config.num_hidden_layers
    assert cache_kvs[0][0][0].shape == (nh, T, dh)
    assert cache_kvs[0][0][1].shape == (nh, T, dh)
    assert bool(jnp.all(jnp.isfinite(logits)))
    print("KERNEL_OK")
</pallas_src>

<mosaic_0001>
module attributes {stable_mosaic.version = 11 : i64} {
  func.func @_lnf_lmhead_kernel(%arg0: i32, %arg1: memref<8x128xbf16, #tpu.memory_space<vmem>>, %arg2: memref<1x128xf32, #tpu.memory_space<vmem>>, %arg3: memref<1x128xf32, #tpu.memory_space<vmem>>, %arg4: memref<128x128xbf16, #tpu.memory_space<vmem>>, %arg5: memref<8x128xf32, #tpu.memory_space<vmem>>) attributes {dimension_semantics = [#tpu.dimension_semantics<parallel>], iteration_bounds = array<i64: 2>, scalar_prefetch = 0 : i64, scratch_operands = 0 : i64, tpu.core_type = #tpu.core_type<tc>, window_params = [{pipeline_mode = #tpu.pipeline_mode<synchronous>, transform_indices = @transform_0, window_bounds = array<i64: 8, 128>}, {pipeline_mode = #tpu.pipeline_mode<synchronous>, transform_indices = @transform_1, window_bounds = array<i64: 1, 128>}, {pipeline_mode = #tpu.pipeline_mode<synchronous>, transform_indices = @transform_2, window_bounds = array<i64: 1, 128>}, {transform_indices = @transform_3, window_bounds = array<i64: 128, 128>}, {transform_indices = @transform_4, window_bounds = array<i64: 8, 128>}]} {
    %c0 = arith.constant 0 : index
    %c0_0 = arith.constant 0 : index
    %0 = vector.load %arg1[%c0, %c0_0] : memref<8x128xbf16, #tpu.memory_space<vmem>>, vector<8x128xbf16>
    %1 = arith.extf %0 : vector<8x128xbf16> to vector<8x128xf32>
    %cst = arith.constant dense<0.000000e+00> : vector<8xf32>
    %2 = vector.multi_reduction <add>, %1, %cst [1] : vector<8x128xf32> to vector<8xf32>
    %3 = vector.shape_cast %2 : vector<8xf32> to vector<8x1xf32>
    %cst_1 = arith.constant 1.280000e+02 : f32
    %4 = vector.broadcast %cst_1 : f32 to vector<8x1xf32>
    %5 = arith.divf %3, %4 : vector<8x1xf32>
    %6 = vector.broadcast %5 : vector<8x1xf32> to vector<8x128xf32>
    %7 = arith.subf %1, %6 : vector<8x128xf32>
    %8 = vector.broadcast %5 : vector<8x1xf32> to vector<8x128xf32>
    %9 = arith.subf %1, %8 : vector<8x128xf32>
    %10 = arith.mulf %7, %9 : vector<8x128xf32>
    %cst_2 = arith.constant dense<0.000000e+00> : vector<8xf32>
    %11 = vector.multi_reduction <add>, %10, %cst_2 [1] : vector<8x128xf32> to vector<8xf32>
    %12 = vector.shape_cast %11 : vector<8xf32> to vector<8x1xf32>
    %cst_3 = arith.constant 1.280000e+02 : f32
    %13 = vector.broadcast %cst_3 : f32 to vector<8x1xf32>
    %14 = arith.divf %12, %13 : vector<8x1xf32>
    %15 = vector.broadcast %5 : vector<8x1xf32> to vector<8x128xf32>
    %16 = arith.subf %1, %15 : vector<8x128xf32>
    %cst_4 = arith.constant 9.99999974E-6 : f32
    %17 = vector.broadcast %cst_4 : f32 to vector<8x1xf32>
    %18 = arith.addf %14, %17 : vector<8x1xf32>
    %19 = math.rsqrt %18 : vector<8x1xf32>
    %20 = vector.broadcast %19 : vector<8x1xf32> to vector<8x128xf32>
    %21 = arith.mulf %16, %20 : vector<8x128xf32>
    %c0_5 = arith.constant 0 : index
    %c0_6 = arith.constant 0 : index
    %22 = vector.load %arg2[%c0_5, %c0_6] : memref<1x128xf32, #tpu.memory_space<vmem>>, vector<1x128xf32>
    %23 = vector.broadcast %22 : vector<1x128xf32> to vector<8x128xf32>
    %24 = arith.mulf %21, %23 : vector<8x128xf32>
    %c0_7 = arith.constant 0 : index
    %c0_8 = arith.constant 0 : index
    %25 = vector.load %arg3[%c0_7, %c0_8] : memref<1x128xf32, #tpu.memory_space<vmem>>, vector<1x128xf32>
    %26 = vector.broadcast %25 : vector<1x128xf32> to vector<8x128xf32>
    %27 = arith.addf %24, %26 : vector<8x128xf32>
    %28 = arith.truncf %27 : vector<8x128xf32> to vector<8x128xbf16>
    %c0_9 = arith.constant 0 : index
    %c0_10 = arith.constant 0 : index
    %29 = vector.load %arg4[%c0_9, %c0_10] : memref<128x128xbf16, #tpu.memory_space<vmem>>, vector<128x128xbf16>
    %cst_11 = arith.constant dense<0.000000e+00> : vector<8x128xf32>
    %30 = tpu.matmul %28, %29, %cst_11 {dimension_numbers = #tpu.dot_dimension_numbers<[1], [0], [0], [1], [0, 0, 1, 1], [], []>} : vector<8x128xbf16>, vector<128x128xbf16>, vector<8x128xf32> -> vector<8x128xf32>
    %c0_12 = arith.constant 0 : index
    %c0_13 = arith.constant 0 : index
    %31 = vector.load %arg5[%c0_12, %c0_13] : memref<8x128xf32, #tpu.memory_space<vmem>>, vector<8x128xf32>
    tpu.vector_store %arg5[%c0_12, %c0_13], %30 {strides = array<i32>} : memref<8x128xf32, #tpu.memory_space<vmem>>, vector<8x128xf32>,
    return
  }
  func.func @transform_0(%arg0: i32) -> (i32, i32) {
    %c0_i32 = arith.constant 0 : i32
    %c0_i32_0 = arith.constant 0 : i32
    %c0_i32_1 = arith.constant 0 : i32
    return %c0_i32, %c0_i32_0 : i32, i32
  }
  func.func @transform_1(%arg0: i32) -> (i32, i32) {
    %c0_i32 = arith.constant 0 : i32
    %c0_i32_0 = arith.constant 0 : i32
    %c0_i32_1 = arith.constant 0 : i32
    return %c0_i32, %c0_i32_0 : i32, i32
  }
  func.func @transform_2(%arg0: i32) -> (i32, i32) {
    %c0_i32 = arith.constant 0 : i32
    %c0_i32_0 = arith.constant 0 : i32
    %c0_i32_1 = arith.constant 0 : i32
    return %c0_i32, %c0_i32_0 : i32, i32
  }
  func.func @transform_3(%arg0: i32) -> (i32, i32) {
    %c0_i32 = arith.constant 0 : i32
    %c0_i32_0 = arith.constant 0 : i32
    return %c0_i32, %arg0 : i32, i32
  }
  func.func @transform_4(%arg0: i32) -> (i32, i32) {
    %c0_i32 = arith.constant 0 : i32
    %c0_i32_0 = arith.constant 0 : i32
    return %c0_i32, %arg0 : i32, i32
  }
}

module attributes {stable_mosaic.version = 11 : i64} {
  func.func @_gpt2_block_kernel(%arg0: i32, %arg1: memref<8x128xbf16, #tpu.memory_space<vmem>>, %arg2: memref<1x128xf32, #tpu.memory_space<vmem>>, %arg3: memref<1x128xf32, #tpu.memory_space<vmem>>, %arg4: memref<4x128x32xbf16, #tpu.memory_space<vmem>>, %arg5: memref<4x128x32xbf16, #tpu.memory_space<vmem>>, %arg6: memref<4x128x32xbf16, #tpu.memory_space<vmem>>, %arg7: memref<4x1x32xf32, #tpu.memory_space<vmem>>, %arg8: memref<4x1x32xf32, #tpu.memory_space<vmem>>, %arg9: memref<4x1x32xf32, #tpu.memory_space<vmem>>, %arg10: memref<4x32x128xbf16, #tpu.memory_space<vmem>>, %arg11: memref<1x128xf32, #tpu.memory_space<vmem>>, %arg12: memref<1x128xf32, #tpu.memory_space<vmem>>, %arg13: memref<1x128xf32, #tpu.memory_space<vmem>>, %arg14: memref<128x512xbf16, #tpu.memory_space<vmem>>, %arg15: memref<1x512xf32, #tpu.memory_space<vmem>>, %arg16: memref<512x128xbf16, #tpu.memory_space<vmem>>, %arg17: memref<1x128xf32, #tpu.memory_space<vmem>>, %arg18: memref<8x128xbf16, #tpu.memory_space<vmem>>, %arg19: memref<4x8x32xbf16, #tpu.memory_space<vmem>>, %arg20: memref<4x8x32xbf16, #tpu.memory_space<vmem>>) attributes {dimension_semantics = [#tpu.dimension_semantics<arbitrary>], iteration_bounds = array<i64: 1>, scalar_prefetch = 0 : i64, scratch_operands = 0 : i64, tpu.core_type = #tpu.core_type<tc>, window_params = [{pipeline_mode = #tpu.pipeline_mode<synchronous>, transform_indices = @transform_0, window_bounds = array<i64: 8, 128>}, {pipeline_mode = #tpu.pipeline_mode<synchronous>, transform_indices = @transform_1, window_bounds = array<i64: 1, 128>}, {pipeline_mode = #tpu.pipeline_mode<synchronous>, transform_indices = @transform_2, window_bounds = array<i64: 1, 128>}, {pipeline_mode = #tpu.pipeline_mode<synchronous>, transform_indices = @transform_3, window_bounds = array<i64: 4, 128, 32>}, {pipeline_mode = #tpu.pipeline_mode<synchronous>, transform_indices = @transform_4, window_bounds = array<i64: 4, 128, 32>}, {pipeline_mode = #tpu.pipeline_mode<synchronous>, transform_indices = @transform_5, window_bounds = array<i64: 4, 128, 32>}, {pipeline_mode = #tpu.pipeline_mode<synchronous>, transform_indices = @transform_6, window_bounds = array<i64: 4, 1, 32>}, {pipeline_mode = #tpu.pipeline_mode<synchronous>, transform_indices = @transform_7, window_bounds = array<i64: 4, 1, 32>}, {pipeline_mode = #tpu.pipeline_mode<synchronous>, transform_indices = @transform_8, window_bounds = array<i64: 4, 1, 32>}, {pipeline_mode = #tpu.pipeline_mode<synchronous>, transform_indices = @transform_9, window_bounds = array<i64: 4, 32, 128>}, {pipeline_mode = #tpu.pipeline_mode<synchronous>, transform_indices = @transform_10, window_bounds = array<i64: 1, 128>}, {pipeline_mode = #tpu.pipeline_mode<synchronous>, transform_indices = @transform_11, window_bounds = array<i64: 1, 128>}, {pipeline_mode = #tpu.pipeline_mode<synchronous>, transform_indices = @transform_12, window_bounds = array<i64: 1, 128>}, {pipeline_mode = #tpu.pipeline_mode<synchronous>, transform_indices = @transform_13, window_bounds = array<i64: 128, 512>}, {pipeline_mode = #tpu.pipeline_mode<synchronous>, transform_indices = @transform_14, window_bounds = array<i64: 1, 512>}, {pipeline_mode = #tpu.pipeline_mode<synchronous>, transform_indices = @transform_15, window_bounds = array<i64: 512, 128>}, {pipeline_mode = #tpu.pipeline_mode<synchronous>, transform_indices = @transform_16, window_bounds = array<i64: 1, 128>}, {pipeline_mode = #tpu.pipeline_mode<synchronous>, transform_indices = @transform_17, window_bounds = array<i64: 8, 128>}, {pipeline_mode = #tpu.pipeline_mode<synchronous>, transform_indices = @transform_18, window_bounds = array<i64: 4, 8, 32>}, {pipeline_mode = #tpu.pipeline_mode<synchronous>, transform_indices = @transform_19, window_bounds = array<i64: 4, 8, 32>}]} {
    %c0 = arith.constant 0 : index
    %c0_0 = arith.constant 0 : index
    %0 = vector.load %arg1[%c0, %c0_0] : memref<8x128xbf16, #tpu.memory_space<vmem>>, vector<8x128xbf16>
    %1 = arith.extf %0 : vector<8x128xbf16> to vector<8x128xf32>
    %cst = arith.constant dense<0.000000e+00> : vector<8xf32>
    %2 = vector.multi_reduction <add>, %1, %cst [1] : vector<8x128xf32> to vector<8xf32>
    %3 = vector.shape_cast %2 : vector<8xf32> to vector<8x1xf32>
    %cst_1 = arith.constant 1.280000e+02 : f32
    %4 = vector.broadcast %cst_1 : f32 to vector<8x1xf32>
    %5 = arith.divf %3, %4 : vector<8x1xf32>
    %6 = vector.broadcast %5 : vector<8x1xf32> to vector<8x128xf32>
    %7 = arith.subf %1, %6 : vector<8x128xf32>
    %8 = vector.broadcast %5 : vector<8x1xf32> to vector<8x128xf32>
    %9 = arith.subf %1, %8 : vector<8x128xf32>
    %10 = arith.mulf %7, %9 : vector<8x128xf32>
    %cst_2 = arith.constant dense<0.000000e+00> : vector<8xf32>
    %11 = vector.multi_reduction <add>, %10, %cst_2 [1] : vector<8x128xf32> to vector<8xf32>
    %12 = vector.shape_cast %11 : vector<8xf32> to vector<8x1xf32>
    %cst_3 = arith.constant 1.280000e+02 : f32
    %13 = vector.broadcast %cst_3 : f32 to vector<8x1xf32>
    %14 = arith.divf %12, %13 : vector<8x1xf32>
    %15 = vector.broadcast %5 : vector<8x1xf32> to vector<8x128xf32>
    %16 = arith.subf %1, %15 : vector<8x128xf32>
    %cst_4 = arith.constant 9.99999974E-6 : f32
    %17 = vector.broadcast %cst_4 : f32 to vector<8x1xf32>
    %18 = arith.addf %14, %17 : vector<8x1xf32>
    %19 = math.rsqrt %18 : vector<8x1xf32>
    %20 = vector.broadcast %19 : vector<8x1xf32> to vector<8x128xf32>
    %21 = arith.mulf %16, %20 : vector<8x128xf32>
    %c0_5 = arith.constant 0 : index
    %c0_6 = arith.constant 0 : index
    %22 = vector.load %arg2[%c0_5, %c0_6] : memref<1x128xf32, #tpu.memory_space<vmem>>, vector<1x128xf32>
    %23 = vector.broadcast %22 : vector<1x128xf32> to vector<8x128xf32>
    %24 = arith.mulf %21, %23 : vector<8x128xf32>
    %c0_7 = arith.constant 0 : index
    %c0_8 = arith.constant 0 : index
    %25 = vector.load %arg3[%c0_7, %c0_8] : memref<1x128xf32, #tpu.memory_space<vmem>>, vector<1x128xf32>
    %26 = vector.broadcast %25 : vector<1x128xf32> to vector<8x128xf32>
    %27 = arith.addf %24, %26 : vector<8x128xf32>
    %28 = arith.truncf %27 : vector<8x128xf32> to vector<8x128xbf16>
    %29 = tpu.iota {dimensions = array<i32: 0>} : vector<8x8xi32>
    %30 = tpu.iota {dimensions = array<i32: 1>} : vector<8x8xi32>
    %31 = arith.cmpi sge, %29, %30 : vector<8x8xi32>
    %c0_9 = arith.constant 0 : index
    %c0_10 = arith.constant 0 : index
    %32 = vector.load %arg11[%c0_9, %c0_10] : memref<1x128xf32, #tpu.memory_space<vmem>>, vector<1x128xf32>
    %33 = vector.broadcast %32 : vector<1x128xf32> to vector<8x128xf32>
    %34 = arith.addf %1, %33 : vector<8x128xf32>
    %c0_11 = arith.constant 0 : index
    %c0_12 = arith.constant 0 : index
    %c0_13 = arith.constant 0 : index
    %35 = vector.load %arg4[%c0_11, %c0_12, %c0_13] : memref<4x128x32xbf16, #tpu.memory_space<vmem>>, vector<1x128x32xbf16>
    %36 = vector.shape_cast %35 : vector<1x128x32xbf16> to vector<128x32xbf16>
    %cst_14 = arith.constant dense<0.000000e+00> : vector<8x32xf32>
    %37 = tpu.matmul %28, %36, %cst_14 {dimension_numbers = #tpu.dot_dimension_numbers<[1], [0], [0], [1], [0, 0, 1, 1], [], []>} : vector<8x128xbf16>, vector<128x32xbf16>, vector<8x32xf32> -> vector<8x32xf32>
    %c0_15 = arith.constant 0 : index
    %c0_16 = arith.constant 0 : index
    %c0_17 = arith.constant 0 : index
    %38 = vector.load %arg7[%c0_15, %c0_16, %c0_17] : memref<4x1x32xf32, #tpu.memory_space<vmem>>, vector<1x1x32xf32>
    %39 = vector.shape_cast %38 : vector<1x1x32xf32> to vector<1x32xf32>
    %40 = vector.broadcast %39 : vector<1x32xf32> to vector<8x32xf32>
    %41 = arith.addf %37, %40 : vector<8x32xf32>
    %c0_18 = arith.constant 0 : index
    %c0_19 = arith.constant 0 : index
    %c0_20 = arith.constant 0 : index
    %42 = vector.load %arg5[%c0_18, %c0_19, %c0_20] : memref<4x128x32xbf16, #tpu.memory_space<vmem>>, vector<1x128x32xbf16>
    %43 = vector.shape_cast %42 : vector<1x128x32xbf16> to vector<128x32xbf16>
    %cst_21 = arith.constant dense<0.000000e+00> : vector<8x32xf32>
    %44 = tpu.matmul %28, %43, %cst_21 {dimension_numbers = #tpu.dot_dimension_numbers<[1], [0], [0], [1], [0, 0, 1, 1], [], []>} : vector<8x128xbf16>, vector<128x32xbf16>, vector<8x32xf32> -> vector<8x32xf32>
    %c0_22 = arith.constant 0 : index
    %c0_23 = arith.constant 0 : index
    %c0_24 = arith.constant 0 : index
    %45 = vector.load %arg8[%c0_22, %c0_23, %c0_24] : memref<4x1x32xf32, #tpu.memory_space<vmem>>, vector<1x1x32xf32>
    %46 = vector.shape_cast %45 : vector<1x1x32xf32> to vector<1x32xf32>
    %47 = vector.broadcast %46 : vector<1x32xf32> to vector<8x32xf32>
    %48 = arith.addf %44, %47 : vector<8x32xf32>
    %c0_25 = arith.constant 0 : index
    %c0_26 = arith.constant 0 : index
    %c0_27 = arith.constant 0 : index
    %49 = vector.load %arg6[%c0_25, %c0_26, %c0_27] : memref<4x128x32xbf16, #tpu.memory_space<vmem>>, vector<1x128x32xbf16>
    %50 = vector.shape_cast %49 : vector<1x128x32xbf16> to vector<128x32xbf16>
    %cst_28 = arith.constant dense<0.000000e+00> : vector<8x32xf32>
    %51 = tpu.matmul %28, %50, %cst_28 {dimension_numbers = #tpu.dot_dimension_numbers<[1], [0], [0], [1], [0, 0, 1, 1], [], []>} : vector<8x128xbf16>, vector<128x32xbf16>, vector<8x32xf32> -> vector<8x32xf32>
    %c0_29 = arith.constant 0 : index
    %c0_30 = arith.constant 0 : index
    %c0_31 = arith.constant 0 : index
    %52 = vector.load %arg9[%c0_29, %c0_30, %c0_31] : memref<4x1x32xf32, #tpu.memory_space<vmem>>, vector<1x1x32xf32>
    %53 = vector.shape_cast %52 : vector<1x1x32xf32> to vector<1x32xf32>
    %54 = vector.broadcast %53 : vector<1x32xf32> to vector<8x32xf32>
    %55 = arith.addf %51, %54 : vector<8x32xf32>
    %56 = arith.truncf %48 : vector<8x32xf32> to vector<8x32xbf16>
    %c0_32 = arith.constant 0 : index
    %c0_33 = arith.constant 0 : index
    %c0_34 = arith.constant 0 : index
    %57 = vector.load %arg19[%c0_32, %c0_33, %c0_34] : memref<4x8x32xbf16, #tpu.memory_space<vmem>>, vector<1x8x32xbf16>
    %58 = vector.shape_cast %57 : vector<1x8x32xbf16> to vector<8x32xbf16>
    %59 = vector.shape_cast %56 : vector<8x32xbf16> to vector<1x8x32xbf16>
    tpu.vector_store %arg19[%c0_32, %c0_33, %c0_34], %59 {strides = array<i32>} : memref<4x8x32xbf16, #tpu.memory_space<vmem>>, vector<1x8x32xbf16>,
    %60 = arith.truncf %55 : vector<8x32xf32> to vector<8x32xbf16>
    %c0_35 = arith.constant 0 : index
    %c0_36 = arith.constant 0 : index
    %c0_37 = arith.constant 0 : index
    %61 = vector.load %arg20[%c0_35, %c0_36, %c0_37] : memref<4x8x32xbf16, #tpu.memory_space<vmem>>, vector<1x8x32xbf16>
    %62 = vector.shape_cast %61 : vector<1x8x32xbf16> to vector<8x32xbf16>
    %63 = vector.shape_cast %60 : vector<8x32xbf16> to vector<1x8x32xbf16>
    tpu.vector_store %arg20[%c0_35, %c0_36, %c0_37], %63 {strides = array<i32>} : memref<4x8x32xbf16, #tpu.memory_space<vmem>>, vector<1x8x32xbf16>,
    %64 = arith.truncf %41 : vector<8x32xf32> to vector<8x32xbf16>
    %65 = arith.truncf %48 : vector<8x32xf32> to vector<8x32xbf16>
    %cst_38 = arith.constant dense<0.000000e+00> : vector<8x8xf32>
    %66 = tpu.matmul %64, %65, %cst_38 {dimension_numbers = #tpu.dot_dimension_numbers<[1], [1], [0], [0], [0, 0, 1, 0], [], []>} : vector<8x32xbf16>, vector<8x32xbf16>, vector<8x8xf32> -> vector<8x8xf32>
    %cst_39 = arith.constant 0.176776692 : f32
    %67 = vector.broadcast %cst_39 : f32 to vector<8x8xf32>
    %68 = arith.mulf %66, %67 : vector<8x8xf32>
    %cst_40 = arith.constant -3.40282347E+38 : f32
    %69 = vector.broadcast %cst_40 : f32 to vector<8x8xf32>
    %70 = arith.select %31, %68, %69 : vector<8x8xi1>, vector<8x8xf32>
    %cst_41 = arith.constant dense<0xFF800000> : vector<8xf32>
    %71 = vector.multi_reduction <maximumf>, %70, %cst_41 [1] : vector<8x8xf32> to vector<8xf32>
    %72 = vector.shape_cast %71 : vector<8xf32> to vector<8x1xf32>
    %73 = vector.broadcast %72 : vector<8x1xf32> to vector<8x8xf32>
    %74 = arith.subf %70, %73 : vector<8x8xf32>
    %75 = math.exp %74 : vector<8x8xf32>
    %cst_42 = arith.constant dense<0.000000e+00> : vector<8xf32>
    %76 = vector.multi_reduction <add>, %75, %cst_42 [1] : vector<8x8xf32> to vector<8xf32>
    %77 = vector.shape_cast %76 : vector<8xf32> to vector<8x1xf32>
    %78 = vector.broadcast %77 : vector<8x1xf32> to vector<8x8xf32>
    %79 = arith.divf %75, %78 : vector<8x8xf32>
    %80 = arith.truncf %79 : vector<8x8xf32> to vector<8x8xbf16>
    %81 = arith.truncf %55 : vector<8x32xf32> to vector<8x32xbf16>
    %cst_43 = arith.constant dense<0.000000e+00> : vector<8x32xf32>
    %82 = tpu.matmul %80, %81, %cst_43 {dimension_numbers = #tpu.dot_dimension_numbers<[1], [0], [0], [1], [0, 0, 1, 1], [], []>} : vector<8x8xbf16>, vector<8x32xbf16>, vector<8x32xf32> -> vector<8x32xf32>
    %83 = arith.truncf %82 : vector<8x32xf32> to vector<8x32xbf16>
    %c0_44 = arith.constant 0 : index
    %c0_45 = arith.constant 0 : index
    %c0_46 = arith.constant 0 : index
    %84 = vector.load %arg10[%c0_44, %c0_45, %c0_46] : memref<4x32x128xbf16, #tpu.memory_space<vmem>>, vector<1x32x128xbf16>
    %85 = vector.shape_cast %84 : vector<1x32x128xbf16> to vector<32x128xbf16>
    %cst_47 = arith.constant dense<0.000000e+00> : vector<8x128xf32>
    %86 = tpu.matmul %83, %85, %cst_47 {dimension_numbers = #tpu.dot_dimension_numbers<[1], [0], [0], [1], [0, 0, 1, 1], [], []>} : vector<8x32xbf16>, vector<32x128xbf16>, vector<8x128xf32> -> vector<8x128xf32>
    %87 = arith.addf %34, %86 : vector<8x128xf32>
    %c1 = arith.constant 1 : index
    %c0_48 = arith.constant 0 : index
    %c0_49 = arith.constant 0 : index
    %88 = vector.load %arg4[%c1, %c0_48, %c0_49] : memref<4x128x32xbf16, #tpu.memory_space<vmem>>, vector<1x128x32xbf16>
    %89 = vector.shape_cast %88 : vector<1x128x32xbf16> to vector<128x32xbf16>
    %cst_50 = arith.constant dense<0.000000e+00> : vector<8x32xf32>
    %90 = tpu.matmul %28, %89, %cst_50 {dimension_numbers = #tpu.dot_dimension_numbers<[1], [0], [0], [1], [0, 0, 1, 1], [], []>} : vector<8x128xbf16>, vector<128x32xbf16>, vector<8x32xf32> -> vector<8x32xf32>
    %c1_51 = arith.constant 1 : index
    %c0_52 = arith.constant 0 : index
    %c0_53 = arith.constant 0 : index
    %91 = vector.load %arg7[%c1_51, %c0_52, %c0_53] : memref<4x1x32xf32, #tpu.memory_space<vmem>>, vector<1x1x32xf32>
    %92 = vector.shape_cast %91 : vector<1x1x32xf32> to vector<1x32xf32>
    %93 = vector.broadcast %92 : vector<1x32xf32> to vector<8x32xf32>
    %94 = arith.addf %90, %93 : vector<8x32xf32>
    %c1_54 = arith.constant 1 : index
    %c0_55 = arith.constant 0 : index
    %c0_56 = arith.constant 0 : index
    %95 = vector.load %arg5[%c1_54, %c0_55, %c0_56] : memref<4x128x32xbf16, #tpu.memory_space<vmem>>, vector<1x128x32xbf16>
    %96 = vector.shape_cast %95 : vector<1x128x32xbf16> to vector<128x32xbf16>
    %cst_57 = arith.constant dense<0.000000e+00> : vector<8x32xf32>
    %97 = tpu.matmul %28, %96, %cst_57 {dimension_numbers = #tpu.dot_dimension_numbers<[1], [0], [0], [1], [0, 0, 1, 1], [], []>} : vector<8x128xbf16>, vector<128x32xbf16>, vector<8x32xf32> -> vector<8x32xf32>
    %c1_58 = arith.constant 1 : index
    %c0_59 = arith.constant 0 : index
    %c0_60 = arith.constant 0 : index
    %98 = vector.load %arg8[%c1_58, %c0_59, %c0_60] : memref<4x1x32xf32, #tpu.memory_space<vmem>>, vector<1x1x32xf32>
    %99 = vector.shape_cast %98 : vector<1x1x32xf32> to vector<1x32xf32>
    %100 = vector.broadcast %99 : vector<1x32xf32> to vector<8x32xf32>
    %101 = arith.addf %97, %100 : vector<8x32xf32>
    %c1_61 = arith.constant 1 : index
    %c0_62 = arith.constant 0 : index
    %c0_63 = arith.constant 0 : index
    %102 = vector.load %arg6[%c1_61, %c0_62, %c0_63] : memref<4x128x32xbf16, #tpu.memory_space<vmem>>, vector<1x128x32xbf16>
    %103 = vector.shape_cast %102 : vector<1x128x32xbf16> to vector<128x32xbf16>
    %cst_64 = arith.constant dense<0.000000e+00> : vector<8x32xf32>
    %104 = tpu.matmul %28, %103, %cst_64 {dimension_numbers = #tpu.dot_dimension_numbers<[1], [0], [0], [1], [0, 0, 1, 1], [], []>} : vector<8x128xbf16>, vector<128x32xbf16>, vector<8x32xf32> -> vector<8x32xf32>
    %c1_65 = arith.constant 1 : index
    %c0_66 = arith.constant 0 : index
    %c0_67 = arith.constant 0 : index
    %105 = vector.load %arg9[%c1_65, %c0_66, %c0_67] : memref<4x1x32xf32, #tpu.memory_space<vmem>>, vector<1x1x32xf32>
    %106 = vector.shape_cast %105 : vector<1x1x32xf32> to vector<1x32xf32>
    %107 = vector.broadcast %106 : vector<1x32xf32> to vector<8x32xf32>
    %108 = arith.addf %104, %107 : vector<8x32xf32>
    %109 = arith.truncf %101 : vector<8x32xf32> to vector<8x32xbf16>
    %c1_68 = arith.constant 1 : index
    %c0_69 = arith.constant 0 : index
    %c0_70 = arith.constant 0 : index
    %110 = vector.load %arg19[%c1_68, %c0_69, %c0_70] : memref<4x8x32xbf16, #tpu.memory_space<vmem>>, vector<1x8x32xbf16>
    %111 = vector.shape_cast %110 : vector<1x8x32xbf16> to vector<8x32xbf16>
    %112 = vector.shape_cast %109 : vector<8x32xbf16> to vector<1x8x32xbf16>
    tpu.vector_store %arg19[%c1_68, %c0_69, %c0_70], %112 {strides = array<i32>} : memref<4x8x32xbf16, #tpu.memory_space<vmem>>, vector<1x8x32xbf16>,
    %113 = arith.truncf %108 : vector<8x32xf32> to vector<8x32xbf16>
    %c1_71 = arith.constant 1 : index
    %c0_72 = arith.constant 0 : index
    %c0_73 = arith.constant 0 : index
    %114 = vector.load %arg20[%c1_71, %c0_72, %c0_73] : memref<4x8x32xbf16, #tpu.memory_space<vmem>>, vector<1x8x32xbf16>
    %115 = vector.shape_cast %114 : vector<1x8x32xbf16> to vector<8x32xbf16>
    %116 = vector.shape_cast %113 : vector<8x32xbf16> to vector<1x8x32xbf16>
    tpu.vector_store %arg20[%c1_71, %c0_72, %c0_73], %116 {strides = array<i32>} : memref<4x8x32xbf16, #tpu.memory_space<vmem>>, vector<1x8x32xbf16>,
    %117 = arith.truncf %94 : vector<8x32xf32> to vector<8x32xbf16>
    %118 = arith.truncf %101 : vector<8x32xf32> to vector<8x32xbf16>
    %cst_74 = arith.constant dense<0.000000e+00> : vector<8x8xf32>
    %119 = tpu.matmul %117, %118, %cst_74 {dimension_numbers = #tpu.dot_dimension_numbers<[1], [1], [0], [0], [0, 0, 1, 0], [], []>} : vector<8x32xbf16>, vector<8x32xbf16>, vector<8x8xf32> -> vector<8x8xf32>
    %cst_75 = arith.constant 0.176776692 : f32
    %120 = vector.broadcast %cst_75 : f32 to vector<8x8xf32>
    %121 = arith.mulf %119, %120 : vector<8x8xf32>
    %cst_76 = arith.constant -3.40282347E+38 : f32
    %122 = vector.broadcast %cst_76 : f32 to vector<8x8xf32>
    %123 = arith.select %31, %121, %122 : vector<8x8xi1>, vector<8x8xf32>
    %cst_77 = arith.constant dense<0xFF800000> : vector<8xf32>
    %124 = vector.multi_reduction <maximumf>, %123, %cst_77 [1] : vector<8x8xf32> to vector<8xf32>
    %125 = vector.shape_cast %124 : vector<8xf32> to vector<8x1xf32>
    %126 = vector.broadcast %125 : vector<8x1xf32> to vector<8x8xf32>
    %127 = arith.subf %123, %126 : vector<8x8xf32>
    %128 = math.exp %127 : vector<8x8xf32>
    %cst_78 = arith.constant dense<0.000000e+00> : vector<8xf32>
    %129 = vector.multi_reduction <add>, %128, %cst_78 [1] : vector<8x8xf32> to vector<8xf32>
    %130 = vector.shape_cast %129 : vector<8xf32> to vector<8x1xf32>
    %131 = vector.broadcast %130 : vector<8x1xf32> to vector<8x8xf32>
    %132 = arith.divf %128, %131 : vector<8x8xf32>
    %133 = arith.truncf %132 : vector<8x8xf32> to vector<8x8xbf16>
    %134 = arith.truncf %108 : vector<8x32xf32> to vector<8x32xbf16>
    %cst_79 = arith.constant dense<0.000000e+00> : vector<8x32xf32>
    %135 = tpu.matmul %133, %134, %cst_79 {dimension_numbers = #tpu.dot_dimension_numbers<[1], [0], [0], [1], [0, 0, 1, 1], [], []>} : vector<8x8xbf16>, vector<8x32xbf16>, vector<8x32xf32> -> vector<8x32xf32>
    %136 = arith.truncf %135 : vector<8x32xf32> to vector<8x32xbf16>
    %c1_80 = arith.constant 1 : index
    %c0_81 = arith.constant 0 : index
    %c0_82 = arith.constant 0 : index
    %137 = vector.load %arg10[%c1_80, %c0_81, %c0_82] : memref<4x32x128xbf16, #tpu.memory_space<vmem>>, vector<1x32x128xbf16>
    %138 = vector.shape_cast %137 : vector<1x32x128xbf16> to vector<32x128xbf16>
    %cst_83 = arith.constant dense<0.000000e+00> : vector<8x128xf32>
    %139 = tpu.matmul %136, %138, %cst_83 {dimension_numbers = #tpu.dot_dimension_numbers<[1], [0], [0], [1], [0, 0, 1, 1], [], []>} : vector<8x32xbf16>, vector<32x128xbf16>, vector<8x128xf32> -> vector<8x128xf32>
    %140 = arith.addf %87, %139 : vector<8x128xf32>
    %c2 = arith.constant 2 : index
    %c0_84 = arith.constant 0 : index
    %c0_85 = arith.constant 0 : index
    %141 = vector.load %arg4[%c2, %c0_84, %c0_85] : memref<4x128x32xbf16, #tpu.memory_space<vmem>>, vector<1x128x32xbf16>
    %142 = vector.shape_cast %141 : vector<1x128x32xbf16> to vector<128x32xbf16>
    %cst_86 = arith.constant dense<0.000000e+00> : vector<8x32xf32>
    %143 = tpu.matmul %28, %142, %cst_86 {dimension_numbers = #tpu.dot_dimension_numbers<[1], [0], [0], [1], [0, 0, 1, 1], [], []>} : vector<8x128xbf16>, vector<128x32xbf16>, vector<8x32xf32> -> vector<8x32xf32>
    %c2_87 = arith.constant 2 : index
    %c0_88 = arith.constant 0 : index
    %c0_89 = arith.constant 0 : index
    %144 = vector.load %arg7[%c2_87, %c0_88, %c0_89] : memref<4x1x32xf32, #tpu.memory_space<vmem>>, vector<1x1x32xf32>
    %145 = vector.shape_cast %144 : vector<1x1x32xf32> to vector<1x32xf32>
    %146 = vector.broadcast %145 : vector<1x32xf32> to vector<8x32xf32>
    %147 = arith.addf %143, %146 : vector<8x32xf32>
    %c2_90 = arith.constant 2 : index
    %c0_91 = arith.constant 0 : index
    %c0_92 = arith.constant 0 : index
    %148 = vector.load %arg5[%c2_90, %c0_91, %c0_92] : memref<4x128x32xbf16, #tpu.memory_space<vmem>>, vector<1x128x32xbf16>
    %149 = vector.shape_cast %148 : vector<1x128x32xbf16> to vector<128x32xbf16>
    %cst_93 = arith.constant dense<0.000000e+00> : vector<8x32xf32>
    %150 = tpu.matmul %28, %149, %cst_93 {dimension_numbers = #tpu.dot_dimension_numbers<[1], [0], [0], [1], [0, 0, 1, 1], [], []>} : vector<8x128xbf16>, vector<128x32xbf16>, vector<8x32xf32> -> vector<8x32xf32>
    %c2_94 = arith.constant 2 : index
    %c0_95 = arith.constant 0 : index
    %c0_96 = arith.constant 0 : index
    %151 = vector.load %arg8[%c2_94, %c0_95, %c0_96] : memref<4x1x32xf32, #tpu.memory_space<vmem>>, vector<1x1x32xf32>
    %152 = vector.shape_cast %151 : vector<1x1x32xf32> to vector<1x32xf32>
    %153 = vector.broadcast %152 : vector<1x32xf32> to vector<8x32xf32>
    %154 = arith.addf %150, %153 : vector<8x32xf32>
    %c2_97 = arith.constant 2 : index
    %c0_98 = arith.constant 0 : index
    %c0_99 = arith.constant 0 : index
    %155 = vector.load %arg6[%c2_97, %c0_98, %c0_99] : memref<4x128x32xbf16, #tpu.memory_space<vmem>>, vector<1x128x32xbf16>
    %156 = vector.shape_cast %155 : vector<1x128x32xbf16> to vector<128x32xbf16>
    %cst_100 = arith.constant dense<0.000000e+00> : vector<8x32xf32>
    %157 = tpu.matmul %28, %156, %cst_100 {dimension_numbers = #tpu.dot_dimension_numbers<[1], [0], [0], [1], [0, 0, 1, 1], [], []>} : vector<8x128xbf16>, vector<128x32xbf16>, vector<8x32xf32> -> vector<8x32xf32>
    %c2_101 = arith.constant 2 : index
    %c0_102 = arith.constant 0 : index
    %c0_103 = arith.constant 0 : index
    %158 = vector.load %arg9[%c2_101, %c0_102, %c0_103] : memref<4x1x32xf32, #tpu.memory_space<vmem>>, vector<1x1x32xf32>
    %159 = vector.shape_cast %158 : vector<1x1x32xf32> to vector<1x32xf32>
    %160 = vector.broadcast %159 : vector<1x32xf32> to vector<8x32xf32>
    %161 = arith.addf %157, %160 : vector<8x32xf32>
    %162 = arith.truncf %154 : vector<8x32xf32> to vector<8x32xbf16>
    %c2_104 = arith.constant 2 : index
    %c0_105 = arith.constant 0 : index
    %c0_106 = arith.constant 0 : index
    %163 = vector.load %arg19[%c2_104, %c0_105, %c0_106] : memref<4x8x32xbf16, #tpu.memory_space<vmem>>, vector<1x8x32xbf16>
    %164 = vector.shape_cast %163 : vector<1x8x32xbf16> to vector<8x32xbf16>
    %165 = vector.shape_cast %162 : vector<8x32xbf16> to vector<1x8x32xbf16>
    tpu.vector_store %arg19[%c2_104, %c0_105, %c0_106], %165 {strides = array<i32>} : memref<4x8x32xbf16, #tpu.memory_space<vmem>>, vector<1x8x32xbf16>,
    %166 = arith.truncf %161 : vector<8x32xf32> to vector<8x32xbf16>
    %c2_107 = arith.constant 2 : index
    %c0_108 = arith.constant 0 : index
    %c0_109 = arith.constant 0 : index
    %167 = vector.load %arg20[%c2_107, %c0_108, %c0_109] : memref<4x8x32xbf16, #tpu.memory_space<vmem>>, vector<1x8x32xbf16>
    %168 = vector.shape_cast %167 : vector<1x8x32xbf16> to vector<8x32xbf16>
    %169 = vector.shape_cast %166 : vector<8x32xbf16> to vector<1x8x32xbf16>
    tpu.vector_store %arg20[%c2_107, %c0_108, %c0_109], %169 {strides = array<i32>} : memref<4x8x32xbf16, #tpu.memory_space<vmem>>, vector<1x8x32xbf16>,
    %170 = arith.truncf %147 : vector<8x32xf32> to vector<8x32xbf16>
    %171 = arith.truncf %154 : vector<8x32xf32> to vector<8x32xbf16>
    %cst_110 = arith.constant dense<0.000000e+00> : vector<8x8xf32>
    %172 = tpu.matmul %170, %171, %cst_110 {dimension_numbers = #tpu.dot_dimension_numbers<[1], [1], [0], [0], [0, 0, 1, 0], [], []>} : vector<8x32xbf16>, vector<8x32xbf16>, vector<8x8xf32> -> vector<8x8xf32>
    %cst_111 = arith.constant 0.176776692 : f32
    %173 = vector.broadcast %cst_111 : f32 to vector<8x8xf32>
    %174 = arith.mulf %172, %173 : vector<8x8xf32>
    %cst_112 = arith.constant -3.40282347E+38 : f32
    %175 = vector.broadcast %cst_112 : f32 to vector<8x8xf32>
    %176 = arith.select %31, %174, %175 : vector<8x8xi1>, vector<8x8xf32>
    %cst_113 = arith.constant dense<0xFF800000> : vector<8xf32>
    %177 = vector.multi_reduction <maximumf>, %176, %cst_113 [1] : vector<8x8xf32> to vector<8xf32>
    %178 = vector.shape_cast %177 : vector<8xf32> to vector<8x1xf32>
    %179 = vector.broadcast %178 : vector<8x1xf32> to vector<8x8xf32>
    %180 = arith.subf %176, %179 : vector<8x8xf32>
    %181 = math.exp %180 : vector<8x8xf32>
    %cst_114 = arith.constant dense<0.000000e+00> : vector<8xf32>
    %182 = vector.multi_reduction <add>, %181, %cst_114 [1] : vector<8x8xf32> to vector<8xf32>
    %183 = vector.shape_cast %182 : vector<8xf32> to vector<8x1xf32>
    %184 = vector.broadcast %183 : vector<8x1xf32> to vector<8x8xf32>
    %185 = arith.divf %181, %184 : vector<8x8xf32>
    %186 = arith.truncf %185 : vector<8x8xf32> to vector<8x8xbf16>
    %187 = arith.truncf %161 : vector<8x32xf32> to vector<8x32xbf16>
    %cst_115 = arith.constant dense<0.000000e+00> : vector<8x32xf32>
    %188 = tpu.matmul %186, %187, %cst_115 {dimension_numbers = #tpu.dot_dimension_numbers<[1], [0], [0], [1], [0, 0, 1, 1], [], []>} : vector<8x8xbf16>, vector<8x32xbf16>, vector<8x32xf32> -> vector<8x32xf32>
    %189 = arith.truncf %188 : vector<8x32xf32> to vector<8x32xbf16>
    %c2_116 = arith.constant 2 : index
    %c0_117 = arith.constant 0 : index
    %c0_118 = arith.constant 0 : index
    %190 = vector.load %arg10[%c2_116, %c0_117, %c0_118] : memref<4x32x128xbf16, #tpu.memory_space<vmem>>, vector<1x32x128xbf16>
    %191 = vector.shape_cast %190 : vector<1x32x128xbf16> to vector<32x128xbf16>
    %cst_119 = arith.constant dense<0.000000e+00> : vector<8x128xf32>
    %192 = tpu.matmul %189, %191, %cst_119 {dimension_numbers = #tpu.dot_dimension_numbers<[1], [0], [0], [1], [0, 0, 1, 1], [], []>} : vector<8x32xbf16>, vector<32x128xbf16>, vector<8x128xf32> -> vector<8x128xf32>
    %193 = arith.addf %140, %192 : vector<8x128xf32>
    %c3 = arith.constant 3 : index
    %c0_120 = arith.constant 0 : index
    %c0_121 = arith.constant 0 : index
    %194 = vector.load %arg4[%c3, %c0_120, %c0_121] : memref<4x128x32xbf16, #tpu.memory_space<vmem>>, vector<1x128x32xbf16>
    %195 = vector.shape_cast %194 : vector<1x128x32xbf16> to vector<128x32xbf16>
    %cst_122 = arith.constant dense<0.000000e+00> : vector<8x32xf32>
    %196 = tpu.matmul %28, %195, %cst_122 {dimension_numbers = #tpu.dot_dimension_numbers<[1], [0], [0], [1], [0, 0, 1, 1], [], []>} : vector<8x128xbf16>, vector<128x32xbf16>, vector<8x32xf32> -> vector<8x32xf32>
    %c3_123 = arith.constant 3 : index
    %c0_124 = arith.constant 0 : index
    %c0_125 = arith.constant 0 : index
    %197 = vector.load %arg7[%c3_123, %c0_124, %c0_125] : memref<4x1x32xf32, #tpu.memory_space<vmem>>, vector<1x1x32xf32>
    %198 = vector.shape_cast %197 : vector<1x1x32xf32> to vector<1x32xf32>
    %199 = vector.broadcast %198 : vector<1x32xf32> to vector<8x32xf32>
    %200 = arith.addf %196, %199 : vector<8x32xf32>
    %c3_126 = arith.constant 3 : index
    %c0_127 = arith.constant 0 : index
    %c0_128 = arith.constant 0 : index
    %201 = vector.load %arg5[%c3_126, %c0_127, %c0_128] : memref<4x128x32xbf16, #tpu.memory_space<vmem>>, vector<1x128x32xbf16>
    %202 = vector.shape_cast %201 : vector<1x128x32xbf16> to vector<128x32xbf16>
    %cst_129 = arith.constant dense<0.000000e+00> : vector<8x32xf32>
    %203 = tpu.matmul %28, %202, %cst_129 {dimension_numbers = #tpu.dot_dimension_numbers<[1], [0], [0], [1], [0, 0, 1, 1], [], []>} : vector<8x128xbf16>, vector<128x32xbf16>, vector<8x32xf32> -> vector<8x32xf32>
    %c3_130 = arith.constant 3 : index
    %c0_131 = arith.constant 0 : index
    %c0_132 = arith.constant 0 : index
    %204 = vector.load %arg8[%c3_130, %c0_131, %c0_132] : memref<4x1x32xf32, #tpu.memory_space<vmem>>, vector<1x1x32xf32>
    %205 = vector.shape_cast %204 : vector<1x1x32xf32> to vector<1x32xf32>
    %206 = vector.broadcast %205 : vector<1x32xf32> to vector<8x32xf32>
    %207 = arith.addf %203, %206 : vector<8x32xf32>
    %c3_133 = arith.constant 3 : index
    %c0_134 = arith.constant 0 : index
    %c0_135 = arith.constant 0 : index
    %208 = vector.load %arg6[%c3_133, %c0_134, %c0_135] : memref<4x128x32xbf16, #tpu.memory_space<vmem>>, vector<1x128x32xbf16>
    %209 = vector.shape_cast %208 : vector<1x128x32xbf16> to vector<128x32xbf16>
    %cst_136 = arith.constant dense<0.000000e+00> : vector<8x32xf32>
    %210 = tpu.matmul %28, %209, %cst_136 {dimension_numbers = #tpu.dot_dimension_numbers<[1], [0], [0], [1], [0, 0, 1, 1], [], []>} : vector<8x128xbf16>, vector<128x32xbf16>, vector<8x32xf32> -> vector<8x32xf32>
    %c3_137 = arith.constant 3 : index
    %c0_138 = arith.constant 0 : index
    %c0_139 = arith.constant 0 : index
    %211 = vector.load %arg9[%c3_137, %c0_138, %c0_139] : memref<4x1x32xf32, #tpu.memory_space<vmem>>, vector<1x1x32xf32>
    %212 = vector.shape_cast %211 : vector<1x1x32xf32> to vector<1x32xf32>
    %213 = vector.broadcast %212 : vector<1x32xf32> to vector<8x32xf32>
    %214 = arith.addf %210, %213 : vector<8x32xf32>
    %215 = arith.truncf %207 : vector<8x32xf32> to vector<8x32xbf16>
    %c3_140 = arith.constant 3 : index
    %c0_141 = arith.constant 0 : index
    %c0_142 = arith.constant 0 : index
    %216 = vector.load %arg19[%c3_140, %c0_141, %c0_142] : memref<4x8x32xbf16, #tpu.memory_space<vmem>>, vector<1x8x32xbf16>
    %217 = vector.shape_cast %216 : vector<1x8x32xbf16> to vector<8x32xbf16>
    %218 = vector.shape_cast %215 : vector<8x32xbf16> to vector<1x8x32xbf16>
    tpu.vector_store %arg19[%c3_140, %c0_141, %c0_142], %218 {strides = array<i32>} : memref<4x8x32xbf16, #tpu.memory_space<vmem>>, vector<1x8x32xbf16>,
    %219 = arith.truncf %214 : vector<8x32xf32> to vector<8x32xbf16>
    %c3_143 = arith.constant 3 : index
    %c0_144 = arith.constant 0 : index
    %c0_145 = arith.constant 0 : index
    %220 = vector.load %arg20[%c3_143, %c0_144, %c0_145] : memref<4x8x32xbf16, #tpu.memory_space<vmem>>, vector<1x8x32xbf16>
    %221 = vector.shape_cast %220 : vector<1x8x32xbf16> to vector<8x32xbf16>
    %222 = vector.shape_cast %219 : vector<8x32xbf16> to vector<1x8x32xbf16>
    tpu.vector_store %arg20[%c3_143, %c0_144, %c0_145], %222 {strides = array<i32>} : memref<4x8x32xbf16, #tpu.memory_space<vmem>>, vector<1x8x32xbf16>,
    %223 = arith.truncf %200 : vector<8x32xf32> to vector<8x32xbf16>
    %224 = arith.truncf %207 : vector<8x32xf32> to vector<8x32xbf16>
    %cst_146 = arith.constant dense<0.000000e+00> : vector<8x8xf32>
    %225 = tpu.matmul %223, %224, %cst_146 {dimension_numbers = #tpu.dot_dimension_numbers<[1], [1], [0], [0], [0, 0, 1, 0], [], []>} : vector<8x32xbf16>, vector<8x32xbf16>, vector<8x8xf32> -> vector<8x8xf32>
    %cst_147 = arith.constant 0.176776692 : f32
    %226 = vector.broadcast %cst_147 : f32 to vector<8x8xf32>
    %227 = arith.mulf %225, %226 : vector<8x8xf32>
    %cst_148 = arith.constant -3.40282347E+38 : f32
    %228 = vector.broadcast %cst_148 : f32 to vector<8x8xf32>
    %229 = arith.select %31, %227, %228 : vector<8x8xi1>, vector<8x8xf32>
    %cst_149 = arith.constant dense<0xFF800000> : vector<8xf32>
    %230 = vector.multi_reduction <maximumf>, %229, %cst_149 [1] : vector<8x8xf32> to vector<8xf32>
    %231 = vector.shape_cast %230 : vector<8xf32> to vector<8x1xf32>
    %232 = vector.broadcast %231 : vector<8x1xf32> to vector<8x8xf32>
    %233 = arith.subf %229, %232 : vector<8x8xf32>
    %234 = math.exp %233 : vector<8x8xf32>
    %cst_150 = arith.constant dense<0.000000e+00> : vector<8xf32>
    %235 = vector.multi_reduction <add>, %234, %cst_150 [1] : vector<8x8xf32> to vector<8xf32>
    %236 = vector.shape_cast %235 : vector<8xf32> to vector<8x1xf32>
    %237 = vector.broadcast %236 : vector<8x1xf32> to vector<8x8xf32>
    %238 = arith.divf %234, %237 : vector<8x8xf32>
    %239 = arith.truncf %238 : vector<8x8xf32> to vector<8x8xbf16>
    %240 = arith.truncf %214 : vector<8x32xf32> to vector<8x32xbf16>
    %cst_151 = arith.constant dense<0.000000e+00> : vector<8x32xf32>
    %241 = tpu.matmul %239, %240, %cst_151 {dimension_numbers = #tpu.dot_dimension_numbers<[1], [0], [0], [1], [0, 0, 1, 1], [], []>} : vector<8x8xbf16>, vector<8x32xbf16>, vector<8x32xf32> -> vector<8x32xf32>
    %242 = arith.truncf %241 : vector<8x32xf32> to vector<8x32xbf16>
    %c3_152 = arith.constant 3 : index
    %c0_153 = arith.constant 0 : index
    %c0_154 = arith.constant 0 : index
    %243 = vector.load %arg10[%c3_152, %c0_153, %c0_154] : memref<4x32x128xbf16, #tpu.memory_space<vmem>>, vector<1x32x128xbf16>
    %244 = vector.shape_cast %243 : vector<1x32x128xbf16> to vector<32x128xbf16>
    %cst_155 = arith.constant dense<0.000000e+00> : vector<8x128xf32>
    %245 = tpu.matmul %242, %244, %cst_155 {dimension_numbers = #tpu.dot_dimension_numbers<[1], [0], [0], [1], [0, 0, 1, 1], [], []>} : vector<8x32xbf16>, vector<32x128xbf16>, vector<8x128xf32> -> vector<8x128xf32>
    %246 = arith.addf %193, %245 : vector<8x128xf32>
    %cst_156 = arith.constant dense<0.000000e+00> : vector<8xf32>
    %247 = vector.multi_reduction <add>, %246, %cst_156 [1] : vector<8x128xf32> to vector<8xf32>
    %248 = vector.shape_cast %247 : vector<8xf32> to vector<8x1xf32>
    %cst_157 = arith.constant 1.280000e+02 : f32
    %249 = vector.broadcast %cst_157 : f32 to vector<8x1xf32>
    %250 = arith.divf %248, %249 : vector<8x1xf32>
    %251 = vector.broadcast %250 : vector<8x1xf32> to vector<8x128xf32>
    %252 = arith.subf %246, %251 : vector<8x128xf32>
    %253 = vector.broadcast %250 : vector<8x1xf32> to vector<8x128xf32>
    %254 = arith.subf %246, %253 : vector<8x128xf32>
    %255 = arith.mulf %252, %254 : vector<8x128xf32>
    %cst_158 = arith.constant dense<0.000000e+00> : vector<8xf32>
    %256 = vector.multi_reduction <add>, %255, %cst_158 [1] : vector<8x128xf32> to vector<8xf32>
    %257 = vector.shape_cast %256 : vector<8xf32> to vector<8x1xf32>
    %cst_159 = arith.constant 1.280000e+02 : f32
    %258 = vector.broadcast %cst_159 : f32 to vector<8x1xf32>
    %259 = arith.divf %257, %258 : vector<8x1xf32>
    %260 = vector.broadcast %250 : vector<8x1xf32> to vector<8x128xf32>
    %261 = arith.subf %246, %260 : vector<8x128xf32>
    %cst_160 = arith.constant 9.99999974E-6 : f32
    %262 = vector.broadcast %cst_160 : f32 to vector<8x1xf32>
    %263 = arith.addf %259, %262 : vector<8x1xf32>
    %264 = math.rsqrt %263 : vector<8x1xf32>
    %265 = vector.broadcast %264 : vector<8x1xf32> to vector<8x128xf32>
    %266 = arith.mulf %261, %265 : vector<8x128xf32>
    %c0_161 = arith.constant 0 : index
    %c0_162 = arith.constant 0 : index
    %267 = vector.load %arg12[%c0_161, %c0_162] : memref<1x128xf32, #tpu.memory_space<vmem>>, vector<1x128xf32>
    %268 = vector.broadcast %267 : vector<1x128xf32> to vector<8x128xf32>
    %269 = arith.mulf %266, %268 : vector<8x128xf32>
    %c0_163 = arith.constant 0 : index
    %c0_164 = arith.constant 0 : index
    %270 = vector.load %arg13[%c0_163, %c0_164] : memref<1x128xf32, #tpu.memory_space<vmem>>, vector<1x128xf32>
    %271 = vector.broadcast %270 : vector<1x128xf32> to vector<8x128xf32>
    %272 = arith.addf %269, %271 : vector<8x128xf32>
    %273 = arith.truncf %272 : vector<8x128xf32> to vector<8x128xbf16>
    %c0_165 = arith.constant 0 : index
    %c0_166 = arith.constant 0 : index
    %274 = vector.load %arg14[%c0_165, %c0_166] : memref<128x512xbf16, #tpu.memory_space<vmem>>, vector<128x512xbf16>
    %cst_167 = arith.constant dense<0.000000e+00> : vector<8x512xf32>
    %275 = tpu.matmul %273, %274, %cst_167 {dimension_numbers = #tpu.dot_dimension_numbers<[1], [0], [0], [1], [0, 0, 1, 1], [], []>} : vector<8x128xbf16>, vector<128x512xbf16>, vector<8x512xf32> -> vector<8x512xf32>
    %c0_168 = arith.constant 0 : index
    %c0_169 = arith.constant 0 : index
    %276 = vector.load %arg15[%c0_168, %c0_169] : memref<1x512xf32, #tpu.memory_space<vmem>>, vector<1x512xf32>
    %277 = vector.broadcast %276 : vector<1x512xf32> to vector<8x512xf32>
    %278 = arith.addf %275, %277 : vector<8x512xf32>
    %cst_170 = arith.constant 5.000000e-01 : f32
    %279 = vector.broadcast %cst_170 : f32 to vector<8x512xf32>
    %280 = arith.mulf %279, %278 : vector<8x512xf32>
    %cst_171 = arith.constant 4.471500e-02 : f32
    %281 = vector.broadcast %cst_171 : f32 to vector<8x512xf32>
    %282 = arith.mulf %281, %278 : vector<8x512xf32>
    %283 = arith.mulf %282, %278 : vector<8x512xf32>
    %284 = arith.mulf %283, %278 : vector<8x512xf32>
    %285 = arith.addf %278, %284 : vector<8x512xf32>
    %cst_172 = arith.constant 0.797884583 : f32
    %286 = vector.broadcast %cst_172 : f32 to vector<8x512xf32>
    %287 = arith.mulf %286, %285 : vector<8x512xf32>
    %288 = math.tanh %287 : vector<8x512xf32>
    %cst_173 = arith.constant 1.000000e+00 : f32
    %289 = vector.broadcast %cst_173 : f32 to vector<8x512xf32>
    %290 = arith.addf %289, %288 : vector<8x512xf32>
    %291 = arith.mulf %280, %290 : vector<8x512xf32>
    %292 = arith.truncf %291 : vector<8x512xf32> to vector<8x512xbf16>
    %c0_174 = arith.constant 0 : index
    %c0_175 = arith.constant 0 : index
    %293 = vector.load %arg16[%c0_174, %c0_175] : memref<512x128xbf16, #tpu.memory_space<vmem>>, vector<512x128xbf16>
    %cst_176 = arith.constant dense<0.000000e+00> : vector<8x128xf32>
    %294 = tpu.matmul %292, %293, %cst_176 {dimension_numbers = #tpu.dot_dimension_numbers<[1], [0], [0], [1], [0, 0, 1, 1], [], []>} : vector<8x512xbf16>, vector<512x128xbf16>, vector<8x128xf32> -> vector<8x128xf32>
    %c0_177 = arith.constant 0 : index
    %c0_178 = arith.constant 0 : index
    %295 = vector.load %arg17[%c0_177, %c0_178] : memref<1x128xf32, #tpu.memory_space<vmem>>, vector<1x128xf32>
    %296 = vector.broadcast %295 : vector<1x128xf32> to vector<8x128xf32>
    %297 = arith.addf %294, %296 : vector<8x128xf32>
    %298 = arith.addf %297, %246 : vector<8x128xf32>
    %299 = arith.truncf %298 : vector<8x128xf32> to vector<8x128xbf16>
    %c0_179 = arith.constant 0 : index
    %c0_180 = arith.constant 0 : index
    %300 = vector.load %arg18[%c0_179, %c0_180] : memref<8x128xbf16, #tpu.memory_space<vmem>>, vector<8x128xbf16>
    tpu.vector_store %arg18[%c0_179, %c0_180], %299 {strides = array<i32>} : memref<8x128xbf16, #tpu.memory_space<vmem>>, vector<8x128xbf16>,
    return
  }
  func.func @transform_0(%arg0: i32) -> (i32, i32) {
    %c0_i32 = arith.constant 0 : i32
    %c0_i32_0 = arith.constant 0 : i32
    %c0_i32_1 = arith.constant 0 : i32
    return %c0_i32, %c0_i32_0 : i32, i32
  }
  func.func @transform_1(%arg0: i32) -> (i32, i32) {
    %c0_i32 = arith.constant 0 : i32
    %c0_i32_0 = arith.constant 0 : i32
    %c0_i32_1 = arith.constant 0 : i32
    return %c0_i32, %c0_i32_0 : i32, i32
  }
  func.func @transform_2(%arg0: i32) -> (i32, i32) {
    %c0_i32 = arith.constant 0 : i32
    %c0_i32_0 = arith.constant 0 : i32
    %c0_i32_1 = arith.constant 0 : i32
    return %c0_i32, %c0_i32_0 : i32, i32
  }
  func.func @transform_3(%arg0: i32) -> (i32, i32, i32) {
    %c0_i32 = arith.constant 0 : i32
    %c0_i32_0 = arith.constant 0 : i32
    %c0_i32_1 = arith.constant 0 : i32
    %c0_i32_2 = arith.constant 0 : i32
    return %c0_i32, %c0_i32_0, %c0_i32_1 : i32, i32, i32
  }
  func.func @transform_4(%arg0: i32) -> (i32, i32, i32) {
    %c0_i32 = arith.constant 0 : i32
    %c0_i32_0 = arith.constant 0 : i32
    %c0_i32_1 = arith.constant 0 : i32
    %c0_i32_2 = arith.constant 0 : i32
    return %c0_i32, %c0_i32_0, %c0_i32_1 : i32, i32, i32
  }
  func.func @transform_5(%arg0: i32) -> (i32, i32, i32) {
    %c0_i32 = arith.constant 0 : i32
    %c0_i32_0 = arith.constant 0 : i32
    %c0_i32_1 = arith.constant 0 : i32
    %c0_i32_2 = arith.constant 0 : i32
    return %c0_i32, %c0_i32_0, %c0_i32_1 : i32, i32, i32
  }
  func.func @transform_6(%arg0: i32) -> (i32, i32, i32) {
    %c0_i32 = arith.constant 0 : i32
    %c0_i32_0 = arith.constant 0 : i32
    %c0_i32_1 = arith.constant 0 : i32
    %c0_i32_2 = arith.constant 0 : i32
    return %c0_i32, %c0_i32_0, %c0_i32_1 : i32, i32, i32
  }
  func.func @transform_7(%arg0: i32) -> (i32, i32, i32) {
    %c0_i32 = arith.constant 0 : i32
    %c0_i32_0 = arith.constant 0 : i32
    %c0_i32_1 = arith.constant 0 : i32
    %c0_i32_2 = arith.constant 0 : i32
    return %c0_i32, %c0_i32_0, %c0_i32_1 : i32, i32, i32
  }
  func.func @transform_8(%arg0: i32) -> (i32, i32, i32) {
    %c0_i32 = arith.constant 0 : i32
    %c0_i32_0 = arith.constant 0 : i32
    %c0_i32_1 = arith.constant 0 : i32
    %c0_i32_2 = arith.constant 0 : i32
    return %c0_i32, %c0_i32_0, %c0_i32_1 : i32, i32, i32
  }
  func.func @transform_9(%arg0: i32) -> (i32, i32, i32) {
    %c0_i32 = arith.constant 0 : i32
    %c0_i32_0 = arith.constant 0 : i32
    %c0_i32_1 = arith.constant 0 : i32
    %c0_i32_2 = arith.constant 0 : i32
    return %c0_i32, %c0_i32_0, %c0_i32_1 : i32, i32, i32
  }
  func.func @transform_10(%arg0: i32) -> (i32, i32) {
    %c0_i32 = arith.constant 0 : i32
    %c0_i32_0 = arith.constant 0 : i32
    %c0_i32_1 = arith.constant 0 : i32
    return %c0_i32, %c0_i32_0 : i32, i32
  }
  func.func @transform_11(%arg0: i32) -> (i32, i32) {
    %c0_i32 = arith.constant 0 : i32
    %c0_i32_0 = arith.constant 0 : i32
    %c0_i32_1 = arith.constant 0 : i32
    return %c0_i32, %c0_i32_0 : i32, i32
  }
  func.func @transform_12(%arg0: i32) -> (i32, i32) {
    %c0_i32 = arith.constant 0 : i32
    %c0_i32_0 = arith.constant 0 : i32
    %c0_i32_1 = arith.constant 0 : i32
    return %c0_i32, %c0_i32_0 : i32, i32
  }
  func.func @transform_13(%arg0: i32) -> (i32, i32) {
    %c0_i32 = arith.constant 0 : i32
    %c0_i32_0 = arith.constant 0 : i32
    %c0_i32_1 = arith.constant 0 : i32
    return %c0_i32, %c0_i32_0 : i32, i32
  }
  func.func @transform_14(%arg0: i32) -> (i32, i32) {
    %c0_i32 = arith.constant 0 : i32
    %c0_i32_0 = arith.constant 0 : i32
    %c0_i32_1 = arith.constant 0 : i32
    return %c0_i32, %c0_i32_0 : i32, i32
  }
  func.func @transform_15(%arg0: i32) -> (i32, i32) {
    %c0_i32 = arith.constant 0 : i32
    %c0_i32_0 = arith.constant 0 : i32
    %c0_i32_1 = arith.constant 0 : i32
    return %c0_i32, %c0_i32_0 : i32, i32
  }
  func.func @transform_16(%arg0: i32) -> (i32, i32) {
    %c0_i32 = arith.constant 0 : i32
    %c0_i32_0 = arith.constant 0 : i32
    %c0_i32_1 = arith.constant 0 : i32
    return %c0_i32, %c0_i32_0 : i32, i32
  }
  func.func @transform_17(%arg0: i32) -> (i32, i32) {
    %c0_i32 = arith.constant 0 : i32
    %c0_i32_0 = arith.constant 0 : i32
    %c0_i32_1 = arith.constant 0 : i32
    return %c0_i32, %c0_i32_0 : i32, i32
  }
  func.func @transform_18(%arg0: i32) -> (i32, i32, i32) {
    %c0_i32 = arith.constant 0 : i32
    %c0_i32_0 = arith.constant 0 : i32
    %c0_i32_1 = arith.constant 0 : i32
    %c0_i32_2 = arith.constant 0 : i32
    return %c0_i32, %c0_i32_0, %c0_i32_1 : i32, i32, i32
  }
  func.func @transform_19(%arg0: i32) -> (i32, i32, i32) {
    %c0_i32 = arith.constant 0 : i32
    %c0_i32_0 = arith.constant 0 : i32
    %c0_i32_1 = arith.constant 0 : i32
    %c0_i32_2 = arith.constant 0 : i32
    return %c0_i32, %c0_i32_0, %c0_i32_1 : i32, i32, i32
  }
}

</mosaic_0001>

<llo_original>
// kernel: _lambda_.5
$region0: #{_lambda_.5}
  #allocation0 [shape = 'u32[]', space=smem, size = 0x4, offset = 0x4, fixed_abs, tag = 'smem constant byte address 0x4 - core index']
  #allocation1 [shape = 'u32[72,128]{1,0:T(1,128)}', space=vmem, size = 0x9000, scoped, tag = 'internal scratch']
  %s0 = inlined_call_operand.vmem [shape: bf16[8,128], index: 0, kind: input, shape index: {}]
  %s1 = inlined_call_operand.vmem [shape: f32[1,128], index: 1, kind: input, shape index: {}]
  %s2 = inlined_call_operand.vmem [shape: f32[1,128], index: 2, kind: input, shape index: {}]
  %s3 = inlined_call_operand.vmem [shape: bf16[128,256], index: 3, kind: input, shape index: {}]
  %s4 = inlined_call_operand.hbm [shape: f32[8,256], index: 4, kind: output, shape index: {}]
  %s5 = sld [smem:[#allocation0]]
  $region90: #{_lambda_.5} parent=0
    _
  %s7 = ssub.s32 1, %s5
  %s8 = scalar_select 0, %s7, %s5
  $region1: #{_lambda_.5} parent=0
    #allocation2 [shape = 'u8[65536]{0}', space=vmem, size = 0x10000, scoped, tag = 'input window, operand 3']
    #allocation3 [shape = 'u8[8192]{0}', space=vmem, size = 0x2000, scoped, tag = 'output window, operand 0']
    #allocation4 [shape = 's32[2]{0}', space=sflag, size = 0x8, scoped, tag = 'scoped memory for _lambda_.5']
    %9 = vsyncpa [#allocation4], 0
    %s10 = scalar_lea.sflag [#allocation4], 1
    %11 = vsyncpa %s10, 0
    loop: start=0, step=1, limit=4
    $region2: #{_lambda_.5} parent=1 // loop_pre_header
      _
    $region3: #{_lambda_.5} parent=1 // loop_header
      %s13 = sphi 0, %s17
      %p14 = scmp.ge.s32.totalorder %s13, 4
      %s21 = sphi 0, %s21
      %s23 = sphi 0, %s21
      %s24 = sphi 0, %s23
      %s38 = sphi 0, %s24
      %s42 = sphi 0, %s42
      %s44 = sphi 0, %s42
      %s45 = sphi 0, %s44
      %s59 = sphi 0, %s45
      %s63 = sphi 0, %s63
      %s65 = sphi 0, %s63
      %s66 = sphi 0, %s65
      %s80 = sphi 0, %s66
      %s86 = sphi 0, %s88
      %s89 = sphi 0, %s86
      %s90 = sphi 0, %s89
      %s106 = sphi 0, %s90
      %s112 = sphi 0, %s114
      %s115 = sphi 0, %s112
      %s116 = sphi 0, %s115
      %s132 = sphi 0, %s116
    $region4: #{_lambda_.5} parent=1 // loop_header_branch
      %16 = sbr.rel (%p14) target = $region8
    $region5: #{_lambda_.5} parent=1 // loop_body
      %s18 = ssub.s32 %s13, 1
      %s19 = ssub.s32 %s13, 2
      %s20 = sadd.s32 %s13, 1
      %s22 = sadd.s32 %s21, 1
      %p25 = scmp.eq.s32.totalorder %s13, 1
      %p26 = scmp.ne.s32.totalorder %s21, %s23
      %p27 = scmp.eq.s32.totalorder %s13, 0
      %p28 = por %p26, %p27
      %p29 = scmp.ne.s32.totalorder %s21, %s23
      %p30 = scmp.eq.s32.totalorder %s18, 1
      %p31 = por %p29, %p30
      %p32 = scmp.ne.s32.totalorder %s23, %s24
      %p33 = scmp.eq.s32.totalorder %s18, 0
      %p34 = por %p32, %p33
      %p35 = scmp.ne.s32.totalorder %s23, %s24
      %p36 = scmp.eq.s32.totalorder %s19, 1
      %p37 = por %p35, %p36
      %p39 = scmp.ne.s32.totalorder %s24, %s38
      %p40 = scmp.eq.s32.totalorder %s19, 0
      %p41 = por %p39, %p40
      %s43 = sadd.s32 %s42, 1
      %p46 = scmp.eq.s32.totalorder %s13, 1
      %p47 = scmp.ne.s32.totalorder %s42, %s44
      %p48 = scmp.eq.s32.totalorder %s13, 0
      %p49 = por %p47, %p48
      %p50 = scmp.ne.s32.totalorder %s42, %s44
      %p51 = scmp.eq.s32.totalorder %s18, 1
      %p52 = por %p50, %p51
      %p53 = scmp.ne.s32.totalorder %s44, %s45
      %p54 = scmp.eq.s32.totalorder %s18, 0
      %p55 = por %p53, %p54
      %p56 = scmp.ne.s32.totalorder %s44, %s45
      %p57 = scmp.eq.s32.totalorder %s19, 1
      %p58 = por %p56, %p57
      %p60 = scmp.ne.s32.totalorder %s45, %s59
      %p61 = scmp.eq.s32.totalorder %s19, 0
      %p62 = por %p60, %p61
      %s64 = sadd.s32 %s63, 1
      %p67 = scmp.eq.s32.totalorder %s13, 1
      %p68 = scmp.ne.s32.totalorder %s63, %s65
      %p69 = scmp.eq.s32.totalorder %s13, 0
      %p70 = por %p68, %p69
      %p71 = scmp.ne.s32.totalorder %s63, %s65
      %p72 = scmp.eq.s32.totalorder %s18, 1
      %p73 = por %p71, %p72
      %p74 = scmp.ne.s32.totalorder %s65, %s66
      %p75 = scmp.eq.s32.totalorder %s18, 0
      %p76 = por %p74, %p75
      %p77 = scmp.ne.s32.totalorder %s65, %s66
      %p78 = scmp.eq.s32.totalorder %s19, 1
      %p79 = por %p77, %p78
      %p81 = scmp.ne.s32.totalorder %s66, %s80
      %p82 = scmp.eq.s32.totalorder %s19, 0
      %p83 = por %p81, %p82
      %s84 = ssub.s32 %s13, %s20
      %p85 = scmp.eq.s32.totalorder %s84, 0
      %s87 = sadd.s32 %s86, 1
      %s88 = scalar_select %p85, %s86, %s87
      %p91 = pneg %p85
      %p92 = scmp.eq.s32.totalorder %s13, 1
      %p93 = por %p91, %p92
      %p94 = scmp.ne.s32.totalorder %s86, %s89
      %p95 = scmp.eq.s32.totalorder %s13, 0
      %p96 = por %p94, %p95
      %p97 = scmp.ne.s32.totalorder %s86, %s89
      %p98 = scmp.eq.s32.totalorder %s18, 1
      %p99 = por %p97, %p98
      %p100 = scmp.ne.s32.totalorder %s89, %s90
      %p101 = scmp.eq.s32.totalorder %s18, 0
      %p102 = por %p100, %p101
      %p103 = scmp.ne.s32.totalorder %s89, %s90
      %p104 = scmp.eq.s32.totalorder %s19, 1
      %p105 = por %p103, %p104
      %p107 = scmp.ne.s32.totalorder %s90, %s106
      %p108 = scmp.eq.s32.totalorder %s19, 0
      %p109 = por %p107, %p108
      %s110 = ssub.s32 %s13, %s20
      %p111 = scmp.eq.s32.totalorder %s110, 0
      %s113 = sadd.s32 %s112, 1
      %s114 = scalar_select %p111, %s112, %s113
      %p117 = pneg %p111
      %p118 = scmp.eq.s32.totalorder %s13, 1
      %p119 = por %p117, %p118
      %p120 = scmp.ne.s32.totalorder %s112, %s115
      %p121 = scmp.eq.s32.totalorder %s13, 0
      %p122 = por %p120, %p121
      %p123 = scmp.ne.s32.totalorder %s112, %s115
      %p124 = scmp.eq.s32.totalorder %s18, 1
      %p125 = por %p123, %p124
      %p126 = scmp.ne.s32.totalorder %s115, %s116
      %p127 = scmp.eq.s32.totalorder %s18, 0
      %p128 = por %p126, %p127
      %p129 = scmp.ne.s32.totalorder %s115, %s116
      %p130 = scmp.eq.s32.totalorder %s19, 1
      %p131 = por %p129, %p130
      %p133 = scmp.ne.s32.totalorder %s116, %s132
      %p134 = scmp.eq.s32.totalorder %s19, 0
      %p135 = por %p133, %p134
      %p136 = scmp.le.s32.totalorder 1, %s13
      %p137 = scmp.lt.s32.totalorder %s13, 3
      %p138 = pnand %p136, %p137
      %p139 = pneg %p138
      // Predicated region
      $region9: #{_lambda_.5} parent=5 // pred_check
        _
      $region10: #{_lambda_.5} parent=5 // pred_check_branch
        %141 = sbr.rel (%p138) target = $region12
      $region11: #{_lambda_.5} parent=5 // pred_region
        %s142 = ssub.s32 %s13, 1
        // Predicated region
        $region13: #{_lambda_.5} parent=11 // pred_check
          %p143 = pneg %p34
        $region14: #{_lambda_.5} parent=11 // pred_check_branch
          %145 = sbr.rel (%p143) target = $region16
        $region15: #{_lambda_.5} parent=11 // pred_region
          _
        $region16: #{_lambda_.5} parent=11 // pred_fallthru
          _
        // Predicated region
        $region17: #{_lambda_.5} parent=11 // pred_check
          %p146 = pneg %p55
        $region18: #{_lambda_.5} parent=11 // pred_check_branch
          %148 = sbr.rel (%p146) target = $region20
        $region19: #{_lambda_.5} parent=11 // pred_region
          _
        $region20: #{_lambda_.5} parent=11 // pred_fallthru
          _
        // Predicated region
        $region21: #{_lambda_.5} parent=11 // pred_check
          %p149 = pneg %p76
        $region22: #{_lambda_.5} parent=11 // pred_check_branch
          %151 = sbr.rel (%p149) target = $region24
        $region23: #{_lambda_.5} parent=11 // pred_region
          _
        $region24: #{_lambda_.5} parent=11 // pred_fallthru
          _
      $region12: #{_lambda_.5} parent=5 // pred_fallthru
        _
      %p152 = scmp.lt.s32.totalorder %s13, 2
      // Predicated region
      $region25: #{_lambda_.5} parent=5 // pred_check
        %p153 = pneg %p152
      $region26: #{_lambda_.5} parent=5 // pred_check_branch
        %155 = sbr.rel (%p153) target = $region28
      $region27: #{_lambda_.5} parent=5 // pred_region
        // Predicated region
        $region29: #{_lambda_.5} parent=27 // pred_check
          %p156 = pneg %p96
        $region30: #{_lambda_.5} parent=27 // pred_check_branch
          %158 = sbr.rel (%p156) target = $region32
        $region31: #{_lambda_.5} parent=27 // pred_region
          %s159 = sand.u32 %s86, 1
          %s160 = sand.u32 %s86, 1
          %s161 = smul.addr %s160, 64
          %s162 = scalar_lea.vmem [#allocation2], %s161
          %s163 = smul.addr %s13, 4
          %s164 = scalar_lea.vmem %s3, %s163
          // Predicated region
          $region33: #{_lambda_.5} parent=31 // pred_check
            _
          $region34: #{_lambda_.5} parent=31 // pred_check_branch
            %166 = sbr.rel (0) target = $region36
          $region35: #{_lambda_.5} parent=31 // pred_region
            // Predicated region
            $region37: #{_lambda_.5} parent=35 // pred_check
              _
            $region38: #{_lambda_.5} parent=35 // pred_check_branch
              %168 = sbr.rel target = $region40
            $region39: #{_lambda_.5} parent=35 // pred_region
              // Predicated region
              $region52: #{_lambda_.5} parent=39 // pred_check
                _
              $region53: #{_lambda_.5} parent=39 // pred_check_branch
                %214 = sbr.rel (0) target = $region55
              $region54: #{_lambda_.5} parent=39 // pred_region
                loop: start=0, step=1, limit=1
                $region56: #{_lambda_.5} parent=54 // loop_pre_header
                  _
                $region57: #{_lambda_.5} parent=54 // loop_header
                  %s216 = sphi 0, %s220
                  %p217 = scmp.ge.s32.totalorder %s216, 1
                  %s221 = sphi %s164, %s164
                  %s222 = sphi %s162, %s162
                $region58: #{_lambda_.5} parent=54 // loop_header_branch
                  %219 = sbr.rel (%p217) target = $region62
                $region59: #{_lambda_.5} parent=54 // loop_body
                  _
                $region60: #{_lambda_.5} parent=54 // loop_footer
                  %s220 = sadd.s32 1, %s216
                $region61: #{_lambda_.5} parent=54 // loop_footer_branch
                  %215 = sbr.rel target = $region57
                $region62: #{_lambda_.5} parent=54 // loop_exit
                  _
                %s224 = ssub.s32 16, 1
                loop: start=0, step=1, limit=1
                $region63: #{_lambda_.5} parent=54 // loop_pre_header
                  _
                $region64: #{_lambda_.5} parent=54 // loop_header
                  %s226 = sphi 0, %s230
                  %p227 = scmp.ge.s32.totalorder %s226, 1
                  %s231 = sphi %s164, %s164
                  %s232 = sphi %s162, %s162
                $region65: #{_lambda_.5} parent=54 // loop_header_branch
                  %229 = sbr.rel (%p227) target = $region69
                $region66: #{_lambda_.5} parent=54 // loop_body
                  %v233 = vld [vmem:[%s231] sm:%s224]
                  %234 = vst [vmem:[%s232] sm:%s224] %v233
                  %v235 = vld [vmem:[%s231 + $0x8] sm:%s224]
                  %236 = vst [vmem:[%s232 + $0x4] sm:%s224] %v235
                  %v237 = vld [vmem:[%s231 + $0x10] sm:%s224]
                  %238 = vst [vmem:[%s232 + $0x8] sm:%s224] %v237
                  %v239 = vld [vmem:[%s231 + $0x18] sm:%s224]
                  %240 = vst [vmem:[%s232 + $0xc] sm:%s224] %v239
                  %v241 = vld [vmem:[%s231 + $0x20] sm:%s224]
                  %242 = vst [vmem:[%s232 + $0x10] sm:%s224] %v241
                  %v243 = vld [vmem:[%s231 + $0x28] sm:%s224]
                  %244 = vst [vmem:[%s232 + $0x14] sm:%s224] %v243
                  %v245 = vld [vmem:[%s231 + $0x30] sm:%s224]
                  %246 = vst [vmem:[%s232 + $0x18] sm:%s224] %v245
                  %v247 = vld [vmem:[%s231 + $0x38] sm:%s224]
                  %248 = vst [vmem:[%s232 + $0x1c] sm:%s224] %v247
                  %v249 = vld [vmem:[%s231 + $0x40] sm:%s224]
                  %250 = vst [vmem:[%s232 + $0x20] sm:%s224] %v249
                  %v251 = vld [vmem:[%s231 + $0x48] sm:%s224]
                  %252 = vst [vmem:[%s232 + $0x24] sm:%s224] %v251
                  %v253 = vld [vmem:[%s231 + $0x50] sm:%s224]
                  %254 = vst [vmem:[%s232 + $0x28] sm:%s224] %v253
                  %v255 = vld [vmem:[%s231 + $0x58] sm:%s224]
                  %256 = vst [vmem:[%s232 + $0x2c] sm:%s224] %v255
                  %v257 = vld [vmem:[%s231 + $0x60] sm:%s224]
                  %258 = vst [vmem:[%s232 + $0x30] sm:%s224] %v257
                  %v259 = vld [vmem:[%s231 + $0x68] sm:%s224]
                  %260 = vst [vmem:[%s232 + $0x34] sm:%s224] %v259
                  %v261 = vld [vmem:[%s231 + $0x70] sm:%s224]
                  %262 = vst [vmem:[%s232 + $0x38] sm:%s224] %v261
                  %v263 = vld [vmem:[%s231 + $0x78] sm:%s224]
                  %264 = vst [vmem:[%s232 + $0x3c] sm:%s224] %v263
                $region67: #{_lambda_.5} parent=54 // loop_footer
                  %s230 = sadd.s32 1, %s226
                $region68: #{_lambda_.5} parent=54 // loop_footer_branch
                  %225 = sbr.rel target = $region64
                $region69: #{_lambda_.5} parent=54 // loop_exit
                  _
              $region55: #{_lambda_.5} parent=39 // pred_fallthru
                _
            $region40: #{_lambda_.5} parent=35 // pred_fallthru
              _
            // Predicated region
            $region41: #{_lambda_.5} parent=35 // pred_check
              _
            $region42: #{_lambda_.5} parent=35 // pred_check_branch
              %170 = sbr.rel (0) target = $region44
            $region43: #{_lambda_.5} parent=35 // pred_region
              %s172 = ssub.s32 16, 1
              loop: start=0, step=1, limit=1
              $region45: #{_lambda_.5} parent=43 // loop_pre_header
                _
              $region46: #{_lambda_.5} parent=43 // loop_header
                %s174 = sphi 0, %s178
                %p175 = scmp.ge.s32.totalorder %s174, 1
                %s179 = sphi %s164, %s164
                %s180 = sphi %s162, %s162
              $region47: #{_lambda_.5} parent=43 // loop_header_branch
                %177 = sbr.rel (%p175) target = $region51
              $region48: #{_lambda_.5} parent=43 // loop_body
                %v181 = vld [vmem:[%s179] sm:%s172]
                %182 = vst [vmem:[%s180] sm:%s172] %v181
                %v183 = vld [vmem:[%s179 + $0x8] sm:%s172]
                %184 = vst [vmem:[%s180 + $0x4] sm:%s172] %v183
                %v185 = vld [vmem:[%s179 + $0x10] sm:%s172]
                %186 = vst [vmem:[%s180 + $0x8] sm:%s172] %v185
                %v187 = vld [vmem:[%s179 + $0x18] sm:%s172]
                %188 = vst [vmem:[%s180 + $0xc] sm:%s172] %v187
                %v189 = vld [vmem:[%s179 + $0x20] sm:%s172]
                %190 = vst [vmem:[%s180 + $0x10] sm:%s172] %v189
                %v191 = vld [vmem:[%s179 + $0x28] sm:%s172]
                %192 = vst [vmem:[%s180 + $0x14] sm:%s172] %v191
                %v193 = vld [vmem:[%s179 + $0x30] sm:%s172]
                %194 = vst [vmem:[%s180 + $0x18] sm:%s172] %v193
                %v195 = vld [vmem:[%s179 + $0x38] sm:%s172]
                %196 = vst [vmem:[%s180 + $0x1c] sm:%s172] %v195
                %v197 = vld [vmem:[%s179 + $0x40] sm:%s172]
                %198 = vst [vmem:[%s180 + $0x20] sm:%s172] %v197
                %v199 = vld [vmem:[%s179 + $0x48] sm:%s172]
                %200 = vst [vmem:[%s180 + $0x24] sm:%s172] %v199
                %v201 = vld [vmem:[%s179 + $0x50] sm:%s172]
                %202 = vst [vmem:[%s180 + $0x28] sm:%s172] %v201
                %v203 = vld [vmem:[%s179 + $0x58] sm:%s172]
                %204 = vst [vmem:[%s180 + $0x2c] sm:%s172] %v203
                %v205 = vld [vmem:[%s179 + $0x60] sm:%s172]
                %206 = vst [vmem:[%s180 + $0x30] sm:%s172] %v205
                %v207 = vld [vmem:[%s179 + $0x68] sm:%s172]
                %208 = vst [vmem:[%s180 + $0x34] sm:%s172] %v207
                %v209 = vld [vmem:[%s179 + $0x70] sm:%s172]
                %210 = vst [vmem:[%s180 + $0x38] sm:%s172] %v209
                %v211 = vld [vmem:[%s179 + $0x78] sm:%s172]
                %212 = vst [vmem:[%s180 + $0x3c] sm:%s172] %v211
              $region49: #{_lambda_.5} parent=43 // loop_footer
                %s178 = sadd.s32 1, %s174
              $region50: #{_lambda_.5} parent=43 // loop_footer_branch
                %173 = sbr.rel target = $region46
              $region51: #{_lambda_.5} parent=43 // loop_exit
                _
            $region44: #{_lambda_.5} parent=35 // pred_fallthru
              _
          $region36: #{_lambda_.5} parent=31 // pred_fallthru
            _
          %265 = vnop
        $region32: #{_lambda_.5} parent=27 // pred_fallthru
          _
      $region28: #{_lambda_.5} parent=5 // pred_fallthru
        _
      %p266 = scmp.le.s32.totalorder 1, %s13
      %p267 = scmp.lt.s32.totalorder %s13, 3
      %p268 = pnand %p266, %p267
      %p269 = pneg %p268
      // Predicated region
      $region70: #{_lambda_.5} parent=5 // pred_check
        _
      $region71: #{_lambda_.5} parent=5 // pred_check_branch
        %271 = sbr.rel (%p268) target = $region73
      $region72: #{_lambda_.5} parent=5 // pred_region
        %s272 = ssub.s32 %s13, 1
        %s273 = sand.u32 %s89, 1
        %s274 = sand.u32 %s89, 1
        %s275 = smul.addr %s274, 64
        %s276 = scalar_lea.vmem [#allocation2], %s275
        // Predicated region
        $region74: #{_lambda_.5} parent=72 // pred_check
          %p277 = pneg %p102
        $region75: #{_lambda_.5} parent=72 // pred_check_branch
          %279 = sbr.rel (%p277) target = $region77
        $region76: #{_lambda_.5} parent=72 // pred_region
          _
        $region77: #{_lambda_.5} parent=72 // pred_fallthru
          _
        %p280 = pneg %p34
        %p281 = pneg %p31
        %p282 = pneg %p55
        %p283 = pneg %p52
        %p284 = pneg %p76
        %p285 = pneg %p73
        %s286 = sand.u32 %s89, 1
        %s287 = sand.u32 %s89, 1
        %s288 = smul.addr %s287, 64
        %s289 = scalar_lea.vmem [#allocation2], %s288
        %p290 = pneg %p102
        %p291 = pneg %p99
        %p292 = pneg %p128
        %p293 = pneg %p125
        %s294 = sand.u32 %s115, 1
        %s295 = scalar_lea.sflag [#allocation4], %s294
        %s296 = sand.u32 %s115, 1
        %s297 = smul.addr %s296, 8
        %s298 = scalar_lea.vmem [#allocation3], %s297
        %v299 = vld [vmem:[%s0] sm:$0xf]
        %v300 = vunpack.c.l.bf16 %v299
        %301 = vadd.xlane.f32.xlu0 %v300
        %v302 = vpop.xlane.xlu0 %301
        %v303 = vrcp.pop 128.0
        %v304 = vmul.f32 128.0, %v303
        %v305 = vsub.f32 1.0, %v304
        %v306 = vmul.f32 %v303, %v305
        %v307 = vadd.f32 %v303, %v306
        %vm308 = vweird.f32 %v303
        %v309 = vsel %vm308, %v303, %v307
        %v310 = vmul.f32 %v302, %v309
        %v311 = vsub.f32 %v300, %v310
        %v312 = vmul.f32 %v311, %v311
        %313 = vadd.xlane.f32.xlu0 %v312
        %v314 = vpop.xlane.xlu0 %313
        %v315 = vmul.f32 %v314, %v309
        %v316 = vadd.f32 %v315, 1e-05
        %v317 = vrsqrt.pop %v316
        %v318 = vmul.f32 %v317, %v316
        %v319 = vmul.f32 %v318, %v317
        %v320 = vmul.f32 0.5, %v319
        %v321 = vsub.f32 1.5, %v320
        %v322 = vmul.f32 %v317, %v321
        %vm323 = vweird.f32 %v316
        %vm324 = vweird.f32 %v317
        %vm325 = vmor %vm323, %vm324
        %v326 = vsel %vm325, %v317, %v322
        %v327 = vmul.f32 %v311, %v326
        %v328 = vld [vmem:[%s1] sm:$0x1]
        %v330 = vperm.slane %v328, 0
        %v332 = vmul.f32 %v327, %v330
        %v333 = vld [vmem:[%s2] sm:$0x1]
        %v335 = vperm.slane %v333, 0
        %v337 = vadd.f32 %v332, %v335
        %v338 = vpack.c.bf16 %v337, %v337
        %v339 = vld [vmem:[%s276] sm:$0xf]
        %v340 = vld [vmem:[%s276 + $0x4] sm:$0xf]
        %v341 = vld [vmem:[%s276 + $0x8] sm:$0xf]
        %v342 = vld [vmem:[%s276 + $0xc] sm:$0xf]
        %v343 = vld [vmem:[%s276 + $0x10] sm:$0xf]
        %v344 = vld [vmem:[%s276 + $0x14] sm:$0xf]
        %v345 = vld [vmem:[%s276 + $0x18] sm:$0xf]
        %v346 = vld [vmem:[%s276 + $0x1c] sm:$0xf]
        %v347 = vld [vmem:[%s276 + $0x20] sm:$0xf]
        %v348 = vld [vmem:[%s276 + $0x24] sm:$0xf]
        %v349 = vld [vmem:[%s276 + $0x28] sm:$0xf]
        %v350 = vld [vmem:[%s276 + $0x2c] sm:$0xf]
        %v351 = vld [vmem:[%s276 + $0x30] sm:$0xf]
        %v352 = vld [vmem:[%s276 + $0x34] sm:$0xf]
        %v353 = vld [vmem:[%s276 + $0x38] sm:$0xf]
        %v354 = vld [vmem:[%s276 + $0x3c] sm:$0xf]
        %v371 = vunpack.c.l.b16 %v339
        %v372 = vunpack.c.l.b16 %v340
        %v373 = vunpack.c.l.b16 %v341
        %v374 = vunpack.c.l.b16 %v342
        %v375 = vunpack.c.l.b16 %v343
        %v376 = vunpack.c.l.b16 %v344
        %v377 = vunpack.c.l.b16 %v345
        %v378 = vunpack.c.l.b16 %v346
        %v379 = vunpack.c.l.b16 %v347
        %v380 = vunpack.c.l.b16 %v348
        %v381 = vunpack.c.l.b16 %v349
        %v382 = vunpack.c.l.b16 %v350
        %v383 = vunpack.c.l.b16 %v351
        %v384 = vunpack.c.l.b16 %v352
        %v385 = vunpack.c.l.b16 %v353
        %v386 = vunpack.c.l.b16 %v354
        %v387 = vpack.c.b16 %v372, %v371
        %v388 = vpack.c.b16 %v374, %v373
        %v389 = vpack.c.b16 %v376, %v375
        %v390 = vpack.c.b16 %v378, %v377
        %v391 = vpack.c.b16 %v380, %v379
        %v392 = vpack.c.b16 %v382, %v381
        %v393 = vpack.c.b16 %v384, %v383
        %v394 = vpack.c.b16 %v386, %v385
        %403 = vmatpush.bf16.msra.mxu0 %v394
        %404 = vmatpush.bf16.msra.mxu0 %v393
        %405 = vmatpush.bf16.msra.mxu0 %v392
        %406 = vmatpush.bf16.msra.mxu0 %v391
        %407 = vmatpush.bf16.msra.mxu0 %v390
        %408 = vmatpush.bf16.msra.mxu0 %v389
        %409 = vmatpush.bf16.msra.mxu0 %v388
        %410 = vmatpush.bf16.msra.mxu0 %v387
        %411 = vmatmul.bf16.gmra.mxu0 %v338
        %v412 = vpop.f32.mrf.mxu0
        %v413 = vadd.f32 0.0, %v412
        %v414 = vpop.f32.mrf.mxu0
        %415 = vdwg.mxu0
        %416 = vst [vmem:[%s298] sm:$0xff] %v413
        %s417 = sand.u32 %s115, 1
        %s418 = scalar_lea.sflag [#allocation4], %s417
        %s419 = sand.u32 %s115, 1
        %s420 = smul.addr %s419, 8
        %s421 = scalar_lea.vmem [#allocation3], %s420
        // Predicated region
        $region78: #{_lambda_.5} parent=72 // pred_check
          %p422 = pneg %p125
        $region79: #{_lambda_.5} parent=72 // pred_check_branch
          %424 = sbr.rel (%p422) target = $region81
        $region80: #{_lambda_.5} parent=72 // pred_region
          %426 = vsyncadd %s418, 0
          %s427 = smul.addr %s18, 8
          %s428 = scalar_lea.hbm %s4, %s427
          %s430 = sshll.u32 %s421, 4
          %s431 = int_to_ptr.vmem [resolvable:$true] %s430
          %s432 = sshll.u32 %s428, 4
          %s433 = int_to_ptr.hbm [resolvable:$true] %s432
          %435 = dma.vmem_to_hbm [thread:$0]  %s431, 128, %s433, %s418
        $region81: #{_lambda_.5} parent=72 // pred_fallthru
          _
      $region73: #{_lambda_.5} parent=5 // pred_fallthru
        _
      %p436 = scmp.le.s32.totalorder 2, %s13
      // Predicated region
      $region82: #{_lambda_.5} parent=5 // pred_check
        %p437 = pneg %p436
      $region83: #{_lambda_.5} parent=5 // pred_check_branch
        %439 = sbr.rel (%p437) target = $region85
      $region84: #{_lambda_.5} parent=5 // pred_region
        %s440 = ssub.s32 %s13, 2
        // Predicated region
        $region86: #{_lambda_.5} parent=84 // pred_check
          %p441 = pneg %p131
        $region87: #{_lambda_.5} parent=84 // pred_check_branch
          %443 = sbr.rel (%p441) target = $region89
        $region88: #{_lambda_.5} parent=84 // pred_region
          %s444 = sand.u32 %s116, 1
          %s445 = scalar_lea.sflag [#allocation4], %s444
          %s446 = sand.u32 %s116, 1
          %s447 = smul.addr %s446, 8
          %s448 = scalar_lea.vmem [#allocation3], %s447
          %450 = dma.done %s445, 128
        $region89: #{_lambda_.5} parent=84 // pred_fallthru
          _
      $region85: #{_lambda_.5} parent=5 // pred_fallthru
        _
    $region6: #{_lambda_.5} parent=1 // loop_footer
      %s17 = sadd.s32 1, %s13
    $region7: #{_lambda_.5} parent=1 // loop_footer_branch
      %12 = sbr.rel target = $region3
    $region8: #{_lambda_.5} parent=1 // loop_exit
      _
    %451 = vsyncpa [#allocation4], 1
    %s452 = scalar_lea.sflag [#allocation4], 1
    %453 = vsyncpa %s452, 1

// kernel: _lambda_.3
$region0: #{_lambda_.3}
  #allocation0 [shape = 'u32[]', space=smem, size = 0x4, offset = 0x4, fixed_abs, tag = 'smem constant byte address 0x4 - core index']
  #allocation1 [shape = 'u32[72,128]{1,0:T(1,128)}', space=vmem, size = 0x9000, scoped, tag = 'internal scratch']
  %s0 = inlined_call_operand.vmem [shape: bf16[8,128], index: 0, kind: input, shape index: {}]
  %s1 = inlined_call_operand.vmem [shape: f32[1,128], index: 1, kind: input, shape index: {}]
  %s2 = inlined_call_operand.vmem [shape: f32[1,128], index: 2, kind: input, shape index: {}]
  %s3 = inlined_call_operand.vmem [shape: bf16[4,128,32], index: 3, kind: input, shape index: {}]
  %s4 = inlined_call_operand.vmem [shape: bf16[4,128,32], index: 4, kind: input, shape index: {}]
  %s5 = inlined_call_operand.vmem [shape: bf16[4,128,32], index: 5, kind: input, shape index: {}]
  %s6 = inlined_call_operand.vmem [shape: f32[4,1,32], index: 6, kind: input, shape index: {}]
  %s7 = inlined_call_operand.vmem [shape: f32[4,1,32], index: 7, kind: input, shape index: {}]
  %s8 = inlined_call_operand.vmem [shape: f32[4,1,32], index: 8, kind: input, shape index: {}]
  %s9 = inlined_call_operand.vmem [shape: bf16[4,32,128], index: 9, kind: input, shape index: {}]
  %s10 = inlined_call_operand.vmem [shape: f32[1,128], index: 10, kind: input, shape index: {}]
  %s11 = inlined_call_operand.vmem [shape: f32[1,128], index: 11, kind: input, shape index: {}]
  %s12 = inlined_call_operand.vmem [shape: f32[1,128], index: 12, kind: input, shape index: {}]
  %s13 = inlined_call_operand.vmem [shape: bf16[128,512], index: 13, kind: input, shape index: {}]
  %s14 = inlined_call_operand.vmem [shape: f32[1,512], index: 14, kind: input, shape index: {}]
  %s15 = inlined_call_operand.vmem [shape: bf16[512,128], index: 15, kind: input, shape index: {}]
  %s16 = inlined_call_operand.vmem [shape: f32[1,128], index: 16, kind: input, shape index: {}]
  %s17 = inlined_call_operand.vmem [shape: bf16[8,128], index: 17, kind: output, shape index: {0}]
  %s18 = inlined_call_operand.hbm [shape: bf16[4,8,32], index: 18, kind: output, shape index: {1}]
  %s19 = inlined_call_operand.hbm [shape: bf16[4,8,32], index: 19, kind: output, shape index: {2}]
  %20 = xla_tuple %s17, %s18, %s19
  %s21 = sld [smem:[#allocation0]]
  $region94: #{_lambda_.3} parent=0
    _
  %s23 = ssub.s32 1, %s21
  %s24 = scalar_select 0, %s23, %s21
  $region1: #{_lambda_.3} parent=0
    #allocation2 [shape = 'u8[8192]{0}', space=vmem, size = 0x2000, scoped, tag = 'output window, operand 1, single buffered']
    #allocation3 [shape = 's32[1]{0}', space=sflag, size = 0x4, scoped, tag = 'scoped memory for _lambda_.3']
    #allocation4 [shape = 'u8[8192]{0}', space=vmem, size = 0x2000, scoped, tag = 'output window, operand 2, single buffered']
    #allocation5 [shape = 's32[1]{0}', space=sflag, size = 0x4, scoped, tag = 'scoped memory for _lambda_.3']
    %25 = vsyncpa [#allocation3], 0
    %26 = vsyncpa [#allocation5], 0
    // Predicated region
    $region2: #{_lambda_.3} parent=1 // pred_check
      _
    $region3: #{_lambda_.3} parent=1 // pred_check_branch
      %28 = sbr.rel (0) target = $region5
    $region4: #{_lambda_.3} parent=1 // pred_region
      _
    $region5: #{_lambda_.3} parent=1 // pred_fallthru
      _
    // Predicated region
    $region6: #{_lambda_.3} parent=1 // pred_check
      _
    $region7: #{_lambda_.3} parent=1 // pred_check_branch
      %30 = sbr.rel (0) target = $region9
    $region8: #{_lambda_.3} parent=1 // pred_region
      _
    $region9: #{_lambda_.3} parent=1 // pred_fallthru
      _
    // Predicated region
    $region10: #{_lambda_.3} parent=1 // pred_check
      _
    $region11: #{_lambda_.3} parent=1 // pred_check_branch
      %32 = sbr.rel (0) target = $region13
    $region12: #{_lambda_.3} parent=1 // pred_region
      _
    $region13: #{_lambda_.3} parent=1 // pred_fallthru
      _
    // Predicated region
    $region14: #{_lambda_.3} parent=1 // pred_check
      _
    $region15: #{_lambda_.3} parent=1 // pred_check_branch
      %34 = sbr.rel (0) target = $region17
    $region16: #{_lambda_.3} parent=1 // pred_region
      _
    $region17: #{_lambda_.3} parent=1 // pred_fallthru
      _
    // Predicated region
    $region18: #{_lambda_.3} parent=1 // pred_check
      _
    $region19: #{_lambda_.3} parent=1 // pred_check_branch
      %36 = sbr.rel (0) target = $region21
    $region20: #{_lambda_.3} parent=1 // pred_region
      _
    $region21: #{_lambda_.3} parent=1 // pred_fallthru
      _
    // Predicated region
    $region22: #{_lambda_.3} parent=1 // pred_check
      _
    $region23: #{_lambda_.3} parent=1 // pred_check_branch
      %38 = sbr.rel (0) target = $region25
    $region24: #{_lambda_.3} parent=1 // pred_region
      _
    $region25: #{_lambda_.3} parent=1 // pred_fallthru
      _
    // Predicated region
    $region26: #{_lambda_.3} parent=1 // pred_check
      _
    $region27: #{_lambda_.3} parent=1 // pred_check_branch
      %40 = sbr.rel (0) target = $region29
    $region28: #{_lambda_.3} parent=1 // pred_region
      _
    $region29: #{_lambda_.3} parent=1 // pred_fallthru
      _
    // Predicated region
    $region30: #{_lambda_.3} parent=1 // pred_check
      _
    $region31: #{_lambda_.3} parent=1 // pred_check_branch
      %42 = sbr.rel (0) target = $region33
    $region32: #{_lambda_.3} parent=1 // pred_region
      _
    $region33: #{_lambda_.3} parent=1 // pred_fallthru
      _
    // Predicated region
    $region34: #{_lambda_.3} parent=1 // pred_check
      _
    $region35: #{_lambda_.3} parent=1 // pred_check_branch
      %44 = sbr.rel (0) target = $region37
    $region36: #{_lambda_.3} parent=1 // pred_region
      _
    $region37: #{_lambda_.3} parent=1 // pred_fallthru
      _
    // Predicated region
    $region38: #{_lambda_.3} parent=1 // pred_check
      _
    $region39: #{_lambda_.3} parent=1 // pred_check_branch
      %46 = sbr.rel (0) target = $region41
    $region40: #{_lambda_.3} parent=1 // pred_region
      _
    $region41: #{_lambda_.3} parent=1 // pred_fallthru
      _
    // Predicated region
    $region42: #{_lambda_.3} parent=1 // pred_check
      _
    $region43: #{_lambda_.3} parent=1 // pred_check_branch
      %48 = sbr.rel (0) target = $region45
    $region44: #{_lambda_.3} parent=1 // pred_region
      _
    $region45: #{_lambda_.3} parent=1 // pred_fallthru
      _
    // Predicated region
    $region46: #{_lambda_.3} parent=1 // pred_check
      _
    $region47: #{_lambda_.3} parent=1 // pred_check_branch
      %50 = sbr.rel (0) target = $region49
    $region48: #{_lambda_.3} parent=1 // pred_region
      _
    $region49: #{_lambda_.3} parent=1 // pred_fallthru
      _
    // Predicated region
    $region50: #{_lambda_.3} parent=1 // pred_check
      _
    $region51: #{_lambda_.3} parent=1 // pred_check_branch
      %52 = sbr.rel (0) target = $region53
    $region52: #{_lambda_.3} parent=1 // pred_region
      _
    $region53: #{_lambda_.3} parent=1 // pred_fallthru
      _
    // Predicated region
    $region54: #{_lambda_.3} parent=1 // pred_check
      _
    $region55: #{_lambda_.3} parent=1 // pred_check_branch
      %54 = sbr.rel (0) target = $region57
    $region56: #{_lambda_.3} parent=1 // pred_region
      _
    $region57: #{_lambda_.3} parent=1 // pred_fallthru
      _
    // Predicated region
    $region58: #{_lambda_.3} parent=1 // pred_check
      _
    $region59: #{_lambda_.3} parent=1 // pred_check_branch
      %56 = sbr.rel (0) target = $region61
    $region60: #{_lambda_.3} parent=1 // pred_region
      _
    $region61: #{_lambda_.3} parent=1 // pred_fallthru
      _
    // Predicated region
    $region62: #{_lambda_.3} parent=1 // pred_check
      _
    $region63: #{_lambda_.3} parent=1 // pred_check_branch
      %58 = sbr.rel (0) target = $region65
    $region64: #{_lambda_.3} parent=1 // pred_region
      _
    $region65: #{_lambda_.3} parent=1 // pred_fallthru
      _
    // Predicated region
    $region66: #{_lambda_.3} parent=1 // pred_check
      _
    $region67: #{_lambda_.3} parent=1 // pred_check_branch
      %60 = sbr.rel (0) target = $region69
    $region68: #{_lambda_.3} parent=1 // pred_region
      _
    $region69: #{_lambda_.3} parent=1 // pred_fallthru
      _
    %v62 = vld [vmem:[%s0] sm:$0xf]
    %v63 = vunpack.c.l.bf16 %v62
    %64 = vadd.xlane.f32.xlu0 %v63
    %v65 = vpop.xlane.xlu0 %64
    %v66 = vrcp.pop 128.0
    %v67 = vmul.f32 128.0, %v66
    %v68 = vsub.f32 1.0, %v67
    %v69 = vmul.f32 %v66, %v68
    %v70 = vadd.f32 %v66, %v69
    %vm71 = vweird.f32 %v66
    %v72 = vsel %vm71, %v66, %v70
    %v73 = vmul.f32 %v65, %v72
    %v74 = vsub.f32 %v63, %v73
    %v75 = vmul.f32 %v74, %v74
    %76 = vadd.xlane.f32.xlu0 %v75
    %v77 = vpop.xlane.xlu0 %76
    %v78 = vmul.f32 %v77, %v72
    %v79 = vadd.f32 %v78, 1e-05
    %v80 = vrsqrt.pop %v79
    %v81 = vmul.f32 %v80, %v79
    %v82 = vmul.f32 %v81, %v80
    %v83 = vmul.f32 0.5, %v82
    %v84 = vsub.f32 1.5, %v83
    %v85 = vmul.f32 %v80, %v84
    %vm86 = vweird.f32 %v79
    %vm87 = vweird.f32 %v80
    %vm88 = vmor %vm86, %vm87
    %v89 = vsel %vm88, %v80, %v85
    %v90 = vmul.f32 %v74, %v89
    %v91 = vld [vmem:[%s1] sm:$0x1]
    %v93 = vperm.slane %v91, 0
    %v95 = vmul.f32 %v90, %v93
    %v96 = vld [vmem:[%s2] sm:$0x1]
    %v98 = vperm.slane %v96, 0
    %v100 = vadd.f32 %v95, %v98
    %v101 = vpack.c.bf16 %v100, %v100
    %v102 = vlaneseq
    %v103 = vshrl.u32 %v102, 7
    %v104 = vlaneseq
    %v105 = vand.u32 %v104, 127
    %vm106 = vcmp.ge.s32.totalorder %v103, %v105
    %v107 = vld [vmem:[%s10] sm:$0x1]
    %v109 = vperm.slane %v107, 0
    %v111 = vadd.f32 %v63, %v109
    %v112 = vld [vmem:[%s3] sm:$0xf]
    %v113 = vld [vmem:[%s3 + $0x4] sm:$0xf]
    %v114 = vld [vmem:[%s3 + $0x8] sm:$0xf]
    %v115 = vld [vmem:[%s3 + $0xc] sm:$0xf]
    %v116 = vld [vmem:[%s3 + $0x10] sm:$0xf]
    %v117 = vld [vmem:[%s3 + $0x14] sm:$0xf]
    %v118 = vld [vmem:[%s3 + $0x18] sm:$0xf]
    %v119 = vld [vmem:[%s3 + $0x1c] sm:$0xf]
    %v120 = vld [vmem:[%s3 + $0x20] sm:$0xf]
    %v121 = vld [vmem:[%s3 + $0x24] sm:$0xf]
    %v122 = vld [vmem:[%s3 + $0x28] sm:$0xf]
    %v123 = vld [vmem:[%s3 + $0x2c] sm:$0xf]
    %v124 = vld [vmem:[%s3 + $0x30] sm:$0xf]
    %v125 = vld [vmem:[%s3 + $0x34] sm:$0xf]
    %v126 = vld [vmem:[%s3 + $0x38] sm:$0xf]
    %v127 = vld [vmem:[%s3 + $0x3c] sm:$0xf]
    %v128 = vld [vmem:[%s6] sm:$0x1]
    %v130 = vperm.slane %v128, 0
    %v148 = vunpack.c.l.b16 %v112
    %v149 = vunpack.c.l.b16 %v113
    %v150 = vunpack.c.l.b16 %v114
    %v151 = vunpack.c.l.b16 %v115
    %v152 = vunpack.c.l.b16 %v116
    %v153 = vunpack.c.l.b16 %v117
    %v154 = vunpack.c.l.b16 %v118
    %v155 = vunpack.c.l.b16 %v119
    %v156 = vunpack.c.l.b16 %v120
    %v157 = vunpack.c.l.b16 %v121
    %v158 = vunpack.c.l.b16 %v122
    %v159 = vunpack.c.l.b16 %v123
    %v160 = vunpack.c.l.b16 %v124
    %v161 = vunpack.c.l.b16 %v125
    %v162 = vunpack.c.l.b16 %v126
    %v163 = vunpack.c.l.b16 %v127
    %v164 = vpack.c.b16 %v149, %v148
    %v165 = vpack.c.b16 %v151, %v150
    %v166 = vpack.c.b16 %v153, %v152
    %v167 = vpack.c.b16 %v155, %v154
    %v168 = vpack.c.b16 %v157, %v156
    %v169 = vpack.c.b16 %v159, %v158
    %v170 = vpack.c.b16 %v161, %v160
    %v171 = vpack.c.b16 %v163, %v162
    %180 = vmatpush.bf16.msra.mxu0 %v171
    %181 = vmatpush.bf16.msra.mxu0 %v170
    %182 = vmatpush.bf16.msra.mxu0 %v169
    %183 = vmatpush.bf16.msra.mxu0 %v168
    %184 = vmatpush.bf16.msra.mxu0 %v167
    %185 = vmatpush.bf16.msra.mxu0 %v166
    %186 = vmatpush.bf16.msra.mxu0 %v165
    %187 = vmatpush.bf16.msra.mxu0 %v164
    %188 = vmatmul.bf16.gmra.mxu0 %v101
    %v189 = vpop.f32.mrf.mxu0
    %v190 = vadd.f32 %v130, %v189
    %v191 = vpop.f32.mrf.mxu0
    %192 = vdwg.mxu0
    %v193 = vld [vmem:[%s4] sm:$0xf]
    %v194 = vld [vmem:[%s4 + $0x4] sm:$0xf]
    %v195 = vld [vmem:[%s4 + $0x8] sm:$0xf]
    %v196 = vld [vmem:[%s4 + $0xc] sm:$0xf]
    %v197 = vld [vmem:[%s4 + $0x10] sm:$0xf]
    %v198 = vld [vmem:[%s4 + $0x14] sm:$0xf]
    %v199 = vld [vmem:[%s4 + $0x18] sm:$0xf]
    %v200 = vld [vmem:[%s4 + $0x1c] sm:$0xf]
    %v201 = vld [vmem:[%s4 + $0x20] sm:$0xf]
    %v202 = vld [vmem:[%s4 + $0x24] sm:$0xf]
    %v203 = vld [vmem:[%s4 + $0x28] sm:$0xf]
    %v204 = vld [vmem:[%s4 + $0x2c] sm:$0xf]
    %v205 = vld [vmem:[%s4 + $0x30] sm:$0xf]
    %v206 = vld [vmem:[%s4 + $0x34] sm:$0xf]
    %v207 = vld [vmem:[%s4 + $0x38] sm:$0xf]
    %v208 = vld [vmem:[%s4 + $0x3c] sm:$0xf]
    %v209 = vld [vmem:[%s7] sm:$0x1]
    %v211 = vperm.slane %v209, 0
    %v229 = vunpack.c.l.b16 %v193
    %v230 = vunpack.c.l.b16 %v194
    %v231 = vunpack.c.l.b16 %v195
    %v232 = vunpack.c.l.b16 %v196
    %v233 = vunpack.c.l.b16 %v197
    %v234 = vunpack.c.l.b16 %v198
    %v235 = vunpack.c.l.b16 %v199
    %v236 = vunpack.c.l.b16 %v200
    %v237 = vunpack.c.l.b16 %v201
    %v238 = vunpack.c.l.b16 %v202
    %v239 = vunpack.c.l.b16 %v203
    %v240 = vunpack.c.l.b16 %v204
    %v241 = vunpack.c.l.b16 %v205
    %v242 = vunpack.c.l.b16 %v206
    %v243 = vunpack.c.l.b16 %v207
    %v244 = vunpack.c.l.b16 %v208
    %v245 = vpack.c.b16 %v230, %v229
    %v246 = vpack.c.b16 %v232, %v231
    %v247 = vpack.c.b16 %v234, %v233
    %v248 = vpack.c.b16 %v236, %v235
    %v249 = vpack.c.b16 %v238, %v237
    %v250 = vpack.c.b16 %v240, %v239
    %v251 = vpack.c.b16 %v242, %v241
    %v252 = vpack.c.b16 %v244, %v243
    %261 = vmatpush.bf16.msra.mxu0 %v252
    %262 = vmatpush.bf16.msra.mxu0 %v251
    %263 = vmatpush.bf16.msra.mxu0 %v250
    %264 = vmatpush.bf16.msra.mxu0 %v249
    %265 = vmatpush.bf16.msra.mxu0 %v248
    %266 = vmatpush.bf16.msra.mxu0 %v247
    %267 = vmatpush.bf16.msra.mxu0 %v246
    %268 = vmatpush.bf16.msra.mxu0 %v245
    %269 = vmatmul.bf16.gmra.mxu0 %v101
    %v270 = vpop.f32.mrf.mxu0
    %v271 = vadd.f32 %v211, %v270
    %v272 = vpop.f32.mrf.mxu0
    %273 = vdwg.mxu0
    %v274 = vld [vmem:[%s5] sm:$0xf]
    %v275 = vld [vmem:[%s5 + $0x4] sm:$0xf]
    %v276 = vld [vmem:[%s5 + $0x8] sm:$0xf]
    %v277 = vld [vmem:[%s5 + $0xc] sm:$0xf]
    %v278 = vld [vmem:[%s5 + $0x10] sm:$0xf]
    %v279 = vld [vmem:[%s5 + $0x14] sm:$0xf]
    %v280 = vld [vmem:[%s5 + $0x18] sm:$0xf]
    %v281 = vld [vmem:[%s5 + $0x1c] sm:$0xf]
    %v282 = vld [vmem:[%s5 + $0x20] sm:$0xf]
    %v283 = vld [vmem:[%s5 + $0x24] sm:$0xf]
    %v284 = vld [vmem:[%s5 + $0x28] sm:$0xf]
    %v285 = vld [vmem:[%s5 + $0x2c] sm:$0xf]
    %v286 = vld [vmem:[%s5 + $0x30] sm:$0xf]
    %v287 = vld [vmem:[%s5 + $0x34] sm:$0xf]
    %v288 = vld [vmem:[%s5 + $0x38] sm:$0xf]
    %v289 = vld [vmem:[%s5 + $0x3c] sm:$0xf]
    %v290 = vld [vmem:[%s8] sm:$0x1]
    %v292 = vperm.slane %v290, 0
    %v310 = vunpack.c.l.b16 %v274
    %v311 = vunpack.c.l.b16 %v275
    %v312 = vunpack.c.l.b16 %v276
    %v313 = vunpack.c.l.b16 %v277
    %v314 = vunpack.c.l.b16 %v278
    %v315 = vunpack.c.l.b16 %v279
    %v316 = vunpack.c.l.b16 %v280
    %v317 = vunpack.c.l.b16 %v281
    %v318 = vunpack.c.l.b16 %v282
    %v319 = vunpack.c.l.b16 %v283
    %v320 = vunpack.c.l.b16 %v284
    %v321 = vunpack.c.l.b16 %v285
    %v322 = vunpack.c.l.b16 %v286
    %v323 = vunpack.c.l.b16 %v287
    %v324 = vunpack.c.l.b16 %v288
    %v325 = vunpack.c.l.b16 %v289
    %v326 = vpack.c.b16 %v311, %v310
    %v327 = vpack.c.b16 %v313, %v312
    %v328 = vpack.c.b16 %v315, %v314
    %v329 = vpack.c.b16 %v317, %v316
    %v330 = vpack.c.b16 %v319, %v318
    %v331 = vpack.c.b16 %v321, %v320
    %v332 = vpack.c.b16 %v323, %v322
    %v333 = vpack.c.b16 %v325, %v324
    %342 = vmatpush.bf16.msra.mxu0 %v333
    %343 = vmatpush.bf16.msra.mxu0 %v332
    %344 = vmatpush.bf16.msra.mxu0 %v331
    %345 = vmatpush.bf16.msra.mxu0 %v330
    %346 = vmatpush.bf16.msra.mxu0 %v329
    %347 = vmatpush.bf16.msra.mxu0 %v328
    %348 = vmatpush.bf16.msra.mxu0 %v327
    %349 = vmatpush.bf16.msra.mxu0 %v326
    %350 = vmatmul.bf16.gmra.mxu0 %v101
    %v351 = vpop.f32.mrf.mxu0
    %v352 = vadd.f32 %v292, %v351
    %v353 = vpop.f32.mrf.mxu0
    %354 = vdwg.mxu0
    %v355 = vpack.c.bf16 %v271, %v271
    %vm356 = vcmask 257024
    %357 = vst.msk [vmem:[#allocation2] sm:$0xf] %vm356, %v355
    %v358 = vpack.c.bf16 %v352, %v352
    %359 = vst.msk [vmem:[#allocation4] sm:$0xf] %vm356, %v358
    %v360 = vpack.c.bf16 %v190, %v190
    %vm361 = vcmask 261120
    %v363 = vsel %vm361, %v360, 0
    %v366 = vsel %vm361, %v355, 0
    %368 = vmatpush.bf16.xpose.msra.mxu0 0
    %369 = vmatpush.bf16.xpose.msra.mxu0 0
    %370 = vmatpush.bf16.xpose.msra.mxu0 0
    %371 = vmatpush.bf16.xpose.msra.mxu0 0
    %372 = vmatpush.bf16.xpose.msra.mxu0 0
    %373 = vmatpush.bf16.xpose.msra.mxu0 0
    %374 = vmatpush.bf16.xpose.msra.mxu0 0
    %375 = vmatpush.bf16.xpose.msra.mxu0 %v366
    %376 = vmatmul.bf16.gmra.mxu0 %v363
    %v377 = vpop.f32.mrf.mxu0
    %v378 = vadd.f32 0.0, %v377
    %v379 = vpop.f32.mrf.mxu0
    %380 = vdwg.mxu0
    %v381 = vmul.f32 %v378, 0.17677669
    %v382 = vsel %vm106, %v381, -3.4028235e+38
    %vm383 = vcmask 64512
    %v384 = vsel %vm383, %v382, -inf
    %385 = vmax.xlane.f32.xlu0 %v384
    %v386 = vpop.xlane.xlu0 %385
    %v387 = vsub.f32 %v382, %v386
    %v388 = vmul.f32 %v387, 1.442695
    %v389 = vpow.pop %v388
    %v390 = vsel %vm383, %v389, 0.0
    %391 = vadd.xlane.f32.xlu0 %v390
    %v392 = vpop.xlane.xlu0 %391
    %v393 = vrcp.pop %v392
    %v394 = vmul.f32 %v392, %v393
    %v395 = vsub.f32 1.0, %v394
    %v396 = vmul.f32 %v393, %v395
    %v397 = vadd.f32 %v393, %v396
    %vm398 = vweird.f32 %v392
    %vm399 = vweird.f32 %v393
    %vm400 = vmor %vm398, %vm399
    %v401 = vsel %vm400, %v393, %v397
    %v402 = vand.u32 2147483647, %v392
    %vm403 = vcmp.eq.f32.partialorder %v402, 8.507059e+37
    %v404 = vand.u32 %v392, 2147483648
    %v405 = vor.u32 1.1754944e-38, %v404
    %v406 = vsel %vm403, %v405, %v401
    %v407 = vmul.f32 %v389, %v406
    %v408 = vpack.c.bf16 %v407, %v407
    %v410 = vsel %vm383, %v408, 0
    %vm412 = vcmask 1043456
    %v414 = vsel %vm412, %v358, 0
    %416 = vmatpush.bf16.msra.mxu0 0
    %417 = vmatpush.bf16.msra.mxu0 0
    %418 = vmatpush.bf16.msra.mxu0 0
    %419 = vmatpush.bf16.msra.mxu0 0
    %420 = vmatpush.bf16.msra.mxu0 0
    %421 = vmatpush.bf16.msra.mxu0 0
    %422 = vmatpush.bf16.msra.mxu0 0
    %423 = vmatpush.bf16.msra.mxu0 %v414
    %424 = vmatmul.bf16.gmra.mxu0 %v410
    %v425 = vpop.f32.mrf.mxu0
    %v426 = vadd.f32 0.0, %v425
    %v427 = vpop.f32.mrf.mxu0
    %428 = vdwg.mxu0
    %v429 = vpack.c.bf16 %v426, %v426
    %v430 = vld [vmem:[%s9] sm:$0xf]
    %v431 = vld [vmem:[%s9 + $0x4] sm:$0xf]
    %v432 = vld [vmem:[%s9 + $0x8] sm:$0xf]
    %v433 = vld [vmem:[%s9 + $0xc] sm:$0xf]
    %v438 = vunpack.c.l.b16 %v430
    %v439 = vunpack.c.l.b16 %v431
    %v440 = vunpack.c.l.b16 %v432
    %v441 = vunpack.c.l.b16 %v433
    %v442 = vpack.c.b16 %v439, %v438
    %v443 = vpack.c.b16 %v441, %v440
    %v447 = vsel %vm361, %v429, 0
    %449 = vmatpush.bf16.msra.mxu0 0
    %450 = vmatpush.bf16.msra.mxu0 0
    %451 = vmatpush.bf16.msra.mxu0 0
    %452 = vmatpush.bf16.msra.mxu0 0
    %453 = vmatpush.bf16.msra.mxu0 0
    %454 = vmatpush.bf16.msra.mxu0 0
    %455 = vmatpush.bf16.msra.mxu0 %v443
    %456 = vmatpush.bf16.msra.mxu0 %v442
    %457 = vmatmul.bf16.gmra.mxu0 %v447
    %v458 = vpop.f32.mrf.mxu0
    %v459 = vadd.f32 0.0, %v458
    %v460 = vpop.f32.mrf.mxu0
    %461 = vdwg.mxu0
    %v462 = vadd.f32 %v111, %v459
    %s463 = scalar_lea.vmem %s3, 64
    %v464 = vld [vmem:[%s463] sm:$0xf]
    %v465 = vld [vmem:[%s463 + $0x4] sm:$0xf]
    %v466 = vld [vmem:[%s463 + $0x8] sm:$0xf]
    %v467 = vld [vmem:[%s463 + $0xc] sm:$0xf]
    %v468 = vld [vmem:[%s463 + $0x10] sm:$0xf]
    %v469 = vld [vmem:[%s463 + $0x14] sm:$0xf]
    %v470 = vld [vmem:[%s463 + $0x18] sm:$0xf]
    %v471 = vld [vmem:[%s463 + $0x1c] sm:$0xf]
    %v472 = vld [vmem:[%s463 + $0x20] sm:$0xf]
    %v473 = vld [vmem:[%s463 + $0x24] sm:$0xf]
    %v474 = vld [vmem:[%s463 + $0x28] sm:$0xf]
    %v475 = vld [vmem:[%s463 + $0x2c] sm:$0xf]
    %v476 = vld [vmem:[%s463 + $0x30] sm:$0xf]
    %v477 = vld [vmem:[%s463 + $0x34] sm:$0xf]
    %v478 = vld [vmem:[%s463 + $0x38] sm:$0xf]
    %v479 = vld [vmem:[%s463 + $0x3c] sm:$0xf]
    %s480 = scalar_lea.vmem %s6, 1
    %v481 = vld [vmem:[%s480] sm:$0x1]
    %v483 = vperm.slane %v481, 0
    %v501 = vunpack.c.l.b16 %v464
    %v502 = vunpack.c.l.b16 %v465
    %v503 = vunpack.c.l.b16 %v466
    %v504 = vunpack.c.l.b16 %v467
    %v505 = vunpack.c.l.b16 %v468
    %v506 = vunpack.c.l.b16 %v469
    %v507 = vunpack.c.l.b16 %v470
    %v508 = vunpack.c.l.b16 %v471
    %v509 = vunpack.c.l.b16 %v472
    %v510 = vunpack.c.l.b16 %v473
    %v511 = vunpack.c.l.b16 %v474
    %v512 = vunpack.c.l.b16 %v475
    %v513 = vunpack.c.l.b16 %v476
    %v514 = vunpack.c.l.b16 %v477
    %v515 = vunpack.c.l.b16 %v478
    %v516 = vunpack.c.l.b16 %v479
    %v517 = vpack.c.b16 %v502, %v501
    %v518 = vpack.c.b16 %v504, %v503
    %v519 = vpack.c.b16 %v506, %v505
    %v520 = vpack.c.b16 %v508, %v507
    %v521 = vpack.c.b16 %v510, %v509
    %v522 = vpack.c.b16 %v512, %v511
    %v523 = vpack.c.b16 %v514, %v513
    %v524 = vpack.c.b16 %v516, %v515
    %533 = vmatpush.bf16.msra.mxu0 %v524
    %534 = vmatpush.bf16.msra.mxu0 %v523
    %535 = vmatpush.bf16.msra.mxu0 %v522
    %536 = vmatpush.bf16.msra.mxu0 %v521
    %537 = vmatpush.bf16.msra.mxu0 %v520
    %538 = vmatpush.bf16.msra.mxu0 %v519
    %539 = vmatpush.bf16.msra.mxu0 %v518
    %540 = vmatpush.bf16.msra.mxu0 %v517
    %541 = vmatmul.bf16.gmra.mxu0 %v101
    %v542 = vpop.f32.mrf.mxu0
    %v543 = vadd.f32 %v483, %v542
    %v544 = vpop.f32.mrf.mxu0
    %545 = vdwg.mxu0
    %s546 = scalar_lea.vmem %s4, 64
    %v547 = vld [vmem:[%s546] sm:$0xf]
    %v548 = vld [vmem:[%s546 + $0x4] sm:$0xf]
    %v549 = vld [vmem:[%s546 + $0x8] sm:$0xf]
    %v550 = vld [vmem:[%s546 + $0xc] sm:$0xf]
    %v551 = vld [vmem:[%s546 + $0x10] sm:$0xf]
    %v552 = vld [vmem:[%s546 + $0x14] sm:$0xf]
    %v553 = vld [vmem:[%s546 + $0x18] sm:$0xf]
    %v554 = vld [vmem:[%s546 + $0x1c] sm:$0xf]
    %v555 = vld [vmem:[%s546 + $0x20] sm:$0xf]
    %v556 = vld [vmem:[%s546 + $0x24] sm:$0xf]
    %v557 = vld [vmem:[%s546 + $0x28] sm:$0xf]
    %v558 = vld [vmem:[%s546 + $0x2c] sm:$0xf]
    %v559 = vld [vmem:[%s546 + $0x30] sm:$0xf]
    %v560 = vld [vmem:[%s546 + $0x34] sm:$0xf]
    %v561 = vld [vmem:[%s546 + $0x38] sm:$0xf]
    %v562 = vld [vmem:[%s546 + $0x3c] sm:$0xf]
    %s563 = scalar_lea.vmem %s7, 1
    %v564 = vld [vmem:[%s563] sm:$0x1]
    %v566 = vperm.slane %v564, 0
    %v584 = vunpack.c.l.b16 %v547
    %v585 = vunpack.c.l.b16 %v548
    %v586 = vunpack.c.l.b16 %v549
    %v587 = vunpack.c.l.b16 %v550
    %v588 = vunpack.c.l.b16 %v551
    %v589 = vunpack.c.l.b16 %v552
    %v590 = vunpack.c.l.b16 %v553
    %v591 = vunpack.c.l.b16 %v554
    %v592 = vunpack.c.l.b16 %v555
    %v593 = vunpack.c.l.b16 %v556
    %v594 = vunpack.c.l.b16 %v557
    %v595 = vunpack.c.l.b16 %v558
    %v596 = vunpack.c.l.b16 %v559
    %v597 = vunpack.c.l.b16 %v560
    %v598 = vunpack.c.l.b16 %v561
    %v599 = vunpack.c.l.b16 %v562
    %v600 = vpack.c.b16 %v585, %v584
    %v601 = vpack.c.b16 %v587, %v586
    %v602 = vpack.c.b16 %v589, %v588
    %v603 = vpack.c.b16 %v591, %v590
    %v604 = vpack.c.b16 %v593, %v592
    %v605 = vpack.c.b16 %v595, %v594
    %v606 = vpack.c.b16 %v597, %v596
    %v607 = vpack.c.b16 %v599, %v598
    %616 = vmatpush.bf16.msra.mxu0 %v607
    %617 = vmatpush.bf16.msra.mxu0 %v606
    %618 = vmatpush.bf16.msra.mxu0 %v605
    %619 = vmatpush.bf16.msra.mxu0 %v604
    %620 = vmatpush.bf16.msra.mxu0 %v603
    %621 = vmatpush.bf16.msra.mxu0 %v602
    %622 = vmatpush.bf16.msra.mxu0 %v601
    %623 = vmatpush.bf16.msra.mxu0 %v600
    %624 = vmatmul.bf16.gmra.mxu0 %v101
    %v625 = vpop.f32.mrf.mxu0
    %v626 = vadd.f32 %v566, %v625
    %v627 = vpop.f32.mrf.mxu0
    %628 = vdwg.mxu0
    %s629 = scalar_lea.vmem %s5, 64
    %v630 = vld [vmem:[%s629] sm:$0xf]
    %v631 = vld [vmem:[%s629 + $0x4] sm:$0xf]
    %v632 = vld [vmem:[%s629 + $0x8] sm:$0xf]
    %v633 = vld [vmem:[%s629 + $0xc] sm:$0xf]
    %v634 = vld [vmem:[%s629 + $0x10] sm:$0xf]
    %v635 = vld [vmem:[%s629 + $0x14] sm:$0xf]
    %v636 = vld [vmem:[%s629 + $0x18] sm:$0xf]
    %v637 = vld [vmem:[%s629 + $0x1c] sm:$0xf]
    %v638 = vld [vmem:[%s629 + $0x20] sm:$0xf]
    %v639 = vld [vmem:[%s629 + $0x24] sm:$0xf]
    %v640 = vld [vmem:[%s629 + $0x28] sm:$0xf]
    %v641 = vld [vmem:[%s629 + $0x2c] sm:$0xf]
    %v642 = vld [vmem:[%s629 + $0x30] sm:$0xf]
    %v643 = vld [vmem:[%s629 + $0x34] sm:$0xf]
    %v644 = vld [vmem:[%s629 + $0x38] sm:$0xf]
    %v645 = vld [vmem:[%s629 + $0x3c] sm:$0xf]
    %s646 = scalar_lea.vmem %s8, 1
    %v647 = vld [vmem:[%s646] sm:$0x1]
    %v649 = vperm.slane %v647, 0
    %v667 = vunpack.c.l.b16 %v630
    %v668 = vunpack.c.l.b16 %v631
    %v669 = vunpack.c.l.b16 %v632
    %v670 = vunpack.c.l.b16 %v633
    %v671 = vunpack.c.l.b16 %v634
    %v672 = vunpack.c.l.b16 %v635
    %v673 = vunpack.c.l.b16 %v636
    %v674 = vunpack.c.l.b16 %v637
    %v675 = vunpack.c.l.b16 %v638
    %v676 = vunpack.c.l.b16 %v639
    %v677 = vunpack.c.l.b16 %v640
    %v678 = vunpack.c.l.b16 %v641
    %v679 = vunpack.c.l.b16 %v642
    %v680 = vunpack.c.l.b16 %v643
    %v681 = vunpack.c.l.b16 %v644
    %v682 = vunpack.c.l.b16 %v645
    %v683 = vpack.c.b16 %v668, %v667
    %v684 = vpack.c.b16 %v670, %v669
    %v685 = vpack.c.b16 %v672, %v671
    %v686 = vpack.c.b16 %v674, %v673
    %v687 = vpack.c.b16 %v676, %v675
    %v688 = vpack.c.b16 %v678, %v677
    %v689 = vpack.c.b16 %v680, %v679
    %v690 = vpack.c.b16 %v682, %v681
    %699 = vmatpush.bf16.msra.mxu0 %v690
    %700 = vmatpush.bf16.msra.mxu0 %v689
    %701 = vmatpush.bf16.msra.mxu0 %v688
    %702 = vmatpush.bf16.msra.mxu0 %v687
    %703 = vmatpush.bf16.msra.mxu0 %v686
    %704 = vmatpush.bf16.msra.mxu0 %v685
    %705 = vmatpush.bf16.msra.mxu0 %v684
    %706 = vmatpush.bf16.msra.mxu0 %v683
    %707 = vmatmul.bf16.gmra.mxu0 %v101
    %v708 = vpop.f32.mrf.mxu0
    %v709 = vadd.f32 %v649, %v708
    %v710 = vpop.f32.mrf.mxu0
    %711 = vdwg.mxu0
    %v712 = vpack.c.bf16 %v626, %v626
    %s713 = scalar_lea.vmem [#allocation2], 4
    %714 = vst.msk [vmem:[%s713] sm:$0xf] %vm356, %v712
    %v715 = vpack.c.bf16 %v709, %v709
    %s716 = scalar_lea.vmem [#allocation4], 4
    %717 = vst.msk [vmem:[%s716] sm:$0xf] %vm356, %v715
    %v718 = vpack.c.bf16 %v543, %v543
    %v720 = vsel %vm361, %v718, 0
    %v723 = vsel %vm361, %v712, 0
    %725 = vmatpush.bf16.xpose.msra.mxu0 0
    %726 = vmatpush.bf16.xpose.msra.mxu0 0
    %727 = vmatpush.bf16.xpose.msra.mxu0 0
    %728 = vmatpush.bf16.xpose.msra.mxu0 0
    %729 = vmatpush.bf16.xpose.msra.mxu0 0
    %730 = vmatpush.bf16.xpose.msra.mxu0 0
    %731 = vmatpush.bf16.xpose.msra.mxu0 0
    %732 = vmatpush.bf16.xpose.msra.mxu0 %v723
    %733 = vmatmul.bf16.gmra.mxu0 %v720
    %v734 = vpop.f32.mrf.mxu0
    %v735 = vadd.f32 0.0, %v734
    %v736 = vpop.f32.mrf.mxu0
    %737 = vdwg.mxu0
    %v738 = vmul.f32 %v735, 0.17677669
    %v739 = vsel %vm106, %v738, -3.4028235e+38
    %v740 = vsel %vm383, %v739, -inf
    %741 = vmax.xlane.f32.xlu0 %v740
    %v742 = vpop.xlane.xlu0 %741
    %v743 = vsub.f32 %v739, %v742
    %v744 = vmul.f32 %v743, 1.442695
    %v745 = vpow.pop %v744
    %v746 = vsel %vm383, %v745, 0.0
    %747 = vadd.xlane.f32.xlu0 %v746
    %v748 = vpop.xlane.xlu0 %747
    %v749 = vrcp.pop %v748
    %v750 = vmul.f32 %v748, %v749
    %v751 = vsub.f32 1.0, %v750
    %v752 = vmul.f32 %v749, %v751
    %v753 = vadd.f32 %v749, %v752
    %vm754 = vweird.f32 %v748
    %vm755 = vweird.f32 %v749
    %vm756 = vmor %vm754, %vm755
    %v757 = vsel %vm756, %v749, %v753
    %v758 = vand.u32 2147483647, %v748
    %vm759 = vcmp.eq.f32.partialorder %v758, 8.507059e+37
    %v760 = vand.u32 %v748, 2147483648
    %v761 = vor.u32 1.1754944e-38, %v760
    %v762 = vsel %vm759, %v761, %v757
    %v763 = vmul.f32 %v745, %v762
    %v764 = vpack.c.bf16 %v763, %v763
    %v766 = vsel %vm383, %v764, 0
    %v769 = vsel %vm412, %v715, 0
    %771 = vmatpush.bf16.msra.mxu0 0
    %772 = vmatpush.bf16.msra.mxu0 0
    %773 = vmatpush.bf16.msra.mxu0 0
    %774 = vmatpush.bf16.msra.mxu0 0
    %775 = vmatpush.bf16.msra.mxu0 0
    %776 = vmatpush.bf16.msra.mxu0 0
    %777 = vmatpush.bf16.msra.mxu0 0
    %778 = vmatpush.bf16.msra.mxu0 %v769
    %779 = vmatmul.bf16.gmra.mxu0 %v766
    %v780 = vpop.f32.mrf.mxu0
    %v781 = vadd.f32 0.0, %v780
    %v782 = vpop.f32.mrf.mxu0
    %783 = vdwg.mxu0
    %v784 = vpack.c.bf16 %v781, %v781
    %s785 = scalar_lea.vmem %s9, 16
    %v786 = vld [vmem:[%s785] sm:$0xf]
    %v787 = vld [vmem:[%s785 + $0x4] sm:$0xf]
    %v788 = vld [vmem:[%s785 + $0x8] sm:$0xf]
    %v789 = vld [vmem:[%s785 + $0xc] sm:$0xf]
    %v794 = vunpack.c.l.b16 %v786
    %v795 = vunpack.c.l.b16 %v787
    %v796 = vunpack.c.l.b16 %v788
    %v797 = vunpack.c.l.b16 %v789
    %v798 = vpack.c.b16 %v795, %v794
    %v799 = vpack.c.b16 %v797, %v796
    %v803 = vsel %vm361, %v784, 0
    %805 = vmatpush.bf16.msra.mxu0 0
    %806 = vmatpush.bf16.msra.mxu0 0
    %807 = vmatpush.bf16.msra.mxu0 0
    %808 = vmatpush.bf16.msra.mxu0 0
    %809 = vmatpush.bf16.msra.mxu0 0
    %810 = vmatpush.bf16.msra.mxu0 0
    %811 = vmatpush.bf16.msra.mxu0 %v799
    %812 = vmatpush.bf16.msra.mxu0 %v798
    %813 = vmatmul.bf16.gmra.mxu0 %v803
    %v814 = vpop.f32.mrf.mxu0
    %v815 = vadd.f32 0.0, %v814
    %v816 = vpop.f32.mrf.mxu0
    %817 = vdwg.mxu0
    %v818 = vadd.f32 %v462, %v815
    %s819 = scalar_lea.vmem %s3, 128
    %v820 = vld [vmem:[%s819] sm:$0xf]
    %v821 = vld [vmem:[%s819 + $0x4] sm:$0xf]
    %v822 = vld [vmem:[%s819 + $0x8] sm:$0xf]
    %v823 = vld [vmem:[%s819 + $0xc] sm:$0xf]
    %v824 = vld [vmem:[%s819 + $0x10] sm:$0xf]
    %v825 = vld [vmem:[%s819 + $0x14] sm:$0xf]
    %v826 = vld [vmem:[%s819 + $0x18] sm:$0xf]
    %v827 = vld [vmem:[%s819 + $0x1c] sm:$0xf]
    %v828 = vld [vmem:[%s819 + $0x20] sm:$0xf]
    %v829 = vld [vmem:[%s819 + $0x24] sm:$0xf]
    %v830 = vld [vmem:[%s819 + $0x28] sm:$0xf]
    %v831 = vld [vmem:[%s819 + $0x2c] sm:$0xf]
    %v832 = vld [vmem:[%s819 + $0x30] sm:$0xf]
    %v833 = vld [vmem:[%s819 + $0x34] sm:$0xf]
    %v834 = vld [vmem:[%s819 + $0x38] sm:$0xf]
    %v835 = vld [vmem:[%s819 + $0x3c] sm:$0xf]
    %s836 = scalar_lea.vmem %s6, 2
    %v837 = vld [vmem:[%s836] sm:$0x1]
    %v839 = vperm.slane %v837, 0
    %v857 = vunpack.c.l.b16 %v820
    %v858 = vunpack.c.l.b16 %v821
    %v859 = vunpack.c.l.b16 %v822
    %v860 = vunpack.c.l.b16 %v823
    %v861 = vunpack.c.l.b16 %v824
    %v862 = vunpack.c.l.b16 %v825
    %v863 = vunpack.c.l.b16 %v826
    %v864 = vunpack.c.l.b16 %v827
    %v865 = vunpack.c.l.b16 %v828
    %v866 = vunpack.c.l.b16 %v829
    %v867 = vunpack.c.l.b16 %v830
    %v868 = vunpack.c.l.b16 %v831
    %v869 = vunpack.c.l.b16 %v832
    %v870 = vunpack.c.l.b16 %v833
    %v871 = vunpack.c.l.b16 %v834
    %v872 = vunpack.c.l.b16 %v835
    %v873 = vpack.c.b16 %v858, %v857
    %v874 = vpack.c.b16 %v860, %v859
    %v875 = vpack.c.b16 %v862, %v861
    %v876 = vpack.c.b16 %v864, %v863
    %v877 = vpack.c.b16 %v866, %v865
    %v878 = vpack.c.b16 %v868, %v867
    %v879 = vpack.c.b16 %v870, %v869
    %v880 = vpack.c.b16 %v872, %v871
    %889 = vmatpush.bf16.msra.mxu0 %v880
    %890 = vmatpush.bf16.msra.mxu0 %v879
    %891 = vmatpush.bf16.msra.mxu0 %v878
    %892 = vmatpush.bf16.msra.mxu0 %v877
    %893 = vmatpush.bf16.msra.mxu0 %v876
    %894 = vmatpush.bf16.msra.mxu0 %v875
    %895 = vmatpush.bf16.msra.mxu0 %v874
    %896 = vmatpush.bf16.msra.mxu0 %v873
    %897 = vmatmul.bf16.gmra.mxu0 %v101
    %v898 = vpop.f32.mrf.mxu0
    %v899 = vadd.f32 %v839, %v898
    %v900 = vpop.f32.mrf.mxu0
    %901 = vdwg.mxu0
    %s902 = scalar_lea.vmem %s4, 128
    %v903 = vld [vmem:[%s902] sm:$0xf]
    %v904 = vld [vmem:[%s902 + $0x4] sm:$0xf]
    %v905 = vld [vmem:[%s902 + $0x8] sm:$0xf]
    %v906 = vld [vmem:[%s902 + $0xc] sm:$0xf]
    %v907 = vld [vmem:[%s902 + $0x10] sm:$0xf]
    %v908 = vld [vmem:[%s902 + $0x14] sm:$0xf]
    %v909 = vld [vmem:[%s902 + $0x18] sm:$0xf]
    %v910 = vld [vmem:[%s902 + $0x1c] sm:$0xf]
    %v911 = vld [vmem:[%s902 + $0x20] sm:$0xf]
    %v912 = vld [vmem:[%s902 + $0x24] sm:$0xf]
    %v913 = vld [vmem:[%s902 + $0x28] sm:$0xf]
    %v914 = vld [vmem:[%s902 + $0x2c] sm:$0xf]
    %v915 = vld [vmem:[%s902 + $0x30] sm:$0xf]
    %v916 = vld [vmem:[%s902 + $0x34] sm:$0xf]
    %v917 = vld [vmem:[%s902 + $0x38] sm:$0xf]
    %v918 = vld [vmem:[%s902 + $0x3c] sm:$0xf]
    %s919 = scalar_lea.vmem %s7, 2
    %v920 = vld [vmem:[%s919] sm:$0x1]
    %v922 = vperm.slane %v920, 0
    %v940 = vunpack.c.l.b16 %v903
    %v941 = vunpack.c.l.b16 %v904
    %v942 = vunpack.c.l.b16 %v905
    %v943 = vunpack.c.l.b16 %v906
    %v944 = vunpack.c.l.b16 %v907
    %v945 = vunpack.c.l.b16 %v908
    %v946 = vunpack.c.l.b16 %v909
    %v947 = vunpack.c.l.b16 %v910
    %v948 = vunpack.c.l.b16 %v911
    %v949 = vunpack.c.l.b16 %v912
    %v950 = vunpack.c.l.b16 %v913
    %v951 = vunpack.c.l.b16 %v914
    %v952 = vunpack.c.l.b16 %v915
    %v953 = vunpack.c.l.b16 %v916
    %v954 = vunpack.c.l.b16 %v917
    %v955 = vunpack.c.l.b16 %v918
    %v956 = vpack.c.b16 %v941, %v940
    %v957 = vpack.c.b16 %v943, %v942
    %v958 = vpack.c.b16 %v945, %v944
    %v959 = vpack.c.b16 %v947, %v946
    %v960 = vpack.c.b16 %v949, %v948
    %v961 = vpack.c.b16 %v951, %v950
    %v962 = vpack.c.b16 %v953, %v952
    %v963 = vpack.c.b16 %v955, %v954
    %972 = vmatpush.bf16.msra.mxu0 %v963
    %973 = vmatpush.bf16.msra.mxu0 %v962
    %974 = vmatpush.bf16.msra.mxu0 %v961
    %975 = vmatpush.bf16.msra.mxu0 %v960
    %976 = vmatpush.bf16.msra.mxu0 %v959
    %977 = vmatpush.bf16.msra.mxu0 %v958
    %978 = vmatpush.bf16.msra.mxu0 %v957
    %979 = vmatpush.bf16.msra.mxu0 %v956
    %980 = vmatmul.bf16.gmra.mxu0 %v101
    %v981 = vpop.f32.mrf.mxu0
    %v982 = vadd.f32 %v922, %v981
    %v983 = vpop.f32.mrf.mxu0
    %984 = vdwg.mxu0
    %s985 = scalar_lea.vmem %s5, 128
    %v986 = vld [vmem:[%s985] sm:$0xf]
    %v987 = vld [vmem:[%s985 + $0x4] sm:$0xf]
    %v988 = vld [vmem:[%s985 + $0x8] sm:$0xf]
    %v989 = vld [vmem:[%s985 + $0xc] sm:$0xf]
    %v990 = vld [vmem:[%s985 + $0x10] sm:$0xf]
    %v991 = vld [vmem:[%s985 + $0x14] sm:$0xf]
    %v992 = vld [vmem:[%s985 + $0x18] sm:$0xf]
    %v993 = vld [vmem:[%s985 + $0x1c] sm:$0xf]
    %v994 = vld [vmem:[%s985 + $0x20] sm:$0xf]
    %v995 = vld [vmem:[%s985 + $0x24] sm:$0xf]
    %v996 = vld [vmem:[%s985 + $0x28] sm:$0xf]
    %v997 = vld [vmem:[%s985 + $0x2c] sm:$0xf]
    %v998 = vld [vmem:[%s985 + $0x30] sm:$0xf]
    %v999 = vld [vmem:[%s985 + $0x34] sm:$0xf]
    %v1000 = vld [vmem:[%s985 + $0x38] sm:$0xf]
    %v1001 = vld [vmem:[%s985 + $0x3c] sm:$0xf]
    %s1002 = scalar_lea.vmem %s8, 2
    %v1003 = vld [vmem:[%s1002] sm:$0x1]
    %v1005 = vperm.slane %v1003, 0
    %v1023 = vunpack.c.l.b16 %v986
    %v1024 = vunpack.c.l.b16 %v987
    %v1025 = vunpack.c.l.b16 %v988
    %v1026 = vunpack.c.l.b16 %v989
    %v1027 = vunpack.c.l.b16 %v990
    %v1028 = vunpack.c.l.b16 %v991
    %v1029 = vunpack.c.l.b16 %v992
    %v1030 = vunpack.c.l.b16 %v993
    %v1031 = vunpack.c.l.b16 %v994
    %v1032 = vunpack.c.l.b16 %v995
    %v1033 = vunpack.c.l.b16 %v996
    %v1034 = vunpack.c.l.b16 %v997
    %v1035 = vunpack.c.l.b16 %v998
    %v1036 = vunpack.c.l.b16 %v999
    %v1037 = vunpack.c.l.b16 %v1000
    %v1038 = vunpack.c.l.b16 %v1001
    %v1039 = vpack.c.b16 %v1024, %v1023
    %v1040 = vpack.c.b16 %v1026, %v1025
    %v1041 = vpack.c.b16 %v1028, %v1027
    %v1042 = vpack.c.b16 %v1030, %v1029
    %v1043 = vpack.c.b16 %v1032, %v1031
    %v1044 = vpack.c.b16 %v1034, %v1033
    %v1045 = vpack.c.b16 %v1036, %v1035
    %v1046 = vpack.c.b16 %v1038, %v1037
    %1055 = vmatpush.bf16.msra.mxu0 %v1046
    %1056 = vmatpush.bf16.msra.mxu0 %v1045
    %1057 = vmatpush.bf16.msra.mxu0 %v1044
    %1058 = vmatpush.bf16.msra.mxu0 %v1043
    %1059 = vmatpush.bf16.msra.mxu0 %v1042
    %1060 = vmatpush.bf16.msra.mxu0 %v1041
    %1061 = vmatpush.bf16.msra.mxu0 %v1040
    %1062 = vmatpush.bf16.msra.mxu0 %v1039
    %1063 = vmatmul.bf16.gmra.mxu0 %v101
    %v1064 = vpop.f32.mrf.mxu0
    %v1065 = vadd.f32 %v1005, %v1064
    %v1066 = vpop.f32.mrf.mxu0
    %1067 = vdwg.mxu0
    %v1068 = vpack.c.bf16 %v982, %v982
    %s1069 = scalar_lea.vmem [#allocation2], 8
    %1070 = vst.msk [vmem:[%s1069] sm:$0xf] %vm356, %v1068
    %v1071 = vpack.c.bf16 %v1065, %v1065
    %s1072 = scalar_lea.vmem [#allocation4], 8
    %1073 = vst.msk [vmem:[%s1072] sm:$0xf] %vm356, %v1071
    %v1074 = vpack.c.bf16 %v899, %v899
    %v1076 = vsel %vm361, %v1074, 0
    %v1079 = vsel %vm361, %v1068, 0
    %1081 = vmatpush.bf16.xpose.msra.mxu0 0
    %1082 = vmatpush.bf16.xpose.msra.mxu0 0
    %1083 = vmatpush.bf16.xpose.msra.mxu0 0
    %1084 = vmatpush.bf16.xpose.msra.mxu0 0
    %1085 = vmatpush.bf16.xpose.msra.mxu0 0
    %1086 = vmatpush.bf16.xpose.msra.mxu0 0
    %1087 = vmatpush.bf16.xpose.msra.mxu0 0
    %1088 = vmatpush.bf16.xpose.msra.mxu0 %v1079
    %1089 = vmatmul.bf16.gmra.mxu0 %v1076
    %v1090 = vpop.f32.mrf.mxu0
    %v1091 = vadd.f32 0.0, %v1090
    %v1092 = vpop.f32.mrf.mxu0
    %1093 = vdwg.mxu0
    %v1094 = vmul.f32 %v1091, 0.17677669
    %v1095 = vsel %vm106, %v1094, -3.4028235e+38
    %v1096 = vsel %vm383, %v1095, -inf
    %1097 = vmax.xlane.f32.xlu0 %v1096
    %v1098 = vpop.xlane.xlu0 %1097
    %v1099 = vsub.f32 %v1095, %v1098
    %v1100 = vmul.f32 %v1099, 1.442695
    %v1101 = vpow.pop %v1100
    %v1102 = vsel %vm383, %v1101, 0.0
    %1103 = vadd.xlane.f32.xlu0 %v1102
    %v1104 = vpop.xlane.xlu0 %1103
    %v1105 = vrcp.pop %v1104
    %v1106 = vmul.f32 %v1104, %v1105
    %v1107 = vsub.f32 1.0, %v1106
    %v1108 = vmul.f32 %v1105, %v1107
    %v1109 = vadd.f32 %v1105, %v1108
    %vm1110 = vweird.f32 %v1104
    %vm1111 = vweird.f32 %v1105
    %vm1112 = vmor %vm1110, %vm1111
    %v1113 = vsel %vm1112, %v1105, %v1109
    %v1114 = vand.u32 2147483647, %v1104
    %vm1115 = vcmp.eq.f32.partialorder %v1114, 8.507059e+37
    %v1116 = vand.u32 %v1104, 2147483648
    %v1117 = vor.u32 1.1754944e-38, %v1116
    %v1118 = vsel %vm1115, %v1117, %v1113
    %v1119 = vmul.f32 %v1101, %v1118
    %v1120 = vpack.c.bf16 %v1119, %v1119
    %v1122 = vsel %vm383, %v1120, 0
    %v1125 = vsel %vm412, %v1071, 0
    %1127 = vmatpush.bf16.msra.mxu0 0
    %1128 = vmatpush.bf16.msra.mxu0 0
    %1129 = vmatpush.bf16.msra.mxu0 0
    %1130 = vmatpush.bf16.msra.mxu0 0
    %1131 = vmatpush.bf16.msra.mxu0 0
    %1132 = vmatpush.bf16.msra.mxu0 0
    %1133 = vmatpush.bf16.msra.mxu0 0
    %1134 = vmatpush.bf16.msra.mxu0 %v1125
    %1135 = vmatmul.bf16.gmra.mxu0 %v1122
    %v1136 = vpop.f32.mrf.mxu0
    %v1137 = vadd.f32 0.0, %v1136
    %v1138 = vpop.f32.mrf.mxu0
    %1139 = vdwg.mxu0
    %v1140 = vpack.c.bf16 %v1137, %v1137
    %s1141 = scalar_lea.vmem %s9, 32
    %v1142 = vld [vmem:[%s1141] sm:$0xf]
    %v1143 = vld [vmem:[%s1141 + $0x4] sm:$0xf]
    %v1144 = vld [vmem:[%s1141 + $0x8] sm:$0xf]
    %v1145 = vld [vmem:[%s1141 + $0xc] sm:$0xf]
    %v1150 = vunpack.c.l.b16 %v1142
    %v1151 = vunpack.c.l.b16 %v1143
    %v1152 = vunpack.c.l.b16 %v1144
    %v1153 = vunpack.c.l.b16 %v1145
    %v1154 = vpack.c.b16 %v1151, %v1150
    %v1155 = vpack.c.b16 %v1153, %v1152
    %v1159 = vsel %vm361, %v1140, 0
    %1161 = vmatpush.bf16.msra.mxu0 0
    %1162 = vmatpush.bf16.msra.mxu0 0
    %1163 = vmatpush.bf16.msra.mxu0 0
    %1164 = vmatpush.bf16.msra.mxu0 0
    %1165 = vmatpush.bf16.msra.mxu0 0
    %1166 = vmatpush.bf16.msra.mxu0 0
    %1167 = vmatpush.bf16.msra.mxu0 %v1155
    %1168 = vmatpush.bf16.msra.mxu0 %v1154
    %1169 = vmatmul.bf16.gmra.mxu0 %v1159
    %v1170 = vpop.f32.mrf.mxu0
    %v1171 = vadd.f32 0.0, %v1170
    %v1172 = vpop.f32.mrf.mxu0
    %1173 = vdwg.mxu0
    %v1174 = vadd.f32 %v818, %v1171
    %s1175 = scalar_lea.vmem %s3, 192
    %v1176 = vld [vmem:[%s1175] sm:$0xf]
    %v1177 = vld [vmem:[%s1175 + $0x4] sm:$0xf]
    %v1178 = vld [vmem:[%s1175 + $0x8] sm:$0xf]
    %v1179 = vld [vmem:[%s1175 + $0xc] sm:$0xf]
    %v1180 = vld [vmem:[%s1175 + $0x10] sm:$0xf]
    %v1181 = vld [vmem:[%s1175 + $0x14] sm:$0xf]
    %v1182 = vld [vmem:[%s1175 + $0x18] sm:$0xf]
    %v1183 = vld [vmem:[%s1175 + $0x1c] sm:$0xf]
    %v1184 = vld [vmem:[%s1175 + $0x20] sm:$0xf]
    %v1185 = vld [vmem:[%s1175 + $0x24] sm:$0xf]
    %v1186 = vld [vmem:[%s1175 + $0x28] sm:$0xf]
    %v1187 = vld [vmem:[%s1175 + $0x2c] sm:$0xf]
    %v1188 = vld [vmem:[%s1175 + $0x30] sm:$0xf]
    %v1189 = vld [vmem:[%s1175 + $0x34] sm:$0xf]
    %v1190 = vld [vmem:[%s1175 + $0x38] sm:$0xf]
    %v1191 = vld [vmem:[%s1175 + $0x3c] sm:$0xf]
    %s1192 = scalar_lea.vmem %s6, 3
    %v1193 = vld [vmem:[%s1192] sm:$0x1]
    %v1195 = vperm.slane %v1193, 0
    %v1213 = vunpack.c.l.b16 %v1176
    %v1214 = vunpack.c.l.b16 %v1177
    %v1215 = vunpack.c.l.b16 %v1178
    %v1216 = vunpack.c.l.b16 %v1179
    %v1217 = vunpack.c.l.b16 %v1180
    %v1218 = vunpack.c.l.b16 %v1181
    %v1219 = vunpack.c.l.b16 %v1182
    %v1220 = vunpack.c.l.b16 %v1183
    %v1221 = vunpack.c.l.b16 %v1184
    %v1222 = vunpack.c.l.b16 %v1185
    %v1223 = vunpack.c.l.b16 %v1186
    %v1224 = vunpack.c.l.b16 %v1187
    %v1225 = vunpack.c.l.b16 %v1188
    %v1226 = vunpack.c.l.b16 %v1189
    %v1227 = vunpack.c.l.b16 %v1190
    %v1228 = vunpack.c.l.b16 %v1191
    %v1229 = vpack.c.b16 %v1214, %v1213
    %v1230 = vpack.c.b16 %v1216, %v1215
    %v1231 = vpack.c.b16 %v1218, %v1217
    %v1232 = vpack.c.b16 %v1220, %v1219
    %v1233 = vpack.c.b16 %v1222, %v1221
    %v1234 = vpack.c.b16 %v1224, %v1223
    %v1235 = vpack.c.b16 %v1226, %v1225
    %v1236 = vpack.c.b16 %v1228, %v1227
    %1245 = vmatpush.bf16.msra.mxu0 %v1236
    %1246 = vmatpush.bf16.msra.mxu0 %v1235
    %1247 = vmatpush.bf16.msra.mxu0 %v1234
    %1248 = vmatpush.bf16.msra.mxu0 %v1233
    %1249 = vmatpush.bf16.msra.mxu0 %v1232
    %1250 = vmatpush.bf16.msra.mxu0 %v1231
    %1251 = vmatpush.bf16.msra.mxu0 %v1230
    %1252 = vmatpush.bf16.msra.mxu0 %v1229
    %1253 = vmatmul.bf16.gmra.mxu0 %v101
    %v1254 = vpop.f32.mrf.mxu0
    %v1255 = vadd.f32 %v1195, %v1254
    %v1256 = vpop.f32.mrf.mxu0
    %1257 = vdwg.mxu0
    %s1258 = scalar_lea.vmem %s4, 192
    %v1259 = vld [vmem:[%s1258] sm:$0xf]
    %v1260 = vld [vmem:[%s1258 + $0x4] sm:$0xf]
    %v1261 = vld [vmem:[%s1258 + $0x8] sm:$0xf]
    %v1262 = vld [vmem:[%s1258 + $0xc] sm:$0xf]
    %v1263 = vld [vmem:[%s1258 + $0x10] sm:$0xf]
    %v1264 = vld [vmem:[%s1258 + $0x14] sm:$0xf]
    %v1265 = vld [vmem:[%s1258 + $0x18] sm:$0xf]
    %v1266 = vld [vmem:[%s1258 + $0x1c] sm:$0xf]
    %v1267 = vld [vmem:[%s1258 + $0x20] sm:$0xf]
    %v1268 = vld [vmem:[%s1258 + $0x24] sm:$0xf]
    %v1269 = vld [vmem:[%s1258 + $0x28] sm:$0xf]
    %v1270 = vld [vmem:[%s1258 + $0x2c] sm:$0xf]
    %v1271 = vld [vmem:[%s1258 + $0x30] sm:$0xf]
    %v1272 = vld [vmem:[%s1258 + $0x34] sm:$0xf]
    %v1273 = vld [vmem:[%s1258 + $0x38] sm:$0xf]
    %v1274 = vld [vmem:[%s1258 + $0x3c] sm:$0xf]
    %s1275 = scalar_lea.vmem %s7, 3
    %v1276 = vld [vmem:[%s1275] sm:$0x1]
    %v1278 = vperm.slane %v1276, 0
    %v1296 = vunpack.c.l.b16 %v1259
    %v1297 = vunpack.c.l.b16 %v1260
    %v1298 = vunpack.c.l.b16 %v1261
    %v1299 = vunpack.c.l.b16 %v1262
    %v1300 = vunpack.c.l.b16 %v1263
    %v1301 = vunpack.c.l.b16 %v1264
    %v1302 = vunpack.c.l.b16 %v1265
    %v1303 = vunpack.c.l.b16 %v1266
    %v1304 = vunpack.c.l.b16 %v1267
    %v1305 = vunpack.c.l.b16 %v1268
    %v1306 = vunpack.c.l.b16 %v1269
    %v1307 = vunpack.c.l.b16 %v1270
    %v1308 = vunpack.c.l.b16 %v1271
    %v1309 = vunpack.c.l.b16 %v1272
    %v1310 = vunpack.c.l.b16 %v1273
    %v1311 = vunpack.c.l.b16 %v1274
    %v1312 = vpack.c.b16 %v1297, %v1296
    %v1313 = vpack.c.b16 %v1299, %v1298
    %v1314 = vpack.c.b16 %v1301, %v1300
    %v1315 = vpack.c.b16 %v1303, %v1302
    %v1316 = vpack.c.b16 %v1305, %v1304
    %v1317 = vpack.c.b16 %v1307, %v1306
    %v1318 = vpack.c.b16 %v1309, %v1308
    %v1319 = vpack.c.b16 %v1311, %v1310
    %1328 = vmatpush.bf16.msra.mxu0 %v1319
    %1329 = vmatpush.bf16.msra.mxu0 %v1318
    %1330 = vmatpush.bf16.msra.mxu0 %v1317
    %1331 = vmatpush.bf16.msra.mxu0 %v1316
    %1332 = vmatpush.bf16.msra.mxu0 %v1315
    %1333 = vmatpush.bf16.msra.mxu0 %v1314
    %1334 = vmatpush.bf16.msra.mxu0 %v1313
    %1335 = vmatpush.bf16.msra.mxu0 %v1312
    %1336 = vmatmul.bf16.gmra.mxu0 %v101
    %v1337 = vpop.f32.mrf.mxu0
    %v1338 = vadd.f32 %v1278, %v1337
    %v1339 = vpop.f32.mrf.mxu0
    %1340 = vdwg.mxu0
    %s1341 = scalar_lea.vmem %s5, 192
    %v1342 = vld [vmem:[%s1341] sm:$0xf]
    %v1343 = vld [vmem:[%s1341 + $0x4] sm:$0xf]
    %v1344 = vld [vmem:[%s1341 + $0x8] sm:$0xf]
    %v1345 = vld [vmem:[%s1341 + $0xc] sm:$0xf]
    %v1346 = vld [vmem:[%s1341 + $0x10] sm:$0xf]
    %v1347 = vld [vmem:[%s1341 + $0x14] sm:$0xf]
    %v1348 = vld [vmem:[%s1341 + $0x18] sm:$0xf]
    %v1349 = vld [vmem:[%s1341 + $0x1c] sm:$0xf]
    %v1350 = vld [vmem:[%s1341 + $0x20] sm:$0xf]
    %v1351 = vld [vmem:[%s1341 + $0x24] sm:$0xf]
    %v1352 = vld [vmem:[%s1341 + $0x28] sm:$0xf]
    %v1353 = vld [vmem:[%s1341 + $0x2c] sm:$0xf]
    %v1354 = vld [vmem:[%s1341 + $0x30] sm:$0xf]
    %v1355 = vld [vmem:[%s1341 + $0x34] sm:$0xf]
    %v1356 = vld [vmem:[%s1341 + $0x38] sm:$0xf]
    %v1357 = vld [vmem:[%s1341 + $0x3c] sm:$0xf]
    %s1358 = scalar_lea.vmem %s8, 3
    %v1359 = vld [vmem:[%s1358] sm:$0x1]
    %v1361 = vperm.slane %v1359, 0
    %v1379 = vunpack.c.l.b16 %v1342
    %v1380 = vunpack.c.l.b16 %v1343
    %v1381 = vunpack.c.l.b16 %v1344
    %v1382 = vunpack.c.l.b16 %v1345
    %v1383 = vunpack.c.l.b16 %v1346
    %v1384 = vunpack.c.l.b16 %v1347
    %v1385 = vunpack.c.l.b16 %v1348
    %v1386 = vunpack.c.l.b16 %v1349
    %v1387 = vunpack.c.l.b16 %v1350
    %v1388 = vunpack.c.l.b16 %v1351
    %v1389 = vunpack.c.l.b16 %v1352
    %v1390 = vunpack.c.l.b16 %v1353
    %v1391 = vunpack.c.l.b16 %v1354
    %v1392 = vunpack.c.l.b16 %v1355
    %v1393 = vunpack.c.l.b16 %v1356
    %v1394 = vunpack.c.l.b16 %v1357
    %v1395 = vpack.c.b16 %v1380, %v1379
    %v1396 = vpack.c.b16 %v1382, %v1381
    %v1397 = vpack.c.b16 %v1384, %v1383
    %v1398 = vpack.c.b16 %v1386, %v1385
    %v1399 = vpack.c.b16 %v1388, %v1387
    %v1400 = vpack.c.b16 %v1390, %v1389
    %v1401 = vpack.c.b16 %v1392, %v1391
    %v1402 = vpack.c.b16 %v1394, %v1393
    %1411 = vmatpush.bf16.msra.mxu0 %v1402
    %1412 = vmatpush.bf16.msra.mxu0 %v1401
    %1413 = vmatpush.bf16.msra.mxu0 %v1400
    %1414 = vmatpush.bf16.msra.mxu0 %v1399
    %1415 = vmatpush.bf16.msra.mxu0 %v1398
    %1416 = vmatpush.bf16.msra.mxu0 %v1397
    %1417 = vmatpush.bf16.msra.mxu0 %v1396
    %1418 = vmatpush.bf16.msra.mxu0 %v1395
    %1419 = vmatmul.bf16.gmra.mxu0 %v101
    %v1420 = vpop.f32.mrf.mxu0
    %v1421 = vadd.f32 %v1361, %v1420
    %v1422 = vpop.f32.mrf.mxu0
    %1423 = vdwg.mxu0
    %v1424 = vpack.c.bf16 %v1338, %v1338
    %s1425 = scalar_lea.vmem [#allocation2], 12
    %1426 = vst.msk [vmem:[%s1425] sm:$0xf] %vm356, %v1424
    %v1427 = vpack.c.bf16 %v1421, %v1421
    %s1428 = scalar_lea.vmem [#allocation4], 12
    %1429 = vst.msk [vmem:[%s1428] sm:$0xf] %vm356, %v1427
    %v1430 = vpack.c.bf16 %v1255, %v1255
    %v1432 = vsel %vm361, %v1430, 0
    %v1435 = vsel %vm361, %v1424, 0
    %1437 = vmatpush.bf16.xpose.msra.mxu0 0
    %1438 = vmatpush.bf16.xpose.msra.mxu0 0
    %1439 = vmatpush.bf16.xpose.msra.mxu0 0
    %1440 = vmatpush.bf16.xpose.msra.mxu0 0
    %1441 = vmatpush.bf16.xpose.msra.mxu0 0
    %1442 = vmatpush.bf16.xpose.msra.mxu0 0
    %1443 = vmatpush.bf16.xpose.msra.mxu0 0
    %1444 = vmatpush.bf16.xpose.msra.mxu0 %v1435
    %1445 = vmatmul.bf16.gmra.mxu0 %v1432
    %v1446 = vpop.f32.mrf.mxu0
    %v1447 = vadd.f32 0.0, %v1446
    %v1448 = vpop.f32.mrf.mxu0
    %1449 = vdwg.mxu0
    %v1450 = vmul.f32 %v1447, 0.17677669
    %v1451 = vsel %vm106, %v1450, -3.4028235e+38
    %v1452 = vsel %vm383, %v1451, -inf
    %1453 = vmax.xlane.f32.xlu0 %v1452
    %v1454 = vpop.xlane.xlu0 %1453
    %v1455 = vsub.f32 %v1451, %v1454
    %v1456 = vmul.f32 %v1455, 1.442695
    %v1457 = vpow.pop %v1456
    %v1458 = vsel %vm383, %v1457, 0.0
    %1459 = vadd.xlane.f32.xlu0 %v1458
    %v1460 = vpop.xlane.xlu0 %1459
    %v1461 = vrcp.pop %v1460
    %v1462 = vmul.f32 %v1460, %v1461
    %v1463 = vsub.f32 1.0, %v1462
    %v1464 = vmul.f32 %v1461, %v1463
    %v1465 = vadd.f32 %v1461, %v1464
    %vm1466 = vweird.f32 %v1460
    %vm1467 = vweird.f32 %v1461
    %vm1468 = vmor %vm1466, %vm1467
    %v1469 = vsel %vm1468, %v1461, %v1465
    %v1470 = vand.u32 2147483647, %v1460
    %vm1471 = vcmp.eq.f32.partialorder %v1470, 8.507059e+37
    %v1472 = vand.u32 %v1460, 2147483648
    %v1473 = vor.u32 1.1754944e-38, %v1472
    %v1474 = vsel %vm1471, %v1473, %v1469
    %v1475 = vmul.f32 %v1457, %v1474
    %v1476 = vpack.c.bf16 %v1475, %v1475
    %v1478 = vsel %vm383, %v1476, 0
    %v1481 = vsel %vm412, %v1427, 0
    %1483 = vmatpush.bf16.msra.mxu0 0
    %1484 = vmatpush.bf16.msra.mxu0 0
    %1485 = vmatpush.bf16.msra.mxu0 0
    %1486 = vmatpush.bf16.msra.mxu0 0
    %1487 = vmatpush.bf16.msra.mxu0 0
    %1488 = vmatpush.bf16.msra.mxu0 0
    %1489 = vmatpush.bf16.msra.mxu0 0
    %1490 = vmatpush.bf16.msra.mxu0 %v1481
    %1491 = vmatmul.bf16.gmra.mxu0 %v1478
    %v1492 = vpop.f32.mrf.mxu0
    %v1493 = vadd.f32 0.0, %v1492
    %v1494 = vpop.f32.mrf.mxu0
    %1495 = vdwg.mxu0
    %v1496 = vpack.c.bf16 %v1493, %v1493
    %s1497 = scalar_lea.vmem %s9, 48
    %v1498 = vld [vmem:[%s1497] sm:$0xf]
    %v1499 = vld [vmem:[%s1497 + $0x4] sm:$0xf]
    %v1500 = vld [vmem:[%s1497 + $0x8] sm:$0xf]
    %v1501 = vld [vmem:[%s1497 + $0xc] sm:$0xf]
    %v1506 = vunpack.c.l.b16 %v1498
    %v1507 = vunpack.c.l.b16 %v1499
    %v1508 = vunpack.c.l.b16 %v1500
    %v1509 = vunpack.c.l.b16 %v1501
    %v1510 = vpack.c.b16 %v1507, %v1506
    %v1511 = vpack.c.b16 %v1509, %v1508
    %v1515 = vsel %vm361, %v1496, 0
    %1517 = vmatpush.bf16.msra.mxu0 0
    %1518 = vmatpush.bf16.msra.mxu0 0
    %1519 = vmatpush.bf16.msra.mxu0 0
    %1520 = vmatpush.bf16.msra.mxu0 0
    %1521 = vmatpush.bf16.msra.mxu0 0
    %1522 = vmatpush.bf16.msra.mxu0 0
    %1523 = vmatpush.bf16.msra.mxu0 %v1511
    %1524 = vmatpush.bf16.msra.mxu0 %v1510
    %1525 = vmatmul.bf16.gmra.mxu0 %v1515
    %v1526 = vpop.f32.mrf.mxu0
    %v1527 = vadd.f32 0.0, %v1526
    %v1528 = vpop.f32.mrf.mxu0
    %1529 = vdwg.mxu0
    %v1530 = vadd.f32 %v1174, %v1527
    %1531 = vadd.xlane.f32.xlu0 %v1530
    %v1532 = vpop.xlane.xlu0 %1531
    %v1533 = vmul.f32 %v1532, %v72
    %v1534 = vsub.f32 %v1530, %v1533
    %v1535 = vmul.f32 %v1534, %v1534
    %1536 = vadd.xlane.f32.xlu0 %v1535
    %v1537 = vpop.xlane.xlu0 %1536
    %v1538 = vmul.f32 %v1537, %v72
    %v1539 = vadd.f32 %v1538, 1e-05
    %v1540 = vrsqrt.pop %v1539
    %v1541 = vmul.f32 %v1540, %v1539
    %v1542 = vmul.f32 %v1541, %v1540
    %v1543 = vmul.f32 0.5, %v1542
    %v1544 = vsub.f32 1.5, %v1543
    %v1545 = vmul.f32 %v1540, %v1544
    %vm1546 = vweird.f32 %v1539
    %vm1547 = vweird.f32 %v1540
    %vm1548 = vmor %vm1546, %vm1547
    %v1549 = vsel %vm1548, %v1540, %v1545
    %v1550 = vmul.f32 %v1534, %v1549
    %v1551 = vld [vmem:[%s11] sm:$0x1]
    %v1553 = vperm.slane %v1551, 0
    %v1555 = vmul.f32 %v1550, %v1553
    %v1556 = vld [vmem:[%s12] sm:$0x1]
    %v1558 = vperm.slane %v1556, 0
    %v1560 = vadd.f32 %v1555, %v1558
    %v1561 = vpack.c.bf16 %v1560, %v1560
    %v1562 = vld [vmem:[%s13] sm:$0xff]
    %v1563 = vld [vmem:[%s13 + $0x8] sm:$0xff]
    %v1564 = vld [vmem:[%s13 + $0x10] sm:$0xff]
    %v1565 = vld [vmem:[%s13 + $0x18] sm:$0xff]
    %v1566 = vld [vmem:[%s13 + $0x20] sm:$0xff]
    %v1567 = vld [vmem:[%s13 + $0x28] sm:$0xff]
    %v1568 = vld [vmem:[%s13 + $0x30] sm:$0xff]
    %v1569 = vld [vmem:[%s13 + $0x38] sm:$0xff]
    %v1570 = vld [vmem:[%s13 + $0x40] sm:$0xff]
    %v1571 = vld [vmem:[%s13 + $0x48] sm:$0xff]
    %v1572 = vld [vmem:[%s13 + $0x50] sm:$0xff]
    %v1573 = vld [vmem:[%s13 + $0x58] sm:$0xff]
    %v1574 = vld [vmem:[%s13 + $0x60] sm:$0xff]
    %v1575 = vld [vmem:[%s13 + $0x68] sm:$0xff]
    %v1576 = vld [vmem:[%s13 + $0x70] sm:$0xff]
    %v1577 = vld [vmem:[%s13 + $0x78] sm:$0xff]
    %v1578 = vld [vmem:[%s13 + $0x80] sm:$0xff]
    %v1579 = vld [vmem:[%s13 + $0x88] sm:$0xff]
    %v1580 = vld [vmem:[%s13 + $0x90] sm:$0xff]
    %v1581 = vld [vmem:[%s13 + $0x98] sm:$0xff]
    %v1582 = vld [vmem:[%s13 + $0xa0] sm:$0xff]
    %v1583 = vld [vmem:[%s13 + $0xa8] sm:$0xff]
    %v1584 = vld [vmem:[%s13 + $0xb0] sm:$0xff]
    %v1585 = vld [vmem:[%s13 + $0xb8] sm:$0xff]
    %v1586 = vld [vmem:[%s13 + $0xc0] sm:$0xff]
    %v1587 = vld [vmem:[%s13 + $0xc8] sm:$0xff]
    %v1588 = vld [vmem:[%s13 + $0xd0] sm:$0xff]
    %v1589 = vld [vmem:[%s13 + $0xd8] sm:$0xff]
    %v1590 = vld [vmem:[%s13 + $0xe0] sm:$0xff]
    %v1591 = vld [vmem:[%s13 + $0xe8] sm:$0xff]
    %v1592 = vld [vmem:[%s13 + $0xf0] sm:$0xff]
    %v1593 = vld [vmem:[%s13 + $0xf8] sm:$0xff]
    %v1594 = vld [vmem:[%s14] sm:$0xf]
    %v1596 = vperm.slane %v1594, 0
    %v1597 = vperm.slane %v1594, 1
    %v1598 = vperm.slane %v1594, 2
    %v1599 = vperm.slane %v1594, 3
    %v1636 = vunpack.c.l.b16 %v1562
    %v1637 = vunpack.c.h.b16 %v1562
    %v1638 = vunpack.c.l.b16 %v1563
    %v1639 = vunpack.c.h.b16 %v1563
    %v1640 = vunpack.c.l.b16 %v1564
    %v1641 = vunpack.c.h.b16 %v1564
    %v1642 = vunpack.c.l.b16 %v1565
    %v1643 = vunpack.c.h.b16 %v1565
    %v1644 = vunpack.c.l.b16 %v1566
    %v1645 = vunpack.c.h.b16 %v1566
    %v1646 = vunpack.c.l.b16 %v1567
    %v1647 = vunpack.c.h.b16 %v1567
    %v1648 = vunpack.c.l.b16 %v1568
    %v1649 = vunpack.c.h.b16 %v1568
    %v1650 = vunpack.c.l.b16 %v1569
    %v1651 = vunpack.c.h.b16 %v1569
    %v1652 = vunpack.c.l.b16 %v1570
    %v1653 = vunpack.c.h.b16 %v1570
    %v1654 = vunpack.c.l.b16 %v1571
    %v1655 = vunpack.c.h.b16 %v1571
    %v1656 = vunpack.c.l.b16 %v1572
    %v1657 = vunpack.c.h.b16 %v1572
    %v1658 = vunpack.c.l.b16 %v1573
    %v1659 = vunpack.c.h.b16 %v1573
    %v1660 = vunpack.c.l.b16 %v1574
    %v1661 = vunpack.c.h.b16 %v1574
    %v1662 = vunpack.c.l.b16 %v1575
    %v1663 = vunpack.c.h.b16 %v1575
    %v1664 = vunpack.c.l.b16 %v1576
    %v1665 = vunpack.c.h.b16 %v1576
    %v1666 = vunpack.c.l.b16 %v1577
    %v1667 = vunpack.c.h.b16 %v1577
    %v1668 = vunpack.c.l.b16 %v1578
    %v1669 = vunpack.c.h.b16 %v1578
    %v1670 = vunpack.c.l.b16 %v1579
    %v1671 = vunpack.c.h.b16 %v1579
    %v1672 = vunpack.c.l.b16 %v1580
    %v1673 = vunpack.c.h.b16 %v1580
    %v1674 = vunpack.c.l.b16 %v1581
    %v1675 = vunpack.c.h.b16 %v1581
    %v1676 = vunpack.c.l.b16 %v1582
    %v1677 = vunpack.c.h.b16 %v1582
    %v1678 = vunpack.c.l.b16 %v1583
    %v1679 = vunpack.c.h.b16 %v1583
    %v1680 = vunpack.c.l.b16 %v1584
    %v1681 = vunpack.c.h.b16 %v1584
    %v1682 = vunpack.c.l.b16 %v1585
    %v1683 = vunpack.c.h.b16 %v1585
    %v1684 = vunpack.c.l.b16 %v1586
    %v1685 = vunpack.c.h.b16 %v1586
    %v1686 = vunpack.c.l.b16 %v1587
    %v1687 = vunpack.c.h.b16 %v1587
    %v1688 = vunpack.c.l.b16 %v1588
    %v1689 = vunpack.c.h.b16 %v1588
    %v1690 = vunpack.c.l.b16 %v1589
    %v1691 = vunpack.c.h.b16 %v1589
    %v1692 = vunpack.c.l.b16 %v1590
    %v1693 = vunpack.c.h.b16 %v1590
    %v1694 = vunpack.c.l.b16 %v1591
    %v1695 = vunpack.c.h.b16 %v1591
    %v1696 = vunpack.c.l.b16 %v1592
    %v1697 = vunpack.c.h.b16 %v1592
    %v1698 = vunpack.c.l.b16 %v1593
    %v1699 = vunpack.c.h.b16 %v1593
    %v1700 = vpack.c.b16 %v1640, %v1636
    %v1701 = vpack.c.b16 %v1641, %v1637
    %v1702 = vpack.c.b16 %v1642, %v1638
    %v1703 = vpack.c.b16 %v1643, %v1639
    %v1704 = vpack.c.b16 %v1648, %v1644
    %v1705 = vpack.c.b16 %v1649, %v1645
    %v1706 = vpack.c.b16 %v1650, %v1646
    %v1707 = vpack.c.b16 %v1651, %v1647
    %v1708 = vpack.c.b16 %v1656, %v1652
    %v1709 = vpack.c.b16 %v1657, %v1653
    %v1710 = vpack.c.b16 %v1658, %v1654
    %v1711 = vpack.c.b16 %v1659, %v1655
    %v1712 = vpack.c.b16 %v1664, %v1660
    %v1713 = vpack.c.b16 %v1665, %v1661
    %v1714 = vpack.c.b16 %v1666, %v1662
    %v1715 = vpack.c.b16 %v1667, %v1663
    %v1716 = vpack.c.b16 %v1672, %v1668
    %v1717 = vpack.c.b16 %v1673, %v1669
    %v1718 = vpack.c.b16 %v1674, %v1670
    %v1719 = vpack.c.b16 %v1675, %v1671
    %v1720 = vpack.c.b16 %v1680, %v1676
    %v1721 = vpack.c.b16 %v1681, %v1677
    %v1722 = vpack.c.b16 %v1682, %v1678
    %v1723 = vpack.c.b16 %v1683, %v1679
    %v1724 = vpack.c.b16 %v1688, %v1684
    %v1725 = vpack.c.b16 %v1689, %v1685
    %v1726 = vpack.c.b16 %v1690, %v1686
    %v1727 = vpack.c.b16 %v1691, %v1687
    %v1728 = vpack.c.b16 %v1696, %v1692
    %v1729 = vpack.c.b16 %v1697, %v1693
    %v1730 = vpack.c.b16 %v1698, %v1694
    %v1731 = vpack.c.b16 %v1699, %v1695
    %1764 = vmatpush.bf16.msra.mxu0 %v1728
    %1765 = vmatpush.bf16.msra.mxu0 %v1724
    %1766 = vmatpush.bf16.msra.mxu0 %v1720
    %1767 = vmatpush.bf16.msra.mxu0 %v1716
    %1768 = vmatpush.bf16.msra.mxu0 %v1712
    %1769 = vmatpush.bf16.msra.mxu0 %v1708
    %1770 = vmatpush.bf16.msra.mxu0 %v1704
    %1771 = vmatpush.bf16.msra.mxu0 %v1700
    %1772 = vmatmul.bf16.gmra.mxu0 %v1561
    %v1773 = vpop.f32.mrf.mxu0
    %v1774 = vadd.f32 %v1596, %v1773
    %v1775 = vpop.f32.mrf.mxu0
    %1776 = vdwg.mxu0
    %1777 = vmatpush.bf16.msra.mxu0 %v1729
    %1778 = vmatpush.bf16.msra.mxu0 %v1725
    %1779 = vmatpush.bf16.msra.mxu0 %v1721
    %1780 = vmatpush.bf16.msra.mxu0 %v1717
    %1781 = vmatpush.bf16.msra.mxu0 %v1713
    %1782 = vmatpush.bf16.msra.mxu0 %v1709
    %1783 = vmatpush.bf16.msra.mxu0 %v1705
    %1784 = vmatpush.bf16.msra.mxu0 %v1701
    %1785 = vmatmul.bf16.gmra.mxu0 %v1561
    %v1786 = vpop.f32.mrf.mxu0
    %v1787 = vadd.f32 %v1597, %v1786
    %v1788 = vpop.f32.mrf.mxu0
    %1789 = vdwg.mxu0
    %1790 = vmatpush.bf16.msra.mxu0 %v1730
    %1791 = vmatpush.bf16.msra.mxu0 %v1726
    %1792 = vmatpush.bf16.msra.mxu0 %v1722
    %1793 = vmatpush.bf16.msra.mxu0 %v1718
    %1794 = vmatpush.bf16.msra.mxu0 %v1714
    %1795 = vmatpush.bf16.msra.mxu0 %v1710
    %1796 = vmatpush.bf16.msra.mxu0 %v1706
    %1797 = vmatpush.bf16.msra.mxu0 %v1702
    %1798 = vmatmul.bf16.gmra.mxu0 %v1561
    %v1799 = vpop.f32.mrf.mxu0
    %v1800 = vadd.f32 %v1598, %v1799
    %v1801 = vpop.f32.mrf.mxu0
    %1802 = vdwg.mxu0
    %1803 = vmatpush.bf16.msra.mxu0 %v1731
    %1804 = vmatpush.bf16.msra.mxu0 %v1727
    %1805 = vmatpush.bf16.msra.mxu0 %v1723
    %1806 = vmatpush.bf16.msra.mxu0 %v1719
    %1807 = vmatpush.bf16.msra.mxu0 %v1715
    %1808 = vmatpush.bf16.msra.mxu0 %v1711
    %1809 = vmatpush.bf16.msra.mxu0 %v1707
    %1810 = vmatpush.bf16.msra.mxu0 %v1703
    %1811 = vmatmul.bf16.gmra.mxu0 %v1561
    %v1812 = vpop.f32.mrf.mxu0
    %v1813 = vadd.f32 %v1599, %v1812
    %v1814 = vpop.f32.mrf.mxu0
    %1815 = vdwg.mxu0
    %v1816 = vmul.f32 %v1774, 0.5
    %v1817 = vmul.f32 %v1787, 0.5
    %v1818 = vmul.f32 %v1800, 0.5
    %v1819 = vmul.f32 %v1813, 0.5
    %v1820 = vmul.f32 %v1774, 0.044715
    %v1821 = vmul.f32 %v1787, 0.044715
    %v1822 = vmul.f32 %v1800, 0.044715
    %v1823 = vmul.f32 %v1813, 0.044715
    %v1824 = vmul.f32 %v1820, %v1774
    %v1825 = vmul.f32 %v1821, %v1787
    %v1826 = vmul.f32 %v1822, %v1800
    %v1827 = vmul.f32 %v1823, %v1813
    %v1828 = vmul.f32 %v1824, %v1774
    %v1829 = vmul.f32 %v1825, %v1787
    %v1830 = vmul.f32 %v1826, %v1800
    %v1831 = vmul.f32 %v1827, %v1813
    %v1832 = vadd.f32 %v1774, %v1828
    %v1833 = vadd.f32 %v1787, %v1829
    %v1834 = vadd.f32 %v1800, %v1830
    %v1835 = vadd.f32 %v1813, %v1831
    %v1836 = vmul.f32 %v1832, 0.7978846
    %v1837 = vmul.f32 %v1833, 0.7978846
    %v1838 = vmul.f32 %v1834, 0.7978846
    %v1839 = vmul.f32 %v1835, 0.7978846
    %v1840 = vtanh.pop %v1836
    %v1841 = vtanh.pop %v1837
    %v1842 = vtanh.pop %v1838
    %v1843 = vtanh.pop %v1839
    %v1844 = vadd.f32 %v1840, 1.0
    %v1845 = vadd.f32 %v1841, 1.0
    %v1846 = vadd.f32 %v1842, 1.0
    %v1847 = vadd.f32 %v1843, 1.0
    %v1848 = vmul.f32 %v1816, %v1844
    %v1849 = vmul.f32 %v1817, %v1845
    %v1850 = vmul.f32 %v1818, %v1846
    %v1851 = vmul.f32 %v1819, %v1847
    %v1852 = vpack.c.bf16 %v1848, %v1848
    %v1853 = vpack.c.bf16 %v1849, %v1849
    %v1854 = vpack.c.bf16 %v1850, %v1850
    %v1855 = vpack.c.bf16 %v1851, %v1851
    %v1856 = vld [vmem:[%s15] sm:$0xf]
    %v1857 = vld [vmem:[%s15 + $0x4] sm:$0xf]
    %v1858 = vld [vmem:[%s15 + $0x8] sm:$0xf]
    %v1859 = vld [vmem:[%s15 + $0xc] sm:$0xf]
    %v1860 = vld [vmem:[%s15 + $0x10] sm:$0xf]
    %v1861 = vld [vmem:[%s15 + $0x14] sm:$0xf]
    %v1862 = vld [vmem:[%s15 + $0x18] sm:$0xf]
    %v1863 = vld [vmem:[%s15 + $0x1c] sm:$0xf]
    %v1864 = vld [vmem:[%s15 + $0x20] sm:$0xf]
    %v1865 = vld [vmem:[%s15 + $0x24] sm:$0xf]
    %v1866 = vld [vmem:[%s15 + $0x28] sm:$0xf]
    %v1867 = vld [vmem:[%s15 + $0x2c] sm:$0xf]
    %v1868 = vld [vmem:[%s15 + $0x30] sm:$0xf]
    %v1869 = vld [vmem:[%s15 + $0x34] sm:$0xf]
    %v1870 = vld [vmem:[%s15 + $0x38] sm:$0xf]
    %v1871 = vld [vmem:[%s15 + $0x3c] sm:$0xf]
    %v1872 = vld [vmem:[%s15 + $0x40] sm:$0xf]
    %v1873 = vld [vmem:[%s15 + $0x44] sm:$0xf]
    %v1874 = vld [vmem:[%s15 + $0x48] sm:$0xf]
    %v1875 = vld [vmem:[%s15 + $0x4c] sm:$0xf]
    %v1876 = vld [vmem:[%s15 + $0x50] sm:$0xf]
    %v1877 = vld [vmem:[%s15 + $0x54] sm:$0xf]
    %v1878 = vld [vmem:[%s15 + $0x58] sm:$0xf]
    %v1879 = vld [vmem:[%s15 + $0x5c] sm:$0xf]
    %v1880 = vld [vmem:[%s15 + $0x60] sm:$0xf]
    %v1881 = vld [vmem:[%s15 + $0x64] sm:$0xf]
    %v1882 = vld [vmem:[%s15 + $0x68] sm:$0xf]
    %v1883 = vld [vmem:[%s15 + $0x6c] sm:$0xf]
    %v1884 = vld [vmem:[%s15 + $0x70] sm:$0xf]
    %v1885 = vld [vmem:[%s15 + $0x74] sm:$0xf]
    %v1886 = vld [vmem:[%s15 + $0x78] sm:$0xf]
    %v1887 = vld [vmem:[%s15 + $0x7c] sm:$0xf]
    %v1888 = vld [vmem:[%s15 + $0x80] sm:$0xf]
    %v1889 = vld [vmem:[%s15 + $0x84] sm:$0xf]
    %v1890 = vld [vmem:[%s15 + $0x88] sm:$0xf]
    %v1891 = vld [vmem:[%s15 + $0x8c] sm:$0xf]
    %v1892 = vld [vmem:[%s15 + $0x90] sm:$0xf]
    %v1893 = vld [vmem:[%s15 + $0x94] sm:$0xf]
    %v1894 = vld [vmem:[%s15 + $0x98] sm:$0xf]
    %v1895 = vld [vmem:[%s15 + $0x9c] sm:$0xf]
    %v1896 = vld [vmem:[%s15 + $0xa0] sm:$0xf]
    %v1897 = vld [vmem:[%s15 + $0xa4] sm:$0xf]
    %v1898 = vld [vmem:[%s15 + $0xa8] sm:$0xf]
    %v1899 = vld [vmem:[%s15 + $0xac] sm:$0xf]
    %v1900 = vld [vmem:[%s15 + $0xb0] sm:$0xf]
    %v1901 = vld [vmem:[%s15 + $0xb4] sm:$0xf]
    %v1902 = vld [vmem:[%s15 + $0xb8] sm:$0xf]
    %v1903 = vld [vmem:[%s15 + $0xbc] sm:$0xf]
    %v1904 = vld [vmem:[%s15 + $0xc0] sm:$0xf]
    %v1905 = vld [vmem:[%s15 + $0xc4] sm:$0xf]
    %v1906 = vld [vmem:[%s15 + $0xc8] sm:$0xf]
    %v1907 = vld [vmem:[%s15 + $0xcc] sm:$0xf]
    %v1908 = vld [vmem:[%s15 + $0xd0] sm:$0xf]
    %v1909 = vld [vmem:[%s15 + $0xd4] sm:$0xf]
    %v1910 = vld [vmem:[%s15 + $0xd8] sm:$0xf]
    %v1911 = vld [vmem:[%s15 + $0xdc] sm:$0xf]
    %v1912 = vld [vmem:[%s15 + $0xe0] sm:$0xf]
    %v1913 = vld [vmem:[%s15 + $0xe4] sm:$0xf]
    %v1914 = vld [vmem:[%s15 + $0xe8] sm:$0xf]
    %v1915 = vld [vmem:[%s15 + $0xec] sm:$0xf]
    %v1916 = vld [vmem:[%s15 + $0xf0] sm:$0xf]
    %v1917 = vld [vmem:[%s15 + $0xf4] sm:$0xf]
    %v1918 = vld [vmem:[%s15 + $0xf8] sm:$0xf]
    %v1919 = vld [vmem:[%s15 + $0xfc] sm:$0xf]
    %v1920 = vld [vmem:[%s16] sm:$0x1]
    %v1922 = vperm.slane %v1920, 0
    %v1988 = vunpack.c.l.b16 %v1856
    %v1989 = vunpack.c.l.b16 %v1857
    %v1990 = vunpack.c.l.b16 %v1858
    %v1991 = vunpack.c.l.b16 %v1859
    %v1992 = vunpack.c.l.b16 %v1860
    %v1993 = vunpack.c.l.b16 %v1861
    %v1994 = vunpack.c.l.b16 %v1862
    %v1995 = vunpack.c.l.b16 %v1863
    %v1996 = vunpack.c.l.b16 %v1864
    %v1997 = vunpack.c.l.b16 %v1865
    %v1998 = vunpack.c.l.b16 %v1866
    %v1999 = vunpack.c.l.b16 %v1867
    %v2000 = vunpack.c.l.b16 %v1868
    %v2001 = vunpack.c.l.b16 %v1869
    %v2002 = vunpack.c.l.b16 %v1870
    %v2003 = vunpack.c.l.b16 %v1871
    %v2004 = vunpack.c.l.b16 %v1872
    %v2005 = vunpack.c.l.b16 %v1873
    %v2006 = vunpack.c.l.b16 %v1874
    %v2007 = vunpack.c.l.b16 %v1875
    %v2008 = vunpack.c.l.b16 %v1876
    %v2009 = vunpack.c.l.b16 %v1877
    %v2010 = vunpack.c.l.b16 %v1878
    %v2011 = vunpack.c.l.b16 %v1879
    %v2012 = vunpack.c.l.b16 %v1880
    %v2013 = vunpack.c.l.b16 %v1881
    %v2014 = vunpack.c.l.b16 %v1882
    %v2015 = vunpack.c.l.b16 %v1883
    %v2016 = vunpack.c.l.b16 %v1884
    %v2017 = vunpack.c.l.b16 %v1885
    %v2018 = vunpack.c.l.b16 %v1886
    %v2019 = vunpack.c.l.b16 %v1887
    %v2020 = vunpack.c.l.b16 %v1888
    %v2021 = vunpack.c.l.b16 %v1889
    %v2022 = vunpack.c.l.b16 %v1890
    %v2023 = vunpack.c.l.b16 %v1891
    %v2024 = vunpack.c.l.b16 %v1892
    %v2025 = vunpack.c.l.b16 %v1893
    %v2026 = vunpack.c.l.b16 %v1894
    %v2027 = vunpack.c.l.b16 %v1895
    %v2028 = vunpack.c.l.b16 %v1896
    %v2029 = vunpack.c.l.b16 %v1897
    %v2030 = vunpack.c.l.b16 %v1898
    %v2031 = vunpack.c.l.b16 %v1899
    %v2032 = vunpack.c.l.b16 %v1900
    %v2033 = vunpack.c.l.b16 %v1901
    %v2034 = vunpack.c.l.b16 %v1902
    %v2035 = vunpack.c.l.b16 %v1903
    %v2036 = vunpack.c.l.b16 %v1904
    %v2037 = vunpack.c.l.b16 %v1905
    %v2038 = vunpack.c.l.b16 %v1906
    %v2039 = vunpack.c.l.b16 %v1907
    %v2040 = vunpack.c.l.b16 %v1908
    %v2041 = vunpack.c.l.b16 %v1909
    %v2042 = vunpack.c.l.b16 %v1910
    %v2043 = vunpack.c.l.b16 %v1911
    %v2044 = vunpack.c.l.b16 %v1912
    %v2045 = vunpack.c.l.b16 %v1913
    %v2046 = vunpack.c.l.b16 %v1914
    %v2047 = vunpack.c.l.b16 %v1915
    %v2048 = vunpack.c.l.b16 %v1916
    %v2049 = vunpack.c.l.b16 %v1917
    %v2050 = vunpack.c.l.b16 %v1918
    %v2051 = vunpack.c.l.b16 %v1919
    %v2052 = vpack.c.b16 %v1989, %v1988
    %v2053 = vpack.c.b16 %v1991, %v1990
    %v2054 = vpack.c.b16 %v1993, %v1992
    %v2055 = vpack.c.b16 %v1995, %v1994
    %v2056 = vpack.c.b16 %v1997, %v1996
    %v2057 = vpack.c.b16 %v1999, %v1998
    %v2058 = vpack.c.b16 %v2001, %v2000
    %v2059 = vpack.c.b16 %v2003, %v2002
    %v2060 = vpack.c.b16 %v2005, %v2004
    %v2061 = vpack.c.b16 %v2007, %v2006
    %v2062 = vpack.c.b16 %v2009, %v2008
    %v2063 = vpack.c.b16 %v2011, %v2010
    %v2064 = vpack.c.b16 %v2013, %v2012
    %v2065 = vpack.c.b16 %v2015, %v2014
    %v2066 = vpack.c.b16 %v2017, %v2016
    %v2067 = vpack.c.b16 %v2019, %v2018
    %v2068 = vpack.c.b16 %v2021, %v2020
    %v2069 = vpack.c.b16 %v2023, %v2022
    %v2070 = vpack.c.b16 %v2025, %v2024
    %v2071 = vpack.c.b16 %v2027, %v2026
    %v2072 = vpack.c.b16 %v2029, %v2028
    %v2073 = vpack.c.b16 %v2031, %v2030
    %v2074 = vpack.c.b16 %v2033, %v2032
    %v2075 = vpack.c.b16 %v2035, %v2034
    %v2076 = vpack.c.b16 %v2037, %v2036
    %v2077 = vpack.c.b16 %v2039, %v2038
    %v2078 = vpack.c.b16 %v2041, %v2040
    %v2079 = vpack.c.b16 %v2043, %v2042
    %v2080 = vpack.c.b16 %v2045, %v2044
    %v2081 = vpack.c.b16 %v2047, %v2046
    %v2082 = vpack.c.b16 %v2049, %v2048
    %v2083 = vpack.c.b16 %v2051, %v2050
    %2116 = vmatpush.bf16.msra.mxu0 %v2059
    %2117 = vmatpush.bf16.msra.mxu0 %v2058
    %2118 = vmatpush.bf16.msra.mxu0 %v2057
    %2119 = vmatpush.bf16.msra.mxu0 %v2056
    %2120 = vmatpush.bf16.msra.mxu0 %v2055
    %2121 = vmatpush.bf16.msra.mxu0 %v2054
    %2122 = vmatpush.bf16.msra.mxu0 %v2053
    %2123 = vmatpush.bf16.msra.mxu0 %v2052
    %2124 = vmatmul.bf16.gmra.mxu0 %v1852
    %v2125 = vpop.f32.mrf.mxu0
    %v2126 = vadd.f32 %v1922, %v2125
    %v2127 = vpop.f32.mrf.mxu0
    %2128 = vdwg.mxu0
    %2129 = vmatpush.bf16.msra.mxu0 %v2067
    %2130 = vmatpush.bf16.msra.mxu0 %v2066
    %2131 = vmatpush.bf16.msra.mxu0 %v2065
    %2132 = vmatpush.bf16.msra.mxu0 %v2064
    %2133 = vmatpush.bf16.msra.mxu0 %v2063
    %2134 = vmatpush.bf16.msra.mxu0 %v2062
    %2135 = vmatpush.bf16.msra.mxu0 %v2061
    %2136 = vmatpush.bf16.msra.mxu0 %v2060
    %2137 = vmatmul.bf16.gmra.mxu0 %v1853
    %v2138 = vpop.f32.mrf.mxu0
    %v2139 = vadd.f32 %v2126, %v2138
    %v2140 = vpop.f32.mrf.mxu0
    %2141 = vdwg.mxu0
    %2142 = vmatpush.bf16.msra.mxu0 %v2075
    %2143 = vmatpush.bf16.msra.mxu0 %v2074
    %2144 = vmatpush.bf16.msra.mxu0 %v2073
    %2145 = vmatpush.bf16.msra.mxu0 %v2072
    %2146 = vmatpush.bf16.msra.mxu0 %v2071
    %2147 = vmatpush.bf16.msra.mxu0 %v2070
    %2148 = vmatpush.bf16.msra.mxu0 %v2069
    %2149 = vmatpush.bf16.msra.mxu0 %v2068
    %2150 = vmatmul.bf16.gmra.mxu0 %v1854
    %v2151 = vpop.f32.mrf.mxu0
    %v2152 = vadd.f32 %v2139, %v2151
    %v2153 = vpop.f32.mrf.mxu0
    %2154 = vdwg.mxu0
    %2155 = vmatpush.bf16.msra.mxu0 %v2083
    %2156 = vmatpush.bf16.msra.mxu0 %v2082
    %2157 = vmatpush.bf16.msra.mxu0 %v2081
    %2158 = vmatpush.bf16.msra.mxu0 %v2080
    %2159 = vmatpush.bf16.msra.mxu0 %v2079
    %2160 = vmatpush.bf16.msra.mxu0 %v2078
    %2161 = vmatpush.bf16.msra.mxu0 %v2077
    %2162 = vmatpush.bf16.msra.mxu0 %v2076
    %2163 = vmatmul.bf16.gmra.mxu0 %v1855
    %v2164 = vpop.f32.mrf.mxu0
    %v2165 = vadd.f32 %v2152, %v2164
    %v2166 = vpop.f32.mrf.mxu0
    %2167 = vdwg.mxu0
    %v2168 = vadd.f32 %v2165, %v1530
    %v2169 = vpack.c.bf16 %v2168, %v2168
    %2170 = vst [vmem:[%s17] sm:$0xf] %v2169
    // Predicated region
    $region70: #{_lambda_.3} parent=1 // pred_check
      _
    $region71: #{_lambda_.3} parent=1 // pred_check_branch
      %2172 = sbr.rel (0) target = $region73
    $region72: #{_lambda_.3} parent=1 // pred_region
      _
    $region73: #{_lambda_.3} parent=1 // pred_fallthru
      _
    // Predicated region
    $region74: #{_lambda_.3} parent=1 // pred_check
      _
    $region75: #{_lambda_.3} parent=1 // pred_check_branch
      %2174 = sbr.rel (0) target = $region77
    $region76: #{_lambda_.3} parent=1 // pred_region
      %2176 = vsyncadd [#allocation3], 0
      %s2177 = sshll.u32 [#allocation2], 4
      %s2178 = int_to_ptr.vmem [resolvable:$true] %s2177
      %s2179 = sshll.u32 %s18, 4
      %s2180 = int_to_ptr.hbm [resolvable:$true] %s2179
      %2185 = dma.vmem_to_hbm [thread:$0]  %s2178, 256, %s2180, [#allocation3], 64, 64, 4
    $region77: #{_lambda_.3} parent=1 // pred_fallthru
      _
    // Predicated region
    $region78: #{_lambda_.3} parent=1 // pred_check
      _
    $region79: #{_lambda_.3} parent=1 // pred_check_branch
      %2187 = sbr.rel (0) target = $region81
    $region80: #{_lambda_.3} parent=1 // pred_region
      %2189 = vsyncadd [#allocation5], 0
      %s2190 = sshll.u32 [#allocation4], 4
      %s2191 = int_to_ptr.vmem [resolvable:$true] %s2190
      %s2192 = sshll.u32 %s19, 4
      %s2193 = int_to_ptr.hbm [resolvable:$true] %s2192
      %2198 = dma.vmem_to_hbm [thread:$0]  %s2191, 256, %s2193, [#allocation5], 64, 64, 4
    $region81: #{_lambda_.3} parent=1 // pred_fallthru
      _
    // Predicated region
    $region82: #{_lambda_.3} parent=1 // pred_check
      _
    $region83: #{_lambda_.3} parent=1 // pred_check_branch
      %2200 = sbr.rel (0) target = $region85
    $region84: #{_lambda_.3} parent=1 // pred_region
      _
    $region85: #{_lambda_.3} parent=1 // pred_fallthru
      _
    // Predicated region
    $region86: #{_lambda_.3} parent=1 // pred_check
      _
    $region87: #{_lambda_.3} parent=1 // pred_check_branch
      %2202 = sbr.rel (0) target = $region89
    $region88: #{_lambda_.3} parent=1 // pred_region
      %2204 = dma.done [#allocation3], 256
    $region89: #{_lambda_.3} parent=1 // pred_fallthru
      _
    // Predicated region
    $region90: #{_lambda_.3} parent=1 // pred_check
      _
    $region91: #{_lambda_.3} parent=1 // pred_check_branch
      %2206 = sbr.rel (0) target = $region93
    $region92: #{_lambda_.3} parent=1 // pred_region
      %2208 = dma.done [#allocation5], 256
    $region93: #{_lambda_.3} parent=1 // pred_fallthru
      _
    %2209 = vsyncpa [#allocation3], 1
    %2210 = vsyncpa [#allocation5], 1

</llo_original>
